<compile_context>
chip_gen: v7x
topology: tpu7x:2x2x1
jax: 0.10.0
libtpu: 0.0.40
codegen_flags: <defaults>
</compile_context>

<pallas_src>
import jax
import jax.numpy as jnp
from jax.experimental import pallas as pl
from jax.experimental.pallas import tpu as pltpu


# ----------------------------------------------------------------------------
# Fused decoder kernel: one grid step per batch image; all intermediates stay
# in VMEM / vregs.  Every matmul is bf16 x bf16 -> f32 on the MXU.
# ----------------------------------------------------------------------------
def _leaky(y):
    # nn.LeakyReLU default negative_slope = 0.01
    return jnp.where(y >= 0.0, y, 0.01 * y)


def _decoder_kernel(xt_ref, xl_ref,
                    w1_ref, b1_ref,               # conv1 (BN scale folded)
                    u_ref,                        # upsample matrix kron(Wh, Ww)
                    w2_ref, b2_ref,               # conv2 (BN folded, Cout padded to 128)
                    w3at_ref, w3ab_ref, b3a_ref,  # conv3a split: 256-part / padded 48-part
                    w3b_ref, b3b_ref,             # conv3b (BN folded)
                    w4_ref, b4_ref,               # conv4 (Cout padded to 128)
                    x_out_ref, seg_ref):
    f32 = jnp.float32
    bf16 = jnp.bfloat16

    # conv1 at the coarse resolution: (ht*wt, 512) @ (512, 256) + bias + LeakyReLU
    y1 = jnp.dot(xt_ref[0], w1_ref[...], preferred_element_type=f32)
    y1 = _leaky(y1 + b1_ref[...]).astype(bf16)

    # conv3a's 256-channel half applied on the coarse grid (1x1 conv commutes
    # with the spatial-only bilinear upsample), then one matmul against the
    # interpolation matrix: (h*w, ht*wt) @ (ht*wt, 256).
    y1w = jnp.dot(y1, w3at_ref[...], preferred_element_type=f32)
    xt_path = jnp.dot(u_ref[...], y1w.astype(bf16), preferred_element_type=f32)

    # conv2 on low-level features: (h*w, 256) @ (256, 128-padded)
    y2 = jnp.dot(xl_ref[0], w2_ref[...], preferred_element_type=f32)
    y2 = _leaky(y2 + b2_ref[...]).astype(bf16)   # padded channels stay exactly 0

    # conv3a with the channel-concat eliminated (split-K accumulate in f32)
    y3 = xt_path + jnp.dot(y2, w3ab_ref[...], preferred_element_type=f32)
    y3 = _leaky(y3 + b3a_ref[...]).astype(bf16)

    # conv3b
    y4 = jnp.dot(y3, w3b_ref[...], preferred_element_type=f32)
    y4 = _leaky(y4 + b3b_ref[...])
    x_out_ref[0] = y4.astype(x_out_ref.dtype)

    # conv4 (bias, no BN / activation); Cout zero-padded to a 128-lane multiple
    seg = jnp.dot(y4.astype(bf16), w4_ref[...], preferred_element_type=f32)
    seg_ref[0] = (seg + b4_ref[...]).astype(seg_ref.dtype)


# ----------------------------------------------------------------------------
# Glue helpers (plain JAX, run once inside the surrounding jit)
# ----------------------------------------------------------------------------
def _interp_matrix(out_size, in_size):
    """Linear-interp matrix (out_size, in_size) for align_corners=True."""
    o = jnp.arange(out_size, dtype=jnp.float32)
    if out_size > 1:
        src = o * (in_size - 1) / (out_size - 1)
    else:
        src = jnp.zeros((out_size,), jnp.float32)
    i0 = jnp.clip(jnp.floor(src).astype(jnp.int32), 0, in_size - 1)
    i1 = jnp.clip(i0 + 1, 0, in_size - 1)
    frac = src - i0.astype(jnp.float32)
    W = jnp.zeros((out_size, in_size), jnp.float32)
    rows = jnp.arange(out_size)
    W = W.at[rows, i0].add(1.0 - frac)
    W = W.at[rows, i1].add(frac)
    return W


def _fold_bn(w, bn, eps=1e-5):
    """Fold eval-mode BN into the 1x1 conv weight; return (w*scale, bias_row)."""
    gamma, beta, mean, var = bn
    s = gamma / jnp.sqrt(var + eps)
    b = beta - mean * s
    return w * s[None, :], b.reshape(1, -1)


def _pad_cols(a, cols):
    out = jnp.zeros((a.shape[0], cols), jnp.float32)
    return out.at[:, : a.shape[1]].set(a)


def _pad_rows(a, rows):
    out = jnp.zeros((rows, a.shape[1]), jnp.float32)
    return out.at[: a.shape[0], :].set(a)


# ----------------------------------------------------------------------------
# DecoderModule forward
# ----------------------------------------------------------------------------
def decoder_forward(xt_nchw, xl_nchw, p):
    N, c_xt, ht, wt = xt_nchw.shape
    _, c_xl, h, w = xl_nchw.shape
    hw_t, hw = ht * wt, h * w
    c1 = p["w1"].shape[1]                       # 256
    c2 = p["w2"].shape[1]                       # 48
    num_classes = p["w4"].shape[1]
    c2p = ((c2 + 127) // 128) * 128             # lane-pad conv2 output channels
    csegp = ((num_classes + 127) // 128) * 128  # lane-pad seg channels

    bf = lambda a: a.astype(jnp.bfloat16)
    f32 = lambda a: a.astype(jnp.float32)

    # channels-last, flattened pixels per image; bf16 activations for the MXU
    xt = bf(jnp.transpose(xt_nchw, (0, 2, 3, 1)).reshape(N, hw_t, c_xt))
    xl = bf(jnp.transpose(xl_nchw, (0, 2, 3, 1)).reshape(N, hw, c_xl))

    # fold BN scale into weights, pad narrow-channel stages to 128 lanes
    w1f, b1 = _fold_bn(p["w1"], p["bn1"])
    w2f, b2 = _fold_bn(p["w2"], p["bn2"])
    w2f, b2 = _pad_cols(w2f, c2p), _pad_cols(b2, c2p)
    w3af, b3a = _fold_bn(p["w3a"], p["bn3a"])
    w3at = w3af[:c1]                          # rows for the conv1 (coarse) path
    w3ab = _pad_rows(w3af[c1:], c2p)          # rows for the (padded) conv2 output
    w3bf, b3b = _fold_bn(p["w3b"], p["bn3b"])
    w4p = _pad_cols(p["w4"], csegp)
    b4p = _pad_cols(p["b4"].reshape(1, -1), csegp)

    # bilinear align_corners=True upsample as a single matmul
    U = jnp.kron(_interp_matrix(h, ht), _interp_matrix(w, wt))

    x_out, seg_p = pl.pallas_call(
        _decoder_kernel,
        out_shape=(
            jax.ShapeDtypeStruct((N, hw, c1), jnp.float32),
            jax.ShapeDtypeStruct((N, hw, csegp), jnp.float32),
        ),
        grid=(N,),
        in_specs=[
            pl.BlockSpec((1, hw_t, c_xt), lambda n: (n, 0, 0)),   # xt per image
            pl.BlockSpec((1, hw, c_xl), lambda n: (n, 0, 0)),     # xl per image
            pl.BlockSpec((c_xt, c1), lambda n: (0, 0)),           # w1 folded
            pl.BlockSpec((1, c1), lambda n: (0, 0)),              # b1
            pl.BlockSpec((hw, hw_t), lambda n: (0, 0)),           # upsample matrix
            pl.BlockSpec((c_xl, c2p), lambda n: (0, 0)),          # w2 folded+padded
            pl.BlockSpec((1, c2p), lambda n: (0, 0)),             # b2 padded
            pl.BlockSpec((c1, c1), lambda n: (0, 0)),             # w3a (top 256 rows)
            pl.BlockSpec((c2p, c1), lambda n: (0, 0)),            # w3a (bottom, padded)
            pl.BlockSpec((1, c1), lambda n: (0, 0)),              # b3a
            pl.BlockSpec((c1, c1), lambda n: (0, 0)),             # w3b folded
            pl.BlockSpec((1, c1), lambda n: (0, 0)),              # b3b
            pl.BlockSpec((c1, csegp), lambda n: (0, 0)),          # w4 padded
            pl.BlockSpec((1, csegp), lambda n: (0, 0)),           # b4 padded
        ],
        out_specs=(
            pl.BlockSpec((1, hw, c1), lambda n: (n, 0, 0)),
            pl.BlockSpec((1, hw, csegp), lambda n: (n, 0, 0)),
        ),
        compiler_params=pltpu.CompilerParams(
            dimension_semantics=("parallel",)),
    )(xt, xl,
      bf(w1f), f32(b1),
      bf(U),
      bf(w2f), f32(b2),
      bf(w3at), bf(w3ab), f32(b3a),
      bf(w3bf), f32(b3b),
      bf(w4p), f32(b4p))

    x_out = jnp.transpose(x_out.reshape(N, h, w, c1), (0, 3, 1, 2))
    seg = seg_p[..., :num_classes]
    seg = jnp.transpose(seg.reshape(N, h, w, num_classes), (0, 3, 1, 2))
    return seg, x_out


# ----------------------------------------------------------------------------
# Deterministic parameter construction
# ----------------------------------------------------------------------------
def make_params(key, num_classes):
    ks = jax.random.split(key, 16)

    def bn(k, c):
        k0, k1, k2, k3 = jax.random.split(k, 4)
        gamma = 1.0 + 0.1 * jax.random.normal(k0, (c,), jnp.float32)
        beta = 0.1 * jax.random.normal(k1, (c,), jnp.float32)
        mean = 0.1 * jax.random.normal(k2, (c,), jnp.float32)
        var = jax.random.uniform(k3, (c,), jnp.float32, 0.5, 1.5)
        return (gamma, beta, mean, var)

    p = {
        "w1": 0.05 * jax.random.normal(ks[0], (512, 256), jnp.float32),
        "bn1": bn(ks[1], 256),
        "w2": 0.05 * jax.random.normal(ks[2], (256, 48), jnp.float32),
        "bn2": bn(ks[3], 48),
        "w3a": 0.05 * jax.random.normal(ks[4], (304, 256), jnp.float32),
        "bn3a": bn(ks[5], 256),
        "w3b": 0.05 * jax.random.normal(ks[6], (256, 256), jnp.float32),
        "bn3b": bn(ks[7], 256),
        "w4": 0.05 * jax.random.normal(ks[8], (256, num_classes), jnp.float32),
        "b4": 0.1 * jax.random.normal(ks[9], (num_classes,), jnp.float32),
    }
    return p


if __name__ == "__main__":
    key = jax.random.PRNGKey(0)
    k_xt, k_xl, k_p = jax.random.split(key, 3)

    num_classes = 7
    # PyTorch NCHW conventions: xt is the coarse feature (512 ch), xl the
    # low-level feature (256 ch) at the target resolution.
    xt = jax.random.normal(k_xt, (2, 512, 8, 8), jnp.float32)
    xl = jax.random.normal(k_xl, (2, 256, 16, 16), jnp.float32)
    params = make_params(k_p, num_classes)

    fwd = jax.jit(decoder_forward)
    seg, x = fwd(xt, xl, params)
    jax.block_until_ready((seg, x))

    assert seg.shape == (2, num_classes, 16, 16), seg.shape
    assert x.shape == (2, 256, 16, 16), x.shape
    assert bool(jnp.all(jnp.isfinite(seg))) and bool(jnp.all(jnp.isfinite(x)))
    print("KERNEL_OK")
</pallas_src>

<mosaic_0001>
module attributes {stable_mosaic.version = 11 : i64} {
  func.func private @main(%arg0: i32) attributes {dimension_semantics = [#tpu.dimension_semantics<core_parallel>], iteration_bounds = array<i64: 2>, tpu.core_type = #tpu.core_type<sc_scalar_subcore>, window_params = []} {
    return
  }
}

module attributes {stable_mosaic.version = 11 : i64} {
  func.func private @main(%arg0: i32) attributes {dimension_semantics = [#tpu.dimension_semantics<core_parallel>], iteration_bounds = array<i64: 2>, tpu.core_type = #tpu.core_type<sc_scalar_subcore>, window_params = []} {
    return
  }
}

module attributes {stable_mosaic.version = 11 : i64} {
  func.func @_decoder_kernel(%arg0: i32, %arg1: memref<1x64x512xbf16, #tpu.memory_space<vmem>>, %arg2: memref<1x256x256xbf16, #tpu.memory_space<vmem>>, %arg3: memref<512x256xbf16, #tpu.memory_space<vmem>>, %arg4: memref<1x256xf32, #tpu.memory_space<vmem>>, %arg5: memref<256x64xbf16, #tpu.memory_space<vmem>>, %arg6: memref<256x128xbf16, #tpu.memory_space<vmem>>, %arg7: memref<1x128xf32, #tpu.memory_space<vmem>>, %arg8: memref<256x256xbf16, #tpu.memory_space<vmem>>, %arg9: memref<128x256xbf16, #tpu.memory_space<vmem>>, %arg10: memref<1x256xf32, #tpu.memory_space<vmem>>, %arg11: memref<256x256xbf16, #tpu.memory_space<vmem>>, %arg12: memref<1x256xf32, #tpu.memory_space<vmem>>, %arg13: memref<256x128xbf16, #tpu.memory_space<vmem>>, %arg14: memref<1x128xf32, #tpu.memory_space<vmem>>, %arg15: memref<1x256x256xf32, #tpu.memory_space<vmem>>, %arg16: memref<1x256x128xf32, #tpu.memory_space<vmem>>) attributes {dimension_semantics = [#tpu.dimension_semantics<parallel>], iteration_bounds = array<i64: 2>, scalar_prefetch = 0 : i64, scratch_operands = 0 : i64, tpu.core_type = #tpu.core_type<tc>, window_params = [{transform_indices = @transform_0, window_bounds = array<i64: 1, 64, 512>}, {transform_indices = @transform_1, window_bounds = array<i64: 1, 256, 256>}, {pipeline_mode = #tpu.pipeline_mode<synchronous>, transform_indices = @transform_2, window_bounds = array<i64: 512, 256>}, {pipeline_mode = #tpu.pipeline_mode<synchronous>, transform_indices = @transform_3, window_bounds = array<i64: 1, 256>}, {pipeline_mode = #tpu.pipeline_mode<synchronous>, transform_indices = @transform_4, window_bounds = array<i64: 256, 64>}, {pipeline_mode = #tpu.pipeline_mode<synchronous>, transform_indices = @transform_5, window_bounds = array<i64: 256, 128>}, {pipeline_mode = #tpu.pipeline_mode<synchronous>, transform_indices = @transform_6, window_bounds = array<i64: 1, 128>}, {pipeline_mode = #tpu.pipeline_mode<synchronous>, transform_indices = @transform_7, window_bounds = array<i64: 256, 256>}, {pipeline_mode = #tpu.pipeline_mode<synchronous>, transform_indices = @transform_8, window_bounds = array<i64: 128, 256>}, {pipeline_mode = #tpu.pipeline_mode<synchronous>, transform_indices = @transform_9, window_bounds = array<i64: 1, 256>}, {pipeline_mode = #tpu.pipeline_mode<synchronous>, transform_indices = @transform_10, window_bounds = array<i64: 256, 256>}, {pipeline_mode = #tpu.pipeline_mode<synchronous>, transform_indices = @transform_11, window_bounds = array<i64: 1, 256>}, {pipeline_mode = #tpu.pipeline_mode<synchronous>, transform_indices = @transform_12, window_bounds = array<i64: 256, 128>}, {pipeline_mode = #tpu.pipeline_mode<synchronous>, transform_indices = @transform_13, window_bounds = array<i64: 1, 128>}, {transform_indices = @transform_14, window_bounds = array<i64: 1, 256, 256>}, {transform_indices = @transform_15, window_bounds = array<i64: 1, 256, 128>}]} {
    %c0 = arith.constant 0 : index
    %c0_0 = arith.constant 0 : index
    %c0_1 = arith.constant 0 : index
    %0 = vector.load %arg1[%c0, %c0_0, %c0_1] : memref<1x64x512xbf16, #tpu.memory_space<vmem>>, vector<1x64x512xbf16>
    %1 = vector.shape_cast %0 : vector<1x64x512xbf16> to vector<64x512xbf16>
    %c0_2 = arith.constant 0 : index
    %c0_3 = arith.constant 0 : index
    %2 = vector.load %arg3[%c0_2, %c0_3] : memref<512x256xbf16, #tpu.memory_space<vmem>>, vector<512x256xbf16>
    %cst = arith.constant dense<0.000000e+00> : vector<64x256xf32>
    %3 = tpu.matmul %1, %2, %cst {dimension_numbers = #tpu.dot_dimension_numbers<[1], [0], [0], [1], [0, 0, 1, 1], [], []>} : vector<64x512xbf16>, vector<512x256xbf16>, vector<64x256xf32> -> vector<64x256xf32>
    %c0_4 = arith.constant 0 : index
    %c0_5 = arith.constant 0 : index
    %4 = vector.load %arg4[%c0_4, %c0_5] : memref<1x256xf32, #tpu.memory_space<vmem>>, vector<1x256xf32>
    %5 = vector.broadcast %4 : vector<1x256xf32> to vector<64x256xf32>
    %6 = arith.addf %3, %5 : vector<64x256xf32>
    %cst_6 = arith.constant 0.000000e+00 : f32
    %7 = vector.broadcast %cst_6 : f32 to vector<64x256xf32>
    %8 = arith.cmpf oge, %6, %7 : vector<64x256xf32>
    %cst_7 = arith.constant 0.00999999977 : f32
    %9 = vector.broadcast %cst_7 : f32 to vector<64x256xf32>
    %10 = arith.mulf %9, %6 : vector<64x256xf32>
    %11 = arith.select %8, %6, %10 : vector<64x256xi1>, vector<64x256xf32>
    %12 = arith.truncf %11 : vector<64x256xf32> to vector<64x256xbf16>
    %c0_8 = arith.constant 0 : index
    %c0_9 = arith.constant 0 : index
    %13 = vector.load %arg8[%c0_8, %c0_9] : memref<256x256xbf16, #tpu.memory_space<vmem>>, vector<256x256xbf16>
    %cst_10 = arith.constant dense<0.000000e+00> : vector<64x256xf32>
    %14 = tpu.matmul %12, %13, %cst_10 {dimension_numbers = #tpu.dot_dimension_numbers<[1], [0], [0], [1], [0, 0, 1, 1], [], []>} : vector<64x256xbf16>, vector<256x256xbf16>, vector<64x256xf32> -> vector<64x256xf32>
    %c0_11 = arith.constant 0 : index
    %c0_12 = arith.constant 0 : index
    %15 = vector.load %arg5[%c0_11, %c0_12] : memref<256x64xbf16, #tpu.memory_space<vmem>>, vector<256x64xbf16>
    %16 = arith.truncf %14 : vector<64x256xf32> to vector<64x256xbf16>
    %cst_13 = arith.constant dense<0.000000e+00> : vector<256x256xf32>
    %17 = tpu.matmul %15, %16, %cst_13 {dimension_numbers = #tpu.dot_dimension_numbers<[1], [0], [0], [1], [0, 0, 1, 1], [], []>} : vector<256x64xbf16>, vector<64x256xbf16>, vector<256x256xf32> -> vector<256x256xf32>
    %c0_14 = arith.constant 0 : index
    %c0_15 = arith.constant 0 : index
    %c0_16 = arith.constant 0 : index
    %18 = vector.load %arg2[%c0_14, %c0_15, %c0_16] : memref<1x256x256xbf16, #tpu.memory_space<vmem>>, vector<1x256x256xbf16>
    %19 = vector.shape_cast %18 : vector<1x256x256xbf16> to vector<256x256xbf16>
    %c0_17 = arith.constant 0 : index
    %c0_18 = arith.constant 0 : index
    %20 = vector.load %arg6[%c0_17, %c0_18] : memref<256x128xbf16, #tpu.memory_space<vmem>>, vector<256x128xbf16>
    %cst_19 = arith.constant dense<0.000000e+00> : vector<256x128xf32>
    %21 = tpu.matmul %19, %20, %cst_19 {dimension_numbers = #tpu.dot_dimension_numbers<[1], [0], [0], [1], [0, 0, 1, 1], [], []>} : vector<256x256xbf16>, vector<256x128xbf16>, vector<256x128xf32> -> vector<256x128xf32>
    %c0_20 = arith.constant 0 : index
    %c0_21 = arith.constant 0 : index
    %22 = vector.load %arg7[%c0_20, %c0_21] : memref<1x128xf32, #tpu.memory_space<vmem>>, vector<1x128xf32>
    %23 = vector.broadcast %22 : vector<1x128xf32> to vector<256x128xf32>
    %24 = arith.addf %21, %23 : vector<256x128xf32>
    %cst_22 = arith.constant 0.000000e+00 : f32
    %25 = vector.broadcast %cst_22 : f32 to vector<256x128xf32>
    %26 = arith.cmpf oge, %24, %25 : vector<256x128xf32>
    %cst_23 = arith.constant 0.00999999977 : f32
    %27 = vector.broadcast %cst_23 : f32 to vector<256x128xf32>
    %28 = arith.mulf %27, %24 : vector<256x128xf32>
    %29 = arith.select %26, %24, %28 : vector<256x128xi1>, vector<256x128xf32>
    %30 = arith.truncf %29 : vector<256x128xf32> to vector<256x128xbf16>
    %c0_24 = arith.constant 0 : index
    %c0_25 = arith.constant 0 : index
    %31 = vector.load %arg9[%c0_24, %c0_25] : memref<128x256xbf16, #tpu.memory_space<vmem>>, vector<128x256xbf16>
    %cst_26 = arith.constant dense<0.000000e+00> : vector<256x256xf32>
    %32 = tpu.matmul %30, %31, %cst_26 {dimension_numbers = #tpu.dot_dimension_numbers<[1], [0], [0], [1], [0, 0, 1, 1], [], []>} : vector<256x128xbf16>, vector<128x256xbf16>, vector<256x256xf32> -> vector<256x256xf32>
    %33 = arith.addf %17, %32 : vector<256x256xf32>
    %c0_27 = arith.constant 0 : index
    %c0_28 = arith.constant 0 : index
    %34 = vector.load %arg10[%c0_27, %c0_28] : memref<1x256xf32, #tpu.memory_space<vmem>>, vector<1x256xf32>
    %35 = vector.broadcast %34 : vector<1x256xf32> to vector<256x256xf32>
    %36 = arith.addf %33, %35 : vector<256x256xf32>
    %cst_29 = arith.constant 0.000000e+00 : f32
    %37 = vector.broadcast %cst_29 : f32 to vector<256x256xf32>
    %38 = arith.cmpf oge, %36, %37 : vector<256x256xf32>
    %cst_30 = arith.constant 0.00999999977 : f32
    %39 = vector.broadcast %cst_30 : f32 to vector<256x256xf32>
    %40 = arith.mulf %39, %36 : vector<256x256xf32>
    %41 = arith.select %38, %36, %40 : vector<256x256xi1>, vector<256x256xf32>
    %42 = arith.truncf %41 : vector<256x256xf32> to vector<256x256xbf16>
    %c0_31 = arith.constant 0 : index
    %c0_32 = arith.constant 0 : index
    %43 = vector.load %arg11[%c0_31, %c0_32] : memref<256x256xbf16, #tpu.memory_space<vmem>>, vector<256x256xbf16>
    %cst_33 = arith.constant dense<0.000000e+00> : vector<256x256xf32>
    %44 = tpu.matmul %42, %43, %cst_33 {dimension_numbers = #tpu.dot_dimension_numbers<[1], [0], [0], [1], [0, 0, 1, 1], [], []>} : vector<256x256xbf16>, vector<256x256xbf16>, vector<256x256xf32> -> vector<256x256xf32>
    %c0_34 = arith.constant 0 : index
    %c0_35 = arith.constant 0 : index
    %45 = vector.load %arg12[%c0_34, %c0_35] : memref<1x256xf32, #tpu.memory_space<vmem>>, vector<1x256xf32>
    %46 = vector.broadcast %45 : vector<1x256xf32> to vector<256x256xf32>
    %47 = arith.addf %44, %46 : vector<256x256xf32>
    %cst_36 = arith.constant 0.000000e+00 : f32
    %48 = vector.broadcast %cst_36 : f32 to vector<256x256xf32>
    %49 = arith.cmpf oge, %47, %48 : vector<256x256xf32>
    %cst_37 = arith.constant 0.00999999977 : f32
    %50 = vector.broadcast %cst_37 : f32 to vector<256x256xf32>
    %51 = arith.mulf %50, %47 : vector<256x256xf32>
    %52 = arith.select %49, %47, %51 : vector<256x256xi1>, vector<256x256xf32>
    %c0_38 = arith.constant 0 : index
    %c0_39 = arith.constant 0 : index
    %c0_40 = arith.constant 0 : index
    %53 = vector.load %arg15[%c0_38, %c0_39, %c0_40] : memref<1x256x256xf32, #tpu.memory_space<vmem>>, vector<1x256x256xf32>
    %54 = vector.shape_cast %53 : vector<1x256x256xf32> to vector<256x256xf32>
    %55 = vector.shape_cast %52 : vector<256x256xf32> to vector<1x256x256xf32>
    tpu.vector_store %arg15[%c0_38, %c0_39, %c0_40], %55 {strides = array<i32>} : memref<1x256x256xf32, #tpu.memory_space<vmem>>, vector<1x256x256xf32>,
    %56 = arith.truncf %52 : vector<256x256xf32> to vector<256x256xbf16>
    %c0_41 = arith.constant 0 : index
    %c0_42 = arith.constant 0 : index
    %57 = vector.load %arg13[%c0_41, %c0_42] : memref<256x128xbf16, #tpu.memory_space<vmem>>, vector<256x128xbf16>
    %cst_43 = arith.constant dense<0.000000e+00> : vector<256x128xf32>
    %58 = tpu.matmul %56, %57, %cst_43 {dimension_numbers = #tpu.dot_dimension_numbers<[1], [0], [0], [1], [0, 0, 1, 1], [], []>} : vector<256x256xbf16>, vector<256x128xbf16>, vector<256x128xf32> -> vector<256x128xf32>
    %c0_44 = arith.constant 0 : index
    %c0_45 = arith.constant 0 : index
    %59 = vector.load %arg14[%c0_44, %c0_45] : memref<1x128xf32, #tpu.memory_space<vmem>>, vector<1x128xf32>
    %60 = vector.broadcast %59 : vector<1x128xf32> to vector<256x128xf32>
    %61 = arith.addf %58, %60 : vector<256x128xf32>
    %c0_46 = arith.constant 0 : index
    %c0_47 = arith.constant 0 : index
    %c0_48 = arith.constant 0 : index
    %62 = vector.load %arg16[%c0_46, %c0_47, %c0_48] : memref<1x256x128xf32, #tpu.memory_space<vmem>>, vector<1x256x128xf32>
    %63 = vector.shape_cast %62 : vector<1x256x128xf32> to vector<256x128xf32>
    %64 = vector.shape_cast %61 : vector<256x128xf32> to vector<1x256x128xf32>
    tpu.vector_store %arg16[%c0_46, %c0_47, %c0_48], %64 {strides = array<i32>} : memref<1x256x128xf32, #tpu.memory_space<vmem>>, vector<1x256x128xf32>,
    return
  }
  func.func @transform_0(%arg0: i32) -> (i32, i32, i32) {
    %c0_i32 = arith.constant 0 : i32
    %c0_i32_0 = arith.constant 0 : i32
    %c0_i32_1 = arith.constant 0 : i32
    return %arg0, %c0_i32, %c0_i32_0 : i32, i32, i32
  }
  func.func @transform_1(%arg0: i32) -> (i32, i32, i32) {
    %c0_i32 = arith.constant 0 : i32
    %c0_i32_0 = arith.constant 0 : i32
    %c0_i32_1 = arith.constant 0 : i32
    return %arg0, %c0_i32, %c0_i32_0 : i32, i32, i32
  }
  func.func @transform_2(%arg0: i32) -> (i32, i32) {
    %c0_i32 = arith.constant 0 : i32
    %c0_i32_0 = arith.constant 0 : i32
    %c0_i32_1 = arith.constant 0 : i32
    return %c0_i32, %c0_i32_0 : i32, i32
  }
  func.func @transform_3(%arg0: i32) -> (i32, i32) {
    %c0_i32 = arith.constant 0 : i32
    %c0_i32_0 = arith.constant 0 : i32
    %c0_i32_1 = arith.constant 0 : i32
    return %c0_i32, %c0_i32_0 : i32, i32
  }
  func.func @transform_4(%arg0: i32) -> (i32, i32) {
    %c0_i32 = arith.constant 0 : i32
    %c0_i32_0 = arith.constant 0 : i32
    %c0_i32_1 = arith.constant 0 : i32
    return %c0_i32, %c0_i32_0 : i32, i32
  }
  func.func @transform_5(%arg0: i32) -> (i32, i32) {
    %c0_i32 = arith.constant 0 : i32
    %c0_i32_0 = arith.constant 0 : i32
    %c0_i32_1 = arith.constant 0 : i32
    return %c0_i32, %c0_i32_0 : i32, i32
  }
  func.func @transform_6(%arg0: i32) -> (i32, i32) {
    %c0_i32 = arith.constant 0 : i32
    %c0_i32_0 = arith.constant 0 : i32
    %c0_i32_1 = arith.constant 0 : i32
    return %c0_i32, %c0_i32_0 : i32, i32
  }
  func.func @transform_7(%arg0: i32) -> (i32, i32) {
    %c0_i32 = arith.constant 0 : i32
    %c0_i32_0 = arith.constant 0 : i32
    %c0_i32_1 = arith.constant 0 : i32
    return %c0_i32, %c0_i32_0 : i32, i32
  }
  func.func @transform_8(%arg0: i32) -> (i32, i32) {
    %c0_i32 = arith.constant 0 : i32
    %c0_i32_0 = arith.constant 0 : i32
    %c0_i32_1 = arith.constant 0 : i32
    return %c0_i32, %c0_i32_0 : i32, i32
  }
  func.func @transform_9(%arg0: i32) -> (i32, i32) {
    %c0_i32 = arith.constant 0 : i32
    %c0_i32_0 = arith.constant 0 : i32
    %c0_i32_1 = arith.constant 0 : i32
    return %c0_i32, %c0_i32_0 : i32, i32
  }
  func.func @transform_10(%arg0: i32) -> (i32, i32) {
    %c0_i32 = arith.constant 0 : i32
    %c0_i32_0 = arith.constant 0 : i32
    %c0_i32_1 = arith.constant 0 : i32
    return %c0_i32, %c0_i32_0 : i32, i32
  }
  func.func @transform_11(%arg0: i32) -> (i32, i32) {
    %c0_i32 = arith.constant 0 : i32
    %c0_i32_0 = arith.constant 0 : i32
    %c0_i32_1 = arith.constant 0 : i32
    return %c0_i32, %c0_i32_0 : i32, i32
  }
  func.func @transform_12(%arg0: i32) -> (i32, i32) {
    %c0_i32 = arith.constant 0 : i32
    %c0_i32_0 = arith.constant 0 : i32
    %c0_i32_1 = arith.constant 0 : i32
    return %c0_i32, %c0_i32_0 : i32, i32
  }
  func.func @transform_13(%arg0: i32) -> (i32, i32) {
    %c0_i32 = arith.constant 0 : i32
    %c0_i32_0 = arith.constant 0 : i32
    %c0_i32_1 = arith.constant 0 : i32
    return %c0_i32, %c0_i32_0 : i32, i32
  }
  func.func @transform_14(%arg0: i32) -> (i32, i32, i32) {
    %c0_i32 = arith.constant 0 : i32
    %c0_i32_0 = arith.constant 0 : i32
    %c0_i32_1 = arith.constant 0 : i32
    return %arg0, %c0_i32, %c0_i32_0 : i32, i32, i32
  }
  func.func @transform_15(%arg0: i32) -> (i32, i32, i32) {
    %c0_i32 = arith.constant 0 : i32
    %c0_i32_0 = arith.constant 0 : i32
    %c0_i32_1 = arith.constant 0 : i32
    return %arg0, %c0_i32, %c0_i32_0 : i32, i32, i32
  }
}

</mosaic_0001>

<llo_original>
// kernel: decoder_forward.1
$region0: #{decoder_forward.1}
  #allocation0 [shape = 'u32[]', space=smem, size = 0x4, offset = 0x4, fixed_abs, tag = 'smem constant byte address 0x4 - core index']
  #allocation1 [shape = 'u32[144,128]{1,0:T(1,128)}', space=vmem, size = 0x12000, scoped, tag = 'internal scratch']
  %s0 = inlined_call_operand.vmem [shape: bf16[2,64,512], index: 0, kind: input, shape index: {}]
  %s1 = inlined_call_operand.vmem [shape: bf16[2,256,256], index: 1, kind: input, shape index: {}]
  %s2 = inlined_call_operand.vmem [shape: bf16[512,256], index: 2, kind: input, shape index: {}]
  %s3 = inlined_call_operand.vmem [shape: f32[1,256], index: 3, kind: input, shape index: {}]
  %s4 = inlined_call_operand.vmem [shape: bf16[256,64], index: 4, kind: input, shape index: {}]
  %s5 = inlined_call_operand.vmem [shape: bf16[256,128], index: 5, kind: input, shape index: {}]
  %s6 = inlined_call_operand.vmem [shape: f32[1,128], index: 6, kind: input, shape index: {}]
  %s7 = inlined_call_operand.vmem [shape: bf16[256,256], index: 7, kind: input, shape index: {}]
  %s8 = inlined_call_operand.vmem [shape: bf16[128,256], index: 8, kind: input, shape index: {}]
  %s9 = inlined_call_operand.vmem [shape: f32[1,256], index: 9, kind: input, shape index: {}]
  %s10 = inlined_call_operand.vmem [shape: bf16[256,256], index: 10, kind: input, shape index: {}]
  %s11 = inlined_call_operand.vmem [shape: f32[1,256], index: 11, kind: input, shape index: {}]
  %s12 = inlined_call_operand.vmem [shape: bf16[256,128], index: 12, kind: input, shape index: {}]
  %s13 = inlined_call_operand.vmem [shape: f32[1,128], index: 13, kind: input, shape index: {}]
  %s14 = inlined_call_operand.hbm [shape: f32[2,256,256], index: 14, kind: output, shape index: {0}]
  %s15 = inlined_call_operand.vmem [shape: f32[2,256,128], index: 15, kind: output, shape index: {1}]
  %16 = xla_tuple %s14, %s15
  %s17 = sld [smem:[#allocation0]]
  $region97: #{decoder_forward.1} parent=0
    _
  %s19 = ssub.s32 1, %s17
  %s20 = scalar_select 0, %s19, %s17
  $region1: #{decoder_forward.1} parent=0
    #allocation2 [shape = 'u8[524288]{0}', space=vmem, size = 0x80000, scoped, tag = 'output window, operand 0']
    #allocation3 [shape = 's32[2]{0}', space=sflag, size = 0x8, scoped, tag = 'scoped memory for decoder_forward.1']
    %21 = vsyncpa [#allocation3], 0
    %s22 = scalar_lea.sflag [#allocation3], 1
    %23 = vsyncpa %s22, 0
    loop: start=0, step=1, limit=4
    $region2: #{decoder_forward.1} parent=1 // loop_pre_header
      _
    $region3: #{decoder_forward.1} parent=1 // loop_header
      %s25 = sphi 0, %s29
      %p26 = scmp.ge.s32.totalorder %s25, 4
      %s35 = sphi 0, %s37
      %s38 = sphi 0, %s35
      %s39 = sphi 0, %s38
      %s55 = sphi 0, %s39
      %s61 = sphi 0, %s63
      %s64 = sphi 0, %s61
      %s65 = sphi 0, %s64
      %s81 = sphi 0, %s65
      %s85 = sphi 0, %s85
      %s87 = sphi 0, %s85
      %s88 = sphi 0, %s87
      %s102 = sphi 0, %s88
      %s106 = sphi 0, %s106
      %s108 = sphi 0, %s106
      %s109 = sphi 0, %s108
      %s123 = sphi 0, %s109
      %s127 = sphi 0, %s127
      %s129 = sphi 0, %s127
      %s130 = sphi 0, %s129
      %s144 = sphi 0, %s130
      %s148 = sphi 0, %s148
      %s150 = sphi 0, %s148
      %s151 = sphi 0, %s150
      %s165 = sphi 0, %s151
      %s169 = sphi 0, %s169
      %s171 = sphi 0, %s169
      %s172 = sphi 0, %s171
      %s186 = sphi 0, %s172
      %s190 = sphi 0, %s190
      %s192 = sphi 0, %s190
      %s193 = sphi 0, %s192
      %s207 = sphi 0, %s193
      %s211 = sphi 0, %s211
      %s213 = sphi 0, %s211
      %s214 = sphi 0, %s213
      %s228 = sphi 0, %s214
      %s232 = sphi 0, %s232
      %s234 = sphi 0, %s232
      %s235 = sphi 0, %s234
      %s249 = sphi 0, %s235
      %s253 = sphi 0, %s253
      %s255 = sphi 0, %s253
      %s256 = sphi 0, %s255
      %s270 = sphi 0, %s256
      %s274 = sphi 0, %s274
      %s276 = sphi 0, %s274
      %s277 = sphi 0, %s276
      %s291 = sphi 0, %s277
      %s295 = sphi 0, %s295
      %s297 = sphi 0, %s295
      %s298 = sphi 0, %s297
      %s312 = sphi 0, %s298
      %s316 = sphi 0, %s316
      %s318 = sphi 0, %s316
      %s319 = sphi 0, %s318
      %s333 = sphi 0, %s319
      %s339 = sphi 0, %s341
      %s342 = sphi 0, %s339
      %s343 = sphi 0, %s342
      %s359 = sphi 0, %s343
      %s365 = sphi 0, %s367
      %s368 = sphi 0, %s365
      %s369 = sphi 0, %s368
      %s385 = sphi 0, %s369
    $region4: #{decoder_forward.1} parent=1 // loop_header_branch
      %28 = sbr.rel (%p26) target = $region8
    $region5: #{decoder_forward.1} parent=1 // loop_body
      %s30 = ssub.s32 %s25, 1
      %s31 = ssub.s32 %s25, 2
      %s32 = sadd.s32 %s25, 1
      %s33 = ssub.s32 %s25, %s32
      %p34 = scmp.eq.s32.totalorder %s33, 0
      %s36 = sadd.s32 %s35, 1
      %s37 = scalar_select %p34, %s35, %s36
      %p40 = pneg %p34
      %p41 = scmp.eq.s32.totalorder %s25, 1
      %p42 = por %p40, %p41
      %p43 = scmp.ne.s32.totalorder %s35, %s38
      %p44 = scmp.eq.s32.totalorder %s25, 0
      %p45 = por %p43, %p44
      %p46 = scmp.ne.s32.totalorder %s35, %s38
      %p47 = scmp.eq.s32.totalorder %s30, 1
      %p48 = por %p46, %p47
      %p49 = scmp.ne.s32.totalorder %s38, %s39
      %p50 = scmp.eq.s32.totalorder %s30, 0
      %p51 = por %p49, %p50
      %p52 = scmp.ne.s32.totalorder %s38, %s39
      %p53 = scmp.eq.s32.totalorder %s31, 1
      %p54 = por %p52, %p53
      %p56 = scmp.ne.s32.totalorder %s39, %s55
      %p57 = scmp.eq.s32.totalorder %s31, 0
      %p58 = por %p56, %p57
      %s59 = ssub.s32 %s25, %s32
      %p60 = scmp.eq.s32.totalorder %s59, 0
      %s62 = sadd.s32 %s61, 1
      %s63 = scalar_select %p60, %s61, %s62
      %p66 = pneg %p60
      %p67 = scmp.eq.s32.totalorder %s25, 1
      %p68 = por %p66, %p67
      %p69 = scmp.ne.s32.totalorder %s61, %s64
      %p70 = scmp.eq.s32.totalorder %s25, 0
      %p71 = por %p69, %p70
      %p72 = scmp.ne.s32.totalorder %s61, %s64
      %p73 = scmp.eq.s32.totalorder %s30, 1
      %p74 = por %p72, %p73
      %p75 = scmp.ne.s32.totalorder %s64, %s65
      %p76 = scmp.eq.s32.totalorder %s30, 0
      %p77 = por %p75, %p76
      %p78 = scmp.ne.s32.totalorder %s64, %s65
      %p79 = scmp.eq.s32.totalorder %s31, 1
      %p80 = por %p78, %p79
      %p82 = scmp.ne.s32.totalorder %s65, %s81
      %p83 = scmp.eq.s32.totalorder %s31, 0
      %p84 = por %p82, %p83
      %s86 = sadd.s32 %s85, 1
      %p89 = scmp.eq.s32.totalorder %s25, 1
      %p90 = scmp.ne.s32.totalorder %s85, %s87
      %p91 = scmp.eq.s32.totalorder %s25, 0
      %p92 = por %p90, %p91
      %p93 = scmp.ne.s32.totalorder %s85, %s87
      %p94 = scmp.eq.s32.totalorder %s30, 1
      %p95 = por %p93, %p94
      %p96 = scmp.ne.s32.totalorder %s87, %s88
      %p97 = scmp.eq.s32.totalorder %s30, 0
      %p98 = por %p96, %p97
      %p99 = scmp.ne.s32.totalorder %s87, %s88
      %p100 = scmp.eq.s32.totalorder %s31, 1
      %p101 = por %p99, %p100
      %p103 = scmp.ne.s32.totalorder %s88, %s102
      %p104 = scmp.eq.s32.totalorder %s31, 0
      %p105 = por %p103, %p104
      %s107 = sadd.s32 %s106, 1
      %p110 = scmp.eq.s32.totalorder %s25, 1
      %p111 = scmp.ne.s32.totalorder %s106, %s108
      %p112 = scmp.eq.s32.totalorder %s25, 0
      %p113 = por %p111, %p112
      %p114 = scmp.ne.s32.totalorder %s106, %s108
      %p115 = scmp.eq.s32.totalorder %s30, 1
      %p116 = por %p114, %p115
      %p117 = scmp.ne.s32.totalorder %s108, %s109
      %p118 = scmp.eq.s32.totalorder %s30, 0
      %p119 = por %p117, %p118
      %p120 = scmp.ne.s32.totalorder %s108, %s109
      %p121 = scmp.eq.s32.totalorder %s31, 1
      %p122 = por %p120, %p121
      %p124 = scmp.ne.s32.totalorder %s109, %s123
      %p125 = scmp.eq.s32.totalorder %s31, 0
      %p126 = por %p124, %p125
      %s128 = sadd.s32 %s127, 1
      %p131 = scmp.eq.s32.totalorder %s25, 1
      %p132 = scmp.ne.s32.totalorder %s127, %s129
      %p133 = scmp.eq.s32.totalorder %s25, 0
      %p134 = por %p132, %p133
      %p135 = scmp.ne.s32.totalorder %s127, %s129
      %p136 = scmp.eq.s32.totalorder %s30, 1
      %p137 = por %p135, %p136
      %p138 = scmp.ne.s32.totalorder %s129, %s130
      %p139 = scmp.eq.s32.totalorder %s30, 0
      %p140 = por %p138, %p139
      %p141 = scmp.ne.s32.totalorder %s129, %s130
      %p142 = scmp.eq.s32.totalorder %s31, 1
      %p143 = por %p141, %p142
      %p145 = scmp.ne.s32.totalorder %s130, %s144
      %p146 = scmp.eq.s32.totalorder %s31, 0
      %p147 = por %p145, %p146
      %s149 = sadd.s32 %s148, 1
      %p152 = scmp.eq.s32.totalorder %s25, 1
      %p153 = scmp.ne.s32.totalorder %s148, %s150
      %p154 = scmp.eq.s32.totalorder %s25, 0
      %p155 = por %p153, %p154
      %p156 = scmp.ne.s32.totalorder %s148, %s150
      %p157 = scmp.eq.s32.totalorder %s30, 1
      %p158 = por %p156, %p157
      %p159 = scmp.ne.s32.totalorder %s150, %s151
      %p160 = scmp.eq.s32.totalorder %s30, 0
      %p161 = por %p159, %p160
      %p162 = scmp.ne.s32.totalorder %s150, %s151
      %p163 = scmp.eq.s32.totalorder %s31, 1
      %p164 = por %p162, %p163
      %p166 = scmp.ne.s32.totalorder %s151, %s165
      %p167 = scmp.eq.s32.totalorder %s31, 0
      %p168 = por %p166, %p167
      %s170 = sadd.s32 %s169, 1
      %p173 = scmp.eq.s32.totalorder %s25, 1
      %p174 = scmp.ne.s32.totalorder %s169, %s171
      %p175 = scmp.eq.s32.totalorder %s25, 0
      %p176 = por %p174, %p175
      %p177 = scmp.ne.s32.totalorder %s169, %s171
      %p178 = scmp.eq.s32.totalorder %s30, 1
      %p179 = por %p177, %p178
      %p180 = scmp.ne.s32.totalorder %s171, %s172
      %p181 = scmp.eq.s32.totalorder %s30, 0
      %p182 = por %p180, %p181
      %p183 = scmp.ne.s32.totalorder %s171, %s172
      %p184 = scmp.eq.s32.totalorder %s31, 1
      %p185 = por %p183, %p184
      %p187 = scmp.ne.s32.totalorder %s172, %s186
      %p188 = scmp.eq.s32.totalorder %s31, 0
      %p189 = por %p187, %p188
      %s191 = sadd.s32 %s190, 1
      %p194 = scmp.eq.s32.totalorder %s25, 1
      %p195 = scmp.ne.s32.totalorder %s190, %s192
      %p196 = scmp.eq.s32.totalorder %s25, 0
      %p197 = por %p195, %p196
      %p198 = scmp.ne.s32.totalorder %s190, %s192
      %p199 = scmp.eq.s32.totalorder %s30, 1
      %p200 = por %p198, %p199
      %p201 = scmp.ne.s32.totalorder %s192, %s193
      %p202 = scmp.eq.s32.totalorder %s30, 0
      %p203 = por %p201, %p202
      %p204 = scmp.ne.s32.totalorder %s192, %s193
      %p205 = scmp.eq.s32.totalorder %s31, 1
      %p206 = por %p204, %p205
      %p208 = scmp.ne.s32.totalorder %s193, %s207
      %p209 = scmp.eq.s32.totalorder %s31, 0
      %p210 = por %p208, %p209
      %s212 = sadd.s32 %s211, 1
      %p215 = scmp.eq.s32.totalorder %s25, 1
      %p216 = scmp.ne.s32.totalorder %s211, %s213
      %p217 = scmp.eq.s32.totalorder %s25, 0
      %p218 = por %p216, %p217
      %p219 = scmp.ne.s32.totalorder %s211, %s213
      %p220 = scmp.eq.s32.totalorder %s30, 1
      %p221 = por %p219, %p220
      %p222 = scmp.ne.s32.totalorder %s213, %s214
      %p223 = scmp.eq.s32.totalorder %s30, 0
      %p224 = por %p222, %p223
      %p225 = scmp.ne.s32.totalorder %s213, %s214
      %p226 = scmp.eq.s32.totalorder %s31, 1
      %p227 = por %p225, %p226
      %p229 = scmp.ne.s32.totalorder %s214, %s228
      %p230 = scmp.eq.s32.totalorder %s31, 0
      %p231 = por %p229, %p230
      %s233 = sadd.s32 %s232, 1
      %p236 = scmp.eq.s32.totalorder %s25, 1
      %p237 = scmp.ne.s32.totalorder %s232, %s234
      %p238 = scmp.eq.s32.totalorder %s25, 0
      %p239 = por %p237, %p238
      %p240 = scmp.ne.s32.totalorder %s232, %s234
      %p241 = scmp.eq.s32.totalorder %s30, 1
      %p242 = por %p240, %p241
      %p243 = scmp.ne.s32.totalorder %s234, %s235
      %p244 = scmp.eq.s32.totalorder %s30, 0
      %p245 = por %p243, %p244
      %p246 = scmp.ne.s32.totalorder %s234, %s235
      %p247 = scmp.eq.s32.totalorder %s31, 1
      %p248 = por %p246, %p247
      %p250 = scmp.ne.s32.totalorder %s235, %s249
      %p251 = scmp.eq.s32.totalorder %s31, 0
      %p252 = por %p250, %p251
      %s254 = sadd.s32 %s253, 1
      %p257 = scmp.eq.s32.totalorder %s25, 1
      %p258 = scmp.ne.s32.totalorder %s253, %s255
      %p259 = scmp.eq.s32.totalorder %s25, 0
      %p260 = por %p258, %p259
      %p261 = scmp.ne.s32.totalorder %s253, %s255
      %p262 = scmp.eq.s32.totalorder %s30, 1
      %p263 = por %p261, %p262
      %p264 = scmp.ne.s32.totalorder %s255, %s256
      %p265 = scmp.eq.s32.totalorder %s30, 0
      %p266 = por %p264, %p265
      %p267 = scmp.ne.s32.totalorder %s255, %s256
      %p268 = scmp.eq.s32.totalorder %s31, 1
      %p269 = por %p267, %p268
      %p271 = scmp.ne.s32.totalorder %s256, %s270
      %p272 = scmp.eq.s32.totalorder %s31, 0
      %p273 = por %p271, %p272
      %s275 = sadd.s32 %s274, 1
      %p278 = scmp.eq.s32.totalorder %s25, 1
      %p279 = scmp.ne.s32.totalorder %s274, %s276
      %p280 = scmp.eq.s32.totalorder %s25, 0
      %p281 = por %p279, %p280
      %p282 = scmp.ne.s32.totalorder %s274, %s276
      %p283 = scmp.eq.s32.totalorder %s30, 1
      %p284 = por %p282, %p283
      %p285 = scmp.ne.s32.totalorder %s276, %s277
      %p286 = scmp.eq.s32.totalorder %s30, 0
      %p287 = por %p285, %p286
      %p288 = scmp.ne.s32.totalorder %s276, %s277
      %p289 = scmp.eq.s32.totalorder %s31, 1
      %p290 = por %p288, %p289
      %p292 = scmp.ne.s32.totalorder %s277, %s291
      %p293 = scmp.eq.s32.totalorder %s31, 0
      %p294 = por %p292, %p293
      %s296 = sadd.s32 %s295, 1
      %p299 = scmp.eq.s32.totalorder %s25, 1
      %p300 = scmp.ne.s32.totalorder %s295, %s297
      %p301 = scmp.eq.s32.totalorder %s25, 0
      %p302 = por %p300, %p301
      %p303 = scmp.ne.s32.totalorder %s295, %s297
      %p304 = scmp.eq.s32.totalorder %s30, 1
      %p305 = por %p303, %p304
      %p306 = scmp.ne.s32.totalorder %s297, %s298
      %p307 = scmp.eq.s32.totalorder %s30, 0
      %p308 = por %p306, %p307
      %p309 = scmp.ne.s32.totalorder %s297, %s298
      %p310 = scmp.eq.s32.totalorder %s31, 1
      %p311 = por %p309, %p310
      %p313 = scmp.ne.s32.totalorder %s298, %s312
      %p314 = scmp.eq.s32.totalorder %s31, 0
      %p315 = por %p313, %p314
      %s317 = sadd.s32 %s316, 1
      %p320 = scmp.eq.s32.totalorder %s25, 1
      %p321 = scmp.ne.s32.totalorder %s316, %s318
      %p322 = scmp.eq.s32.totalorder %s25, 0
      %p323 = por %p321, %p322
      %p324 = scmp.ne.s32.totalorder %s316, %s318
      %p325 = scmp.eq.s32.totalorder %s30, 1
      %p326 = por %p324, %p325
      %p327 = scmp.ne.s32.totalorder %s318, %s319
      %p328 = scmp.eq.s32.totalorder %s30, 0
      %p329 = por %p327, %p328
      %p330 = scmp.ne.s32.totalorder %s318, %s319
      %p331 = scmp.eq.s32.totalorder %s31, 1
      %p332 = por %p330, %p331
      %p334 = scmp.ne.s32.totalorder %s319, %s333
      %p335 = scmp.eq.s32.totalorder %s31, 0
      %p336 = por %p334, %p335
      %s337 = ssub.s32 %s25, %s32
      %p338 = scmp.eq.s32.totalorder %s337, 0
      %s340 = sadd.s32 %s339, 1
      %s341 = scalar_select %p338, %s339, %s340
      %p344 = pneg %p338
      %p345 = scmp.eq.s32.totalorder %s25, 1
      %p346 = por %p344, %p345
      %p347 = scmp.ne.s32.totalorder %s339, %s342
      %p348 = scmp.eq.s32.totalorder %s25, 0
      %p349 = por %p347, %p348
      %p350 = scmp.ne.s32.totalorder %s339, %s342
      %p351 = scmp.eq.s32.totalorder %s30, 1
      %p352 = por %p350, %p351
      %p353 = scmp.ne.s32.totalorder %s342, %s343
      %p354 = scmp.eq.s32.totalorder %s30, 0
      %p355 = por %p353, %p354
      %p356 = scmp.ne.s32.totalorder %s342, %s343
      %p357 = scmp.eq.s32.totalorder %s31, 1
      %p358 = por %p356, %p357
      %p360 = scmp.ne.s32.totalorder %s343, %s359
      %p361 = scmp.eq.s32.totalorder %s31, 0
      %p362 = por %p360, %p361
      %s363 = ssub.s32 %s25, %s32
      %p364 = scmp.eq.s32.totalorder %s363, 0
      %s366 = sadd.s32 %s365, 1
      %s367 = scalar_select %p364, %s365, %s366
      %p370 = pneg %p364
      %p371 = scmp.eq.s32.totalorder %s25, 1
      %p372 = por %p370, %p371
      %p373 = scmp.ne.s32.totalorder %s365, %s368
      %p374 = scmp.eq.s32.totalorder %s25, 0
      %p375 = por %p373, %p374
      %p376 = scmp.ne.s32.totalorder %s365, %s368
      %p377 = scmp.eq.s32.totalorder %s30, 1
      %p378 = por %p376, %p377
      %p379 = scmp.ne.s32.totalorder %s368, %s369
      %p380 = scmp.eq.s32.totalorder %s30, 0
      %p381 = por %p379, %p380
      %p382 = scmp.ne.s32.totalorder %s368, %s369
      %p383 = scmp.eq.s32.totalorder %s31, 1
      %p384 = por %p382, %p383
      %p386 = scmp.ne.s32.totalorder %s369, %s385
      %p387 = scmp.eq.s32.totalorder %s31, 0
      %p388 = por %p386, %p387
      %p389 = scmp.le.s32.totalorder 1, %s25
      %p390 = scmp.lt.s32.totalorder %s25, 3
      %p391 = pnand %p389, %p390
      %p392 = pneg %p391
      // Predicated region
      $region9: #{decoder_forward.1} parent=5 // pred_check
        _
      $region10: #{decoder_forward.1} parent=5 // pred_check_branch
        %394 = sbr.rel (%p391) target = $region12
      $region11: #{decoder_forward.1} parent=5 // pred_region
        %s395 = ssub.s32 %s25, 1
        // Predicated region
        $region13: #{decoder_forward.1} parent=11 // pred_check
          %p396 = pneg %p98
        $region14: #{decoder_forward.1} parent=11 // pred_check_branch
          %398 = sbr.rel (%p396) target = $region16
        $region15: #{decoder_forward.1} parent=11 // pred_region
          _
        $region16: #{decoder_forward.1} parent=11 // pred_fallthru
          _
        // Predicated region
        $region17: #{decoder_forward.1} parent=11 // pred_check
          %p399 = pneg %p119
        $region18: #{decoder_forward.1} parent=11 // pred_check_branch
          %401 = sbr.rel (%p399) target = $region20
        $region19: #{decoder_forward.1} parent=11 // pred_region
          _
        $region20: #{decoder_forward.1} parent=11 // pred_fallthru
          _
        // Predicated region
        $region21: #{decoder_forward.1} parent=11 // pred_check
          %p402 = pneg %p140
        $region22: #{decoder_forward.1} parent=11 // pred_check_branch
          %404 = sbr.rel (%p402) target = $region24
        $region23: #{decoder_forward.1} parent=11 // pred_region
          _
        $region24: #{decoder_forward.1} parent=11 // pred_fallthru
          _
        // Predicated region
        $region25: #{decoder_forward.1} parent=11 // pred_check
          %p405 = pneg %p161
        $region26: #{decoder_forward.1} parent=11 // pred_check_branch
          %407 = sbr.rel (%p405) target = $region28
        $region27: #{decoder_forward.1} parent=11 // pred_region
          _
        $region28: #{decoder_forward.1} parent=11 // pred_fallthru
          _
        // Predicated region
        $region29: #{decoder_forward.1} parent=11 // pred_check
          %p408 = pneg %p182
        $region30: #{decoder_forward.1} parent=11 // pred_check_branch
          %410 = sbr.rel (%p408) target = $region32
        $region31: #{decoder_forward.1} parent=11 // pred_region
          _
        $region32: #{decoder_forward.1} parent=11 // pred_fallthru
          _
        // Predicated region
        $region33: #{decoder_forward.1} parent=11 // pred_check
          %p411 = pneg %p203
        $region34: #{decoder_forward.1} parent=11 // pred_check_branch
          %413 = sbr.rel (%p411) target = $region36
        $region35: #{decoder_forward.1} parent=11 // pred_region
          _
        $region36: #{decoder_forward.1} parent=11 // pred_fallthru
          _
        // Predicated region
        $region37: #{decoder_forward.1} parent=11 // pred_check
          %p414 = pneg %p224
        $region38: #{decoder_forward.1} parent=11 // pred_check_branch
          %416 = sbr.rel (%p414) target = $region40
        $region39: #{decoder_forward.1} parent=11 // pred_region
          _
        $region40: #{decoder_forward.1} parent=11 // pred_fallthru
          _
        // Predicated region
        $region41: #{decoder_forward.1} parent=11 // pred_check
          %p417 = pneg %p245
        $region42: #{decoder_forward.1} parent=11 // pred_check_branch
          %419 = sbr.rel (%p417) target = $region44
        $region43: #{decoder_forward.1} parent=11 // pred_region
          _
        $region44: #{decoder_forward.1} parent=11 // pred_fallthru
          _
        // Predicated region
        $region45: #{decoder_forward.1} parent=11 // pred_check
          %p420 = pneg %p266
        $region46: #{decoder_forward.1} parent=11 // pred_check_branch
          %422 = sbr.rel (%p420) target = $region48
        $region47: #{decoder_forward.1} parent=11 // pred_region
          _
        $region48: #{decoder_forward.1} parent=11 // pred_fallthru
          _
        // Predicated region
        $region49: #{decoder_forward.1} parent=11 // pred_check
          %p423 = pneg %p287
        $region50: #{decoder_forward.1} parent=11 // pred_check_branch
          %425 = sbr.rel (%p423) target = $region52
        $region51: #{decoder_forward.1} parent=11 // pred_region
          _
        $region52: #{decoder_forward.1} parent=11 // pred_fallthru
          _
        // Predicated region
        $region53: #{decoder_forward.1} parent=11 // pred_check
          %p426 = pneg %p308
        $region54: #{decoder_forward.1} parent=11 // pred_check_branch
          %428 = sbr.rel (%p426) target = $region56
        $region55: #{decoder_forward.1} parent=11 // pred_region
          _
        $region56: #{decoder_forward.1} parent=11 // pred_fallthru
          _
        // Predicated region
        $region57: #{decoder_forward.1} parent=11 // pred_check
          %p429 = pneg %p329
        $region58: #{decoder_forward.1} parent=11 // pred_check_branch
          %431 = sbr.rel (%p429) target = $region60
        $region59: #{decoder_forward.1} parent=11 // pred_region
          _
        $region60: #{decoder_forward.1} parent=11 // pred_fallthru
          _
      $region12: #{decoder_forward.1} parent=5 // pred_fallthru
        _
      %p432 = scmp.lt.s32.totalorder %s25, 2
      // Predicated region
      $region61: #{decoder_forward.1} parent=5 // pred_check
        %p433 = pneg %p432
      $region62: #{decoder_forward.1} parent=5 // pred_check_branch
        %435 = sbr.rel (%p433) target = $region64
      $region63: #{decoder_forward.1} parent=5 // pred_region
        // Predicated region
        $region65: #{decoder_forward.1} parent=63 // pred_check
          %p436 = pneg %p45
        $region66: #{decoder_forward.1} parent=63 // pred_check_branch
          %438 = sbr.rel (%p436) target = $region68
        $region67: #{decoder_forward.1} parent=63 // pred_region
          %p439 = scmp.lt.s32.totalorder %s25, 1
          %s440 = scalar_select %p439, %s25, 1
          %s441 = smul.addr %s440, 32
          %s442 = smul.addr %s441, 4
          %s443 = scalar_lea.vmem %s0, %s442
        $region68: #{decoder_forward.1} parent=63 // pred_fallthru
          _
        // Predicated region
        $region69: #{decoder_forward.1} parent=63 // pred_check
          %p444 = pneg %p71
        $region70: #{decoder_forward.1} parent=63 // pred_check_branch
          %446 = sbr.rel (%p444) target = $region72
        $region71: #{decoder_forward.1} parent=63 // pred_region
          %p447 = scmp.lt.s32.totalorder %s25, 1
          %s448 = scalar_select %p447, %s25, 1
          %s449 = smul.addr %s448, 64
          %s450 = smul.addr %s449, 4
          %s451 = scalar_lea.vmem %s1, %s450
        $region72: #{decoder_forward.1} parent=63 // pred_fallthru
          _
      $region64: #{decoder_forward.1} parent=5 // pred_fallthru
        _
      %p452 = scmp.le.s32.totalorder 1, %s25
      %p453 = scmp.lt.s32.totalorder %s25, 3
      %p454 = pnand %p452, %p453
      %p455 = pneg %p454
      // Predicated region
      $region73: #{decoder_forward.1} parent=5 // pred_check
        _
      $region74: #{decoder_forward.1} parent=5 // pred_check_branch
        %457 = sbr.rel (%p454) target = $region76
      $region75: #{decoder_forward.1} parent=5 // pred_region
        %s458 = ssub.s32 %s25, 1
        %p459 = scmp.lt.s32.totalorder %s30, 1
        %s460 = scalar_select %p459, %s30, 1
        %s461 = smul.addr %s460, 32
        %s462 = smul.addr %s461, 4
        %s463 = scalar_lea.vmem %s0, %s462
        %p464 = pneg %p51
        %p465 = pneg %p48
        %p466 = scmp.lt.s32.totalorder %s30, 1
        %s467 = scalar_select %p466, %s30, 1
        %s468 = smul.addr %s467, 64
        %s469 = smul.addr %s468, 4
        %s470 = scalar_lea.vmem %s1, %s469
        %p471 = pneg %p77
        %p472 = pneg %p74
        %p473 = pneg %p98
        %p474 = pneg %p95
        %p475 = pneg %p119
        %p476 = pneg %p116
        %p477 = pneg %p140
        %p478 = pneg %p137
        %p479 = pneg %p161
        %p480 = pneg %p158
        %p481 = pneg %p182
        %p482 = pneg %p179
        %p483 = pneg %p203
        %p484 = pneg %p200
        %p485 = pneg %p224
        %p486 = pneg %p221
        %p487 = pneg %p245
        %p488 = pneg %p242
        %p489 = pneg %p266
        %p490 = pneg %p263
        %p491 = pneg %p287
        %p492 = pneg %p284
        %p493 = pneg %p308
        %p494 = pneg %p305
        %p495 = pneg %p329
        %p496 = pneg %p326
        %p497 = pneg %p355
        %p498 = pneg %p352
        %s499 = sand.u32 %s342, 1
        %s500 = scalar_lea.sflag [#allocation3], %s499
        %s501 = sand.u32 %s342, 1
        %s502 = smul.addr %s501, 512
        %s503 = scalar_lea.vmem [#allocation2], %s502
        %p504 = pneg %p381
        %p505 = pneg %p378
        %p506 = scmp.lt.s32.totalorder %s30, 1
        %s507 = scalar_select %p506, %s30, 1
        %s508 = smul.addr %s507, 32
        %s509 = smul.addr %s508, 8
        %s510 = scalar_lea.vmem %s15, %s509
        %p511 = scmp.lt.s32.totalorder %s30, 1
        %s512 = scalar_select %p511, %s30, 1
        %s513 = smul.addr %s512, 32
        %s514 = smul.addr %s513, 4
        %s515 = scalar_lea.vmem %s0, %s514
        %p516 = scmp.lt.s32.totalorder %s30, 1
        %s517 = scalar_select %p516, %s30, 1
        %s518 = smul.addr %s517, 64
        %s519 = smul.addr %s518, 4
        %s520 = scalar_lea.vmem %s1, %s519
        %p521 = scmp.lt.s32.totalorder %s30, 1
        %s522 = scalar_select %p521, %s30, 1
        %s523 = smul.addr %s522, 32
        %s524 = smul.addr %s523, 8
        %s525 = scalar_lea.vmem %s15, %s524
        %v527 = vld [vmem:[%s515] sm:$0xff]
        %v528 = vld [vmem:[%s515 + $0x8] sm:$0xff]
        %v529 = vld [vmem:[%s515 + $0x10] sm:$0xff]
        %v530 = vld [vmem:[%s515 + $0x18] sm:$0xff]
        %v531 = vld [vmem:[%s515 + $0x20] sm:$0xff]
        %v532 = vld [vmem:[%s515 + $0x28] sm:$0xff]
        %v533 = vld [vmem:[%s515 + $0x30] sm:$0xff]
        %v534 = vld [vmem:[%s515 + $0x38] sm:$0xff]
        %v535 = vld [vmem:[%s515 + $0x40] sm:$0xff]
        %v536 = vld [vmem:[%s515 + $0x48] sm:$0xff]
        %v537 = vld [vmem:[%s515 + $0x50] sm:$0xff]
        %v538 = vld [vmem:[%s515 + $0x58] sm:$0xff]
        %v539 = vld [vmem:[%s515 + $0x60] sm:$0xff]
        %v540 = vld [vmem:[%s515 + $0x68] sm:$0xff]
        %v541 = vld [vmem:[%s515 + $0x70] sm:$0xff]
        %v542 = vld [vmem:[%s515 + $0x78] sm:$0xff]
        %v543 = vld [vmem:[%s2] sm:$0xff]
        %v544 = vld [vmem:[%s2 + $0x8] sm:$0xff]
        %v545 = vld [vmem:[%s2 + $0x10] sm:$0xff]
        %v546 = vld [vmem:[%s2 + $0x18] sm:$0xff]
        %v547 = vld [vmem:[%s2 + $0x20] sm:$0xff]
        %v548 = vld [vmem:[%s2 + $0x28] sm:$0xff]
        %v549 = vld [vmem:[%s2 + $0x30] sm:$0xff]
        %v550 = vld [vmem:[%s2 + $0x38] sm:$0xff]
        %v551 = vld [vmem:[%s2 + $0x40] sm:$0xff]
        %v552 = vld [vmem:[%s2 + $0x48] sm:$0xff]
        %v553 = vld [vmem:[%s2 + $0x50] sm:$0xff]
        %v554 = vld [vmem:[%s2 + $0x58] sm:$0xff]
        %v555 = vld [vmem:[%s2 + $0x60] sm:$0xff]
        %v556 = vld [vmem:[%s2 + $0x68] sm:$0xff]
        %v557 = vld [vmem:[%s2 + $0x70] sm:$0xff]
        %v558 = vld [vmem:[%s2 + $0x78] sm:$0xff]
        %v559 = vld [vmem:[%s2 + $0x80] sm:$0xff]
        %v560 = vld [vmem:[%s2 + $0x88] sm:$0xff]
        %v561 = vld [vmem:[%s2 + $0x90] sm:$0xff]
        %v562 = vld [vmem:[%s2 + $0x98] sm:$0xff]
        %v563 = vld [vmem:[%s2 + $0xa0] sm:$0xff]
        %v564 = vld [vmem:[%s2 + $0xa8] sm:$0xff]
        %v565 = vld [vmem:[%s2 + $0xb0] sm:$0xff]
        %v566 = vld [vmem:[%s2 + $0xb8] sm:$0xff]
        %v567 = vld [vmem:[%s2 + $0xc0] sm:$0xff]
        %v568 = vld [vmem:[%s2 + $0xc8] sm:$0xff]
        %v569 = vld [vmem:[%s2 + $0xd0] sm:$0xff]
        %v570 = vld [vmem:[%s2 + $0xd8] sm:$0xff]
        %v571 = vld [vmem:[%s2 + $0xe0] sm:$0xff]
        %v572 = vld [vmem:[%s2 + $0xe8] sm:$0xff]
        %v573 = vld [vmem:[%s2 + $0xf0] sm:$0xff]
        %v574 = vld [vmem:[%s2 + $0xf8] sm:$0xff]
        %v575 = vld [vmem:[%s2 + $0x100] sm:$0xff]
        %v576 = vld [vmem:[%s2 + $0x108] sm:$0xff]
        %v577 = vld [vmem:[%s2 + $0x110] sm:$0xff]
        %v578 = vld [vmem:[%s2 + $0x118] sm:$0xff]
        %v579 = vld [vmem:[%s2 + $0x120] sm:$0xff]
        %v580 = vld [vmem:[%s2 + $0x128] sm:$0xff]
        %v581 = vld [vmem:[%s2 + $0x130] sm:$0xff]
        %v582 = vld [vmem:[%s2 + $0x138] sm:$0xff]
        %v583 = vld [vmem:[%s2 + $0x140] sm:$0xff]
        %v584 = vld [vmem:[%s2 + $0x148] sm:$0xff]
        %v585 = vld [vmem:[%s2 + $0x150] sm:$0xff]
        %v586 = vld [vmem:[%s2 + $0x158] sm:$0xff]
        %v587 = vld [vmem:[%s2 + $0x160] sm:$0xff]
        %v588 = vld [vmem:[%s2 + $0x168] sm:$0xff]
        %v589 = vld [vmem:[%s2 + $0x170] sm:$0xff]
        %v590 = vld [vmem:[%s2 + $0x178] sm:$0xff]
        %v591 = vld [vmem:[%s2 + $0x180] sm:$0xff]
        %v592 = vld [vmem:[%s2 + $0x188] sm:$0xff]
        %v593 = vld [vmem:[%s2 + $0x190] sm:$0xff]
        %v594 = vld [vmem:[%s2 + $0x198] sm:$0xff]
        %v595 = vld [vmem:[%s2 + $0x1a0] sm:$0xff]
        %v596 = vld [vmem:[%s2 + $0x1a8] sm:$0xff]
        %v597 = vld [vmem:[%s2 + $0x1b0] sm:$0xff]
        %v598 = vld [vmem:[%s2 + $0x1b8] sm:$0xff]
        %v599 = vld [vmem:[%s2 + $0x1c0] sm:$0xff]
        %v600 = vld [vmem:[%s2 + $0x1c8] sm:$0xff]
        %v601 = vld [vmem:[%s2 + $0x1d0] sm:$0xff]
        %v602 = vld [vmem:[%s2 + $0x1d8] sm:$0xff]
        %v603 = vld [vmem:[%s2 + $0x1e0] sm:$0xff]
        %v604 = vld [vmem:[%s2 + $0x1e8] sm:$0xff]
        %v605 = vld [vmem:[%s2 + $0x1f0] sm:$0xff]
        %v606 = vld [vmem:[%s2 + $0x1f8] sm:$0xff]
        %v607 = vld [vmem:[%s3] sm:$0x3]
        %v609 = vlaneseq
        %v610 = vshrl.u32 %v609, 7
        %v611 = vsub.s32 0, %v610
        %v612 = vrot.slane %v607, %v611
        %v613 = vlaneseq
        %v614 = vshrl.u32 %v613, 7
        %v615 = vsub.s32 1, %v614
        %v616 = vrot.slane %v607, %v615
        %v635 = vunpack.c.l.b16 %v527
        %v636 = vunpack.c.h.b16 %v527
        %v637 = vunpack.c.l.b16 %v528
        %v638 = vunpack.c.h.b16 %v528
        %v639 = vunpack.c.l.b16 %v529
        %v640 = vunpack.c.h.b16 %v529
        %v641 = vunpack.c.l.b16 %v530
        %v642 = vunpack.c.h.b16 %v530
        %v643 = vunpack.c.l.b16 %v531
        %v644 = vunpack.c.h.b16 %v531
        %v645 = vunpack.c.l.b16 %v532
        %v646 = vunpack.c.h.b16 %v532
        %v647 = vunpack.c.l.b16 %v533
        %v648 = vunpack.c.h.b16 %v533
        %v649 = vunpack.c.l.b16 %v534
        %v650 = vunpack.c.h.b16 %v534
        %v651 = vunpack.c.l.b16 %v535
        %v652 = vunpack.c.h.b16 %v535
        %v653 = vunpack.c.l.b16 %v536
        %v654 = vunpack.c.h.b16 %v536
        %v655 = vunpack.c.l.b16 %v537
        %v656 = vunpack.c.h.b16 %v537
        %v657 = vunpack.c.l.b16 %v538
        %v658 = vunpack.c.h.b16 %v538
        %v659 = vunpack.c.l.b16 %v539
        %v660 = vunpack.c.h.b16 %v539
        %v661 = vunpack.c.l.b16 %v540
        %v662 = vunpack.c.h.b16 %v540
        %v663 = vunpack.c.l.b16 %v541
        %v664 = vunpack.c.h.b16 %v541
        %v665 = vunpack.c.l.b16 %v542
        %v666 = vunpack.c.h.b16 %v542
        %v667 = vpack.c.b16 %v639, %v635
        %v668 = vpack.c.b16 %v640, %v636
        %v669 = vpack.c.b16 %v641, %v637
        %v670 = vpack.c.b16 %v642, %v638
        %v671 = vpack.c.b16 %v647, %v643
        %v672 = vpack.c.b16 %v648, %v644
        %v673 = vpack.c.b16 %v649, %v645
        %v674 = vpack.c.b16 %v650, %v646
        %v675 = vpack.c.b16 %v655, %v651
        %v676 = vpack.c.b16 %v656, %v652
        %v677 = vpack.c.b16 %v657, %v653
        %v678 = vpack.c.b16 %v658, %v654
        %v679 = vpack.c.b16 %v663, %v659
        %v680 = vpack.c.b16 %v664, %v660
        %v681 = vpack.c.b16 %v665, %v661
        %v682 = vpack.c.b16 %v666, %v662
        %v763 = vunpack.c.l.b16 %v543
        %v764 = vunpack.c.h.b16 %v543
        %v765 = vunpack.c.l.b16 %v544
        %v766 = vunpack.c.h.b16 %v544
        %v767 = vunpack.c.l.b16 %v545
        %v768 = vunpack.c.h.b16 %v545
        %v769 = vunpack.c.l.b16 %v546
        %v770 = vunpack.c.h.b16 %v546
        %v771 = vunpack.c.l.b16 %v547
        %v772 = vunpack.c.h.b16 %v547
        %v773 = vunpack.c.l.b16 %v548
        %v774 = vunpack.c.h.b16 %v548
        %v775 = vunpack.c.l.b16 %v549
        %v776 = vunpack.c.h.b16 %v549
        %v777 = vunpack.c.l.b16 %v550
        %v778 = vunpack.c.h.b16 %v550
        %v779 = vunpack.c.l.b16 %v551
        %v780 = vunpack.c.h.b16 %v551
        %v781 = vunpack.c.l.b16 %v552
        %v782 = vunpack.c.h.b16 %v552
        %v783 = vunpack.c.l.b16 %v553
        %v784 = vunpack.c.h.b16 %v553
        %v785 = vunpack.c.l.b16 %v554
        %v786 = vunpack.c.h.b16 %v554
        %v787 = vunpack.c.l.b16 %v555
        %v788 = vunpack.c.h.b16 %v555
        %v789 = vunpack.c.l.b16 %v556
        %v790 = vunpack.c.h.b16 %v556
        %v791 = vunpack.c.l.b16 %v557
        %v792 = vunpack.c.h.b16 %v557
        %v793 = vunpack.c.l.b16 %v558
        %v794 = vunpack.c.h.b16 %v558
        %v795 = vunpack.c.l.b16 %v559
        %v796 = vunpack.c.h.b16 %v559
        %v797 = vunpack.c.l.b16 %v560
        %v798 = vunpack.c.h.b16 %v560
        %v799 = vunpack.c.l.b16 %v561
        %v800 = vunpack.c.h.b16 %v561
        %v801 = vunpack.c.l.b16 %v562
        %v802 = vunpack.c.h.b16 %v562
        %v803 = vunpack.c.l.b16 %v563
        %v804 = vunpack.c.h.b16 %v563
        %v805 = vunpack.c.l.b16 %v564
        %v806 = vunpack.c.h.b16 %v564
        %v807 = vunpack.c.l.b16 %v565
        %v808 = vunpack.c.h.b16 %v565
        %v809 = vunpack.c.l.b16 %v566
        %v810 = vunpack.c.h.b16 %v566
        %v811 = vunpack.c.l.b16 %v567
        %v812 = vunpack.c.h.b16 %v567
        %v813 = vunpack.c.l.b16 %v568
        %v814 = vunpack.c.h.b16 %v568
        %v815 = vunpack.c.l.b16 %v569
        %v816 = vunpack.c.h.b16 %v569
        %v817 = vunpack.c.l.b16 %v570
        %v818 = vunpack.c.h.b16 %v570
        %v819 = vunpack.c.l.b16 %v571
        %v820 = vunpack.c.h.b16 %v571
        %v821 = vunpack.c.l.b16 %v572
        %v822 = vunpack.c.h.b16 %v572
        %v823 = vunpack.c.l.b16 %v573
        %v824 = vunpack.c.h.b16 %v573
        %v825 = vunpack.c.l.b16 %v574
        %v826 = vunpack.c.h.b16 %v574
        %v827 = vunpack.c.l.b16 %v575
        %v828 = vunpack.c.h.b16 %v575
        %v829 = vunpack.c.l.b16 %v576
        %v830 = vunpack.c.h.b16 %v576
        %v831 = vunpack.c.l.b16 %v577
        %v832 = vunpack.c.h.b16 %v577
        %v833 = vunpack.c.l.b16 %v578
        %v834 = vunpack.c.h.b16 %v578
        %v835 = vunpack.c.l.b16 %v579
        %v836 = vunpack.c.h.b16 %v579
        %v837 = vunpack.c.l.b16 %v580
        %v838 = vunpack.c.h.b16 %v580
        %v839 = vunpack.c.l.b16 %v581
        %v840 = vunpack.c.h.b16 %v581
        %v841 = vunpack.c.l.b16 %v582
        %v842 = vunpack.c.h.b16 %v582
        %v843 = vunpack.c.l.b16 %v583
        %v844 = vunpack.c.h.b16 %v583
        %v845 = vunpack.c.l.b16 %v584
        %v846 = vunpack.c.h.b16 %v584
        %v847 = vunpack.c.l.b16 %v585
        %v848 = vunpack.c.h.b16 %v585
        %v849 = vunpack.c.l.b16 %v586
        %v850 = vunpack.c.h.b16 %v586
        %v851 = vunpack.c.l.b16 %v587
        %v852 = vunpack.c.h.b16 %v587
        %v853 = vunpack.c.l.b16 %v588
        %v854 = vunpack.c.h.b16 %v588
        %v855 = vunpack.c.l.b16 %v589
        %v856 = vunpack.c.h.b16 %v589
        %v857 = vunpack.c.l.b16 %v590
        %v858 = vunpack.c.h.b16 %v590
        %v859 = vunpack.c.l.b16 %v591
        %v860 = vunpack.c.h.b16 %v591
        %v861 = vunpack.c.l.b16 %v592
        %v862 = vunpack.c.h.b16 %v592
        %v863 = vunpack.c.l.b16 %v593
        %v864 = vunpack.c.h.b16 %v593
        %v865 = vunpack.c.l.b16 %v594
        %v866 = vunpack.c.h.b16 %v594
        %v867 = vunpack.c.l.b16 %v595
        %v868 = vunpack.c.h.b16 %v595
        %v869 = vunpack.c.l.b16 %v596
        %v870 = vunpack.c.h.b16 %v596
        %v871 = vunpack.c.l.b16 %v597
        %v872 = vunpack.c.h.b16 %v597
        %v873 = vunpack.c.l.b16 %v598
        %v874 = vunpack.c.h.b16 %v598
        %v875 = vunpack.c.l.b16 %v599
        %v876 = vunpack.c.h.b16 %v599
        %v877 = vunpack.c.l.b16 %v600
        %v878 = vunpack.c.h.b16 %v600
        %v879 = vunpack.c.l.b16 %v601
        %v880 = vunpack.c.h.b16 %v601
        %v881 = vunpack.c.l.b16 %v602
        %v882 = vunpack.c.h.b16 %v602
        %v883 = vunpack.c.l.b16 %v603
        %v884 = vunpack.c.h.b16 %v603
        %v885 = vunpack.c.l.b16 %v604
        %v886 = vunpack.c.h.b16 %v604
        %v887 = vunpack.c.l.b16 %v605
        %v888 = vunpack.c.h.b16 %v605
        %v889 = vunpack.c.l.b16 %v606
        %v890 = vunpack.c.h.b16 %v606
        %v891 = vpack.c.b16 %v765, %v763
        %v892 = vpack.c.b16 %v766, %v764
        %v893 = vpack.c.b16 %v769, %v767
        %v894 = vpack.c.b16 %v770, %v768
        %v895 = vpack.c.b16 %v773, %v771
        %v896 = vpack.c.b16 %v774, %v772
        %v897 = vpack.c.b16 %v777, %v775
        %v898 = vpack.c.b16 %v778, %v776
        %v899 = vpack.c.b16 %v781, %v779
        %v900 = vpack.c.b16 %v782, %v780
        %v901 = vpack.c.b16 %v785, %v783
        %v902 = vpack.c.b16 %v786, %v784
        %v903 = vpack.c.b16 %v789, %v787
        %v904 = vpack.c.b16 %v790, %v788
        %v905 = vpack.c.b16 %v793, %v791
        %v906 = vpack.c.b16 %v794, %v792
        %v907 = vpack.c.b16 %v797, %v795
        %v908 = vpack.c.b16 %v798, %v796
        %v909 = vpack.c.b16 %v801, %v799
        %v910 = vpack.c.b16 %v802, %v800
        %v911 = vpack.c.b16 %v805, %v803
        %v912 = vpack.c.b16 %v806, %v804
        %v913 = vpack.c.b16 %v809, %v807
        %v914 = vpack.c.b16 %v810, %v808
        %v915 = vpack.c.b16 %v813, %v811
        %v916 = vpack.c.b16 %v814, %v812
        %v917 = vpack.c.b16 %v817, %v815
        %v918 = vpack.c.b16 %v818, %v816
        %v919 = vpack.c.b16 %v821, %v819
        %v920 = vpack.c.b16 %v822, %v820
        %v921 = vpack.c.b16 %v825, %v823
        %v922 = vpack.c.b16 %v826, %v824
        %v923 = vpack.c.b16 %v829, %v827
        %v924 = vpack.c.b16 %v830, %v828
        %v925 = vpack.c.b16 %v833, %v831
        %v926 = vpack.c.b16 %v834, %v832
        %v927 = vpack.c.b16 %v837, %v835
        %v928 = vpack.c.b16 %v838, %v836
        %v929 = vpack.c.b16 %v841, %v839
        %v930 = vpack.c.b16 %v842, %v840
        %v931 = vpack.c.b16 %v845, %v843
        %v932 = vpack.c.b16 %v846, %v844
        %v933 = vpack.c.b16 %v849, %v847
        %v934 = vpack.c.b16 %v850, %v848
        %v935 = vpack.c.b16 %v853, %v851
        %v936 = vpack.c.b16 %v854, %v852
        %v937 = vpack.c.b16 %v857, %v855
        %v938 = vpack.c.b16 %v858, %v856
        %v939 = vpack.c.b16 %v861, %v859
        %v940 = vpack.c.b16 %v862, %v860
        %v941 = vpack.c.b16 %v865, %v863
        %v942 = vpack.c.b16 %v866, %v864
        %v943 = vpack.c.b16 %v869, %v867
        %v944 = vpack.c.b16 %v870, %v868
        %v945 = vpack.c.b16 %v873, %v871
        %v946 = vpack.c.b16 %v874, %v872
        %v947 = vpack.c.b16 %v877, %v875
        %v948 = vpack.c.b16 %v878, %v876
        %v949 = vpack.c.b16 %v881, %v879
        %v950 = vpack.c.b16 %v882, %v880
        %v951 = vpack.c.b16 %v885, %v883
        %v952 = vpack.c.b16 %v886, %v884
        %v953 = vpack.c.b16 %v889, %v887
        %v954 = vpack.c.b16 %v890, %v888
        %1019 = vmatprep.subr.bf16.mxu0 %v892
        %1020 = vmatpush1.bf16.msra.mxu0 %v891
        %1021 = vmatprep.subr.bf16.mxu0 %v894
        %1022 = vmatpush1.bf16.msra.mxu0 %v893
        %1023 = vmatprep.subr.bf16.mxu0 %v896
        %1024 = vmatpush1.bf16.msra.mxu0 %v895
        %1025 = vmatprep.subr.bf16.mxu0 %v898
        %1026 = vmatpush1.bf16.msra.mxu0 %v897
        %1027 = vmatprep.subr.bf16.mxu0 %v900
        %1028 = vmatpush1.bf16.msra.mxu0 %v899
        %1029 = vmatprep.subr.bf16.mxu0 %v902
        %1030 = vmatpush1.bf16.msra.mxu0 %v901
        %1031 = vmatprep.subr.bf16.mxu0 %v904
        %1032 = vmatpush1.bf16.msra.mxu0 %v903
        %1033 = vmatprep.subr.bf16.mxu0 %v906
        %1034 = vmatpush1.bf16.msra.mxu0 %v905
        %1035 = vmatprep.subr.bf16.mxu0 %v908
        %1036 = vmatpush1.bf16.msra.mxu0 %v907
        %1037 = vmatprep.subr.bf16.mxu0 %v910
        %1038 = vmatpush1.bf16.msra.mxu0 %v909
        %1039 = vmatprep.subr.bf16.mxu0 %v912
        %1040 = vmatpush1.bf16.msra.mxu0 %v911
        %1041 = vmatprep.subr.bf16.mxu0 %v914
        %1042 = vmatpush1.bf16.msra.mxu0 %v913
        %1043 = vmatprep.subr.bf16.mxu0 %v916
        %1044 = vmatpush1.bf16.msra.mxu0 %v915
        %1045 = vmatprep.subr.bf16.mxu0 %v918
        %1046 = vmatpush1.bf16.msra.mxu0 %v917
        %1047 = vmatprep.subr.bf16.mxu0 %v920
        %1048 = vmatpush1.bf16.msra.mxu0 %v919
        %1049 = vmatprep.subr.bf16.mxu0 %v922
        %1050 = vmatpush1.bf16.msra.mxu0 %v921
        %1051 = vmatprep.mubr.bf16.mxu0 %v668
        %1052 = vmatmul.mubr.bf16.gmra.mrb[0].mxu0 %v667
        %v1053 = vpop.f32.mrb[0].mxu0
        %v1054 = vadd.f32 %v612, %v1053
        %v1055 = vpop.f32.mrb[0].mxu0
        %v1056 = vadd.f32 %v616, %v1055
        %v1057 = vpop.f32.mrb[0].mxu0
        %v1058 = vadd.f32 %v612, %v1057
        %v1059 = vpop.f32.mrb[0].mxu0
        %v1060 = vadd.f32 %v616, %v1059
        %1061 = vmatprep.mubr.bf16.mxu0 %v672
        %1062 = vmatmul.mubr.bf16.gmra.mrb[0].mxu0 %v671
        %v1063 = vpop.f32.mrb[0].mxu0
        %v1064 = vadd.f32 %v612, %v1063
        %v1065 = vpop.f32.mrb[0].mxu0
        %v1066 = vadd.f32 %v616, %v1065
        %v1067 = vpop.f32.mrb[0].mxu0
        %v1068 = vadd.f32 %v612, %v1067
        %v1069 = vpop.f32.mrb[0].mxu0
        %v1070 = vadd.f32 %v616, %v1069
        %1071 = vmatprep.mubr.bf16.mxu0 %v676
        %1072 = vmatmul.mubr.bf16.gmra.mrb[0].mxu0 %v675
        %v1073 = vpop.f32.mrb[0].mxu0
        %v1074 = vadd.f32 %v612, %v1073
        %v1075 = vpop.f32.mrb[0].mxu0
        %v1076 = vadd.f32 %v616, %v1075
        %v1077 = vpop.f32.mrb[0].mxu0
        %v1078 = vadd.f32 %v612, %v1077
        %v1079 = vpop.f32.mrb[0].mxu0
        %v1080 = vadd.f32 %v616, %v1079
        %1081 = vmatprep.mubr.bf16.mxu0 %v680
        %1082 = vmatmul.mubr.bf16.gmra.mrb[0].mxu0 %v679
        %v1083 = vpop.f32.mrb[0].mxu0
        %v1084 = vadd.f32 %v612, %v1083
        %v1085 = vpop.f32.mrb[0].mxu0
        %v1086 = vadd.f32 %v616, %v1085
        %v1087 = vpop.f32.mrb[0].mxu0
        %v1088 = vadd.f32 %v612, %v1087
        %v1089 = vpop.f32.mrb[0].mxu0
        %v1090 = vadd.f32 %v616, %v1089
        %1091 = vdwg.mxu0
        %1092 = vmatprep.subr.bf16.mxu0 %v924
        %1093 = vmatpush1.bf16.msra.mxu0 %v923
        %1094 = vmatprep.subr.bf16.mxu0 %v926
        %1095 = vmatpush1.bf16.msra.mxu0 %v925
        %1096 = vmatprep.subr.bf16.mxu0 %v928
        %1097 = vmatpush1.bf16.msra.mxu0 %v927
        %1098 = vmatprep.subr.bf16.mxu0 %v930
        %1099 = vmatpush1.bf16.msra.mxu0 %v929
        %1100 = vmatprep.subr.bf16.mxu0 %v932
        %1101 = vmatpush1.bf16.msra.mxu0 %v931
        %1102 = vmatprep.subr.bf16.mxu0 %v934
        %1103 = vmatpush1.bf16.msra.mxu0 %v933
        %1104 = vmatprep.subr.bf16.mxu0 %v936
        %1105 = vmatpush1.bf16.msra.mxu0 %v935
        %1106 = vmatprep.subr.bf16.mxu0 %v938
        %1107 = vmatpush1.bf16.msra.mxu0 %v937
        %1108 = vmatprep.subr.bf16.mxu0 %v940
        %1109 = vmatpush1.bf16.msra.mxu0 %v939
        %1110 = vmatprep.subr.bf16.mxu0 %v942
        %1111 = vmatpush1.bf16.msra.mxu0 %v941
        %1112 = vmatprep.subr.bf16.mxu0 %v944
        %1113 = vmatpush1.bf16.msra.mxu0 %v943
        %1114 = vmatprep.subr.bf16.mxu0 %v946
        %1115 = vmatpush1.bf16.msra.mxu0 %v945
        %1116 = vmatprep.subr.bf16.mxu0 %v948
        %1117 = vmatpush1.bf16.msra.mxu0 %v947
        %1118 = vmatprep.subr.bf16.mxu0 %v950
        %1119 = vmatpush1.bf16.msra.mxu0 %v949
        %1120 = vmatprep.subr.bf16.mxu0 %v952
        %1121 = vmatpush1.bf16.msra.mxu0 %v951
        %1122 = vmatprep.subr.bf16.mxu0 %v954
        %1123 = vmatpush1.bf16.msra.mxu0 %v953
        %1124 = vmatprep.mubr.bf16.mxu0 %v670
        %1125 = vmatmul.mubr.bf16.gmra.mrb[0].mxu0 %v669
        %v1126 = vpop.f32.mrb[0].mxu0
        %v1127 = vadd.f32 %v1054, %v1126
        %v1128 = vpop.f32.mrb[0].mxu0
        %v1129 = vadd.f32 %v1056, %v1128
        %v1130 = vpop.f32.mrb[0].mxu0
        %v1131 = vadd.f32 %v1058, %v1130
        %v1132 = vpop.f32.mrb[0].mxu0
        %v1133 = vadd.f32 %v1060, %v1132
        %1134 = vmatprep.mubr.bf16.mxu0 %v674
        %1135 = vmatmul.mubr.bf16.gmra.mrb[0].mxu0 %v673
        %v1136 = vpop.f32.mrb[0].mxu0
        %v1137 = vadd.f32 %v1064, %v1136
        %v1138 = vpop.f32.mrb[0].mxu0
        %v1139 = vadd.f32 %v1066, %v1138
        %v1140 = vpop.f32.mrb[0].mxu0
        %v1141 = vadd.f32 %v1068, %v1140
        %v1142 = vpop.f32.mrb[0].mxu0
        %v1143 = vadd.f32 %v1070, %v1142
        %1144 = vmatprep.mubr.bf16.mxu0 %v678
        %1145 = vmatmul.mubr.bf16.gmra.mrb[0].mxu0 %v677
        %v1146 = vpop.f32.mrb[0].mxu0
        %v1147 = vadd.f32 %v1074, %v1146
        %v1148 = vpop.f32.mrb[0].mxu0
        %v1149 = vadd.f32 %v1076, %v1148
        %v1150 = vpop.f32.mrb[0].mxu0
        %v1151 = vadd.f32 %v1078, %v1150
        %v1152 = vpop.f32.mrb[0].mxu0
        %v1153 = vadd.f32 %v1080, %v1152
        %1154 = vmatprep.mubr.bf16.mxu0 %v682
        %1155 = vmatmul.mubr.bf16.gmra.mrb[0].mxu0 %v681
        %v1156 = vpop.f32.mrb[0].mxu0
        %v1157 = vadd.f32 %v1084, %v1156
        %v1158 = vpop.f32.mrb[0].mxu0
        %v1159 = vadd.f32 %v1086, %v1158
        %v1160 = vpop.f32.mrb[0].mxu0
        %v1161 = vadd.f32 %v1088, %v1160
        %v1162 = vpop.f32.mrb[0].mxu0
        %v1163 = vadd.f32 %v1090, %v1162
        %1164 = vdwg.mxu0
        %vm1165 = vcmp.ge.f32.partialorder %v1127, 0.0
        %vm1166 = vcmp.ge.f32.partialorder %v1129, 0.0
        %vm1167 = vcmp.ge.f32.partialorder %v1131, 0.0
        %vm1168 = vcmp.ge.f32.partialorder %v1133, 0.0
        %vm1169 = vcmp.ge.f32.partialorder %v1137, 0.0
        %vm1170 = vcmp.ge.f32.partialorder %v1139, 0.0
        %vm1171 = vcmp.ge.f32.partialorder %v1141, 0.0
        %vm1172 = vcmp.ge.f32.partialorder %v1143, 0.0
        %vm1173 = vcmp.ge.f32.partialorder %v1147, 0.0
        %vm1174 = vcmp.ge.f32.partialorder %v1149, 0.0
        %vm1175 = vcmp.ge.f32.partialorder %v1151, 0.0
        %vm1176 = vcmp.ge.f32.partialorder %v1153, 0.0
        %vm1177 = vcmp.ge.f32.partialorder %v1157, 0.0
        %vm1178 = vcmp.ge.f32.partialorder %v1159, 0.0
        %vm1179 = vcmp.ge.f32.partialorder %v1161, 0.0
        %vm1180 = vcmp.ge.f32.partialorder %v1163, 0.0
        %v1181 = vmul.f32 %v1127, 0.01
        %v1182 = vmul.f32 %v1129, 0.01
        %v1183 = vmul.f32 %v1131, 0.01
        %v1184 = vmul.f32 %v1133, 0.01
        %v1185 = vmul.f32 %v1137, 0.01
        %v1186 = vmul.f32 %v1139, 0.01
        %v1187 = vmul.f32 %v1141, 0.01
        %v1188 = vmul.f32 %v1143, 0.01
        %v1189 = vmul.f32 %v1147, 0.01
        %v1190 = vmul.f32 %v1149, 0.01
        %v1191 = vmul.f32 %v1151, 0.01
        %v1192 = vmul.f32 %v1153, 0.01
        %v1193 = vmul.f32 %v1157, 0.01
        %v1194 = vmul.f32 %v1159, 0.01
        %v1195 = vmul.f32 %v1161, 0.01
        %v1196 = vmul.f32 %v1163, 0.01
        %v1197 = vsel %vm1165, %v1127, %v1181
        %v1198 = vsel %vm1166, %v1129, %v1182
        %v1199 = vsel %vm1167, %v1131, %v1183
        %v1200 = vsel %vm1168, %v1133, %v1184
        %v1201 = vsel %vm1169, %v1137, %v1185
        %v1202 = vsel %vm1170, %v1139, %v1186
        %v1203 = vsel %vm1171, %v1141, %v1187
        %v1204 = vsel %vm1172, %v1143, %v1188
        %v1205 = vsel %vm1173, %v1147, %v1189
        %v1206 = vsel %vm1174, %v1149, %v1190
        %v1207 = vsel %vm1175, %v1151, %v1191
        %v1208 = vsel %vm1176, %v1153, %v1192
        %v1209 = vsel %vm1177, %v1157, %v1193
        %v1210 = vsel %vm1178, %v1159, %v1194
        %v1211 = vsel %vm1179, %v1161, %v1195
        %v1212 = vsel %vm1180, %v1163, %v1196
        %v1213 = vpack.c.bf16 %v1199, %v1197
        %v1214 = vpack.c.bf16 %v1200, %v1198
        %v1215 = vpack.c.bf16 %v1203, %v1201
        %v1216 = vpack.c.bf16 %v1204, %v1202
        %v1217 = vpack.c.bf16 %v1207, %v1205
        %v1218 = vpack.c.bf16 %v1208, %v1206
        %v1219 = vpack.c.bf16 %v1211, %v1209
        %v1220 = vpack.c.bf16 %v1212, %v1210
        %v1221 = vld [vmem:[%s7] sm:$0xff]
        %v1222 = vld [vmem:[%s7 + $0x8] sm:$0xff]
        %v1223 = vld [vmem:[%s7 + $0x10] sm:$0xff]
        %v1224 = vld [vmem:[%s7 + $0x18] sm:$0xff]
        %v1225 = vld [vmem:[%s7 + $0x20] sm:$0xff]
        %v1226 = vld [vmem:[%s7 + $0x28] sm:$0xff]
        %v1227 = vld [vmem:[%s7 + $0x30] sm:$0xff]
        %v1228 = vld [vmem:[%s7 + $0x38] sm:$0xff]
        %v1229 = vld [vmem:[%s7 + $0x40] sm:$0xff]
        %v1230 = vld [vmem:[%s7 + $0x48] sm:$0xff]
        %v1231 = vld [vmem:[%s7 + $0x50] sm:$0xff]
        %v1232 = vld [vmem:[%s7 + $0x58] sm:$0xff]
        %v1233 = vld [vmem:[%s7 + $0x60] sm:$0xff]
        %v1234 = vld [vmem:[%s7 + $0x68] sm:$0xff]
        %v1235 = vld [vmem:[%s7 + $0x70] sm:$0xff]
        %v1236 = vld [vmem:[%s7 + $0x78] sm:$0xff]
        %v1237 = vld [vmem:[%s7 + $0x80] sm:$0xff]
        %v1238 = vld [vmem:[%s7 + $0x88] sm:$0xff]
        %v1239 = vld [vmem:[%s7 + $0x90] sm:$0xff]
        %v1240 = vld [vmem:[%s7 + $0x98] sm:$0xff]
        %v1241 = vld [vmem:[%s7 + $0xa0] sm:$0xff]
        %v1242 = vld [vmem:[%s7 + $0xa8] sm:$0xff]
        %v1243 = vld [vmem:[%s7 + $0xb0] sm:$0xff]
        %v1244 = vld [vmem:[%s7 + $0xb8] sm:$0xff]
        %v1245 = vld [vmem:[%s7 + $0xc0] sm:$0xff]
        %v1246 = vld [vmem:[%s7 + $0xc8] sm:$0xff]
        %v1247 = vld [vmem:[%s7 + $0xd0] sm:$0xff]
        %v1248 = vld [vmem:[%s7 + $0xd8] sm:$0xff]
        %v1249 = vld [vmem:[%s7 + $0xe0] sm:$0xff]
        %v1250 = vld [vmem:[%s7 + $0xe8] sm:$0xff]
        %v1251 = vld [vmem:[%s7 + $0xf0] sm:$0xff]
        %v1252 = vld [vmem:[%s7 + $0xf8] sm:$0xff]
        %v1285 = vunpack.c.l.b16 %v1221
        %v1286 = vunpack.c.h.b16 %v1221
        %v1287 = vunpack.c.l.b16 %v1222
        %v1288 = vunpack.c.h.b16 %v1222
        %v1289 = vunpack.c.l.b16 %v1223
        %v1290 = vunpack.c.h.b16 %v1223
        %v1291 = vunpack.c.l.b16 %v1224
        %v1292 = vunpack.c.h.b16 %v1224
        %v1293 = vunpack.c.l.b16 %v1225
        %v1294 = vunpack.c.h.b16 %v1225
        %v1295 = vunpack.c.l.b16 %v1226
        %v1296 = vunpack.c.h.b16 %v1226
        %v1297 = vunpack.c.l.b16 %v1227
        %v1298 = vunpack.c.h.b16 %v1227
        %v1299 = vunpack.c.l.b16 %v1228
        %v1300 = vunpack.c.h.b16 %v1228
        %v1301 = vunpack.c.l.b16 %v1229
        %v1302 = vunpack.c.h.b16 %v1229
        %v1303 = vunpack.c.l.b16 %v1230
        %v1304 = vunpack.c.h.b16 %v1230
        %v1305 = vunpack.c.l.b16 %v1231
        %v1306 = vunpack.c.h.b16 %v1231
        %v1307 = vunpack.c.l.b16 %v1232
        %v1308 = vunpack.c.h.b16 %v1232
        %v1309 = vunpack.c.l.b16 %v1233
        %v1310 = vunpack.c.h.b16 %v1233
        %v1311 = vunpack.c.l.b16 %v1234
        %v1312 = vunpack.c.h.b16 %v1234
        %v1313 = vunpack.c.l.b16 %v1235
        %v1314 = vunpack.c.h.b16 %v1235
        %v1315 = vunpack.c.l.b16 %v1236
        %v1316 = vunpack.c.h.b16 %v1236
        %v1317 = vunpack.c.l.b16 %v1237
        %v1318 = vunpack.c.h.b16 %v1237
        %v1319 = vunpack.c.l.b16 %v1238
        %v1320 = vunpack.c.h.b16 %v1238
        %v1321 = vunpack.c.l.b16 %v1239
        %v1322 = vunpack.c.h.b16 %v1239
        %v1323 = vunpack.c.l.b16 %v1240
        %v1324 = vunpack.c.h.b16 %v1240
        %v1325 = vunpack.c.l.b16 %v1241
        %v1326 = vunpack.c.h.b16 %v1241
        %v1327 = vunpack.c.l.b16 %v1242
        %v1328 = vunpack.c.h.b16 %v1242
        %v1329 = vunpack.c.l.b16 %v1243
        %v1330 = vunpack.c.h.b16 %v1243
        %v1331 = vunpack.c.l.b16 %v1244
        %v1332 = vunpack.c.h.b16 %v1244
        %v1333 = vunpack.c.l.b16 %v1245
        %v1334 = vunpack.c.h.b16 %v1245
        %v1335 = vunpack.c.l.b16 %v1246
        %v1336 = vunpack.c.h.b16 %v1246
        %v1337 = vunpack.c.l.b16 %v1247
        %v1338 = vunpack.c.h.b16 %v1247
        %v1339 = vunpack.c.l.b16 %v1248
        %v1340 = vunpack.c.h.b16 %v1248
        %v1341 = vunpack.c.l.b16 %v1249
        %v1342 = vunpack.c.h.b16 %v1249
        %v1343 = vunpack.c.l.b16 %v1250
        %v1344 = vunpack.c.h.b16 %v1250
        %v1345 = vunpack.c.l.b16 %v1251
        %v1346 = vunpack.c.h.b16 %v1251
        %v1347 = vunpack.c.l.b16 %v1252
        %v1348 = vunpack.c.h.b16 %v1252
        %v1349 = vpack.c.b16 %v1287, %v1285
        %v1350 = vpack.c.b16 %v1288, %v1286
        %v1351 = vpack.c.b16 %v1291, %v1289
        %v1352 = vpack.c.b16 %v1292, %v1290
        %v1353 = vpack.c.b16 %v1295, %v1293
        %v1354 = vpack.c.b16 %v1296, %v1294
        %v1355 = vpack.c.b16 %v1299, %v1297
        %v1356 = vpack.c.b16 %v1300, %v1298
        %v1357 = vpack.c.b16 %v1303, %v1301
        %v1358 = vpack.c.b16 %v1304, %v1302
        %v1359 = vpack.c.b16 %v1307, %v1305
        %v1360 = vpack.c.b16 %v1308, %v1306
        %v1361 = vpack.c.b16 %v1311, %v1309
        %v1362 = vpack.c.b16 %v1312, %v1310
        %v1363 = vpack.c.b16 %v1315, %v1313
        %v1364 = vpack.c.b16 %v1316, %v1314
        %v1365 = vpack.c.b16 %v1319, %v1317
        %v1366 = vpack.c.b16 %v1320, %v1318
        %v1367 = vpack.c.b16 %v1323, %v1321
        %v1368 = vpack.c.b16 %v1324, %v1322
        %v1369 = vpack.c.b16 %v1327, %v1325
        %v1370 = vpack.c.b16 %v1328, %v1326
        %v1371 = vpack.c.b16 %v1331, %v1329
        %v1372 = vpack.c.b16 %v1332, %v1330
        %v1373 = vpack.c.b16 %v1335, %v1333
        %v1374 = vpack.c.b16 %v1336, %v1334
        %v1375 = vpack.c.b16 %v1339, %v1337
        %v1376 = vpack.c.b16 %v1340, %v1338
        %v1377 = vpack.c.b16 %v1343, %v1341
        %v1378 = vpack.c.b16 %v1344, %v1342
        %v1379 = vpack.c.b16 %v1347, %v1345
        %v1380 = vpack.c.b16 %v1348, %v1346
        %1413 = vmatprep.subr.bf16.mxu0 %v1350
        %1414 = vmatpush1.bf16.msra.mxu0 %v1349
        %1415 = vmatprep.subr.bf16.mxu0 %v1352
        %1416 = vmatpush1.bf16.msra.mxu0 %v1351
        %1417 = vmatprep.subr.bf16.mxu0 %v1354
        %1418 = vmatpush1.bf16.msra.mxu0 %v1353
        %1419 = vmatprep.subr.bf16.mxu0 %v1356
        %1420 = vmatpush1.bf16.msra.mxu0 %v1355
        %1421 = vmatprep.subr.bf16.mxu0 %v1358
        %1422 = vmatpush1.bf16.msra.mxu0 %v1357
        %1423 = vmatprep.subr.bf16.mxu0 %v1360
        %1424 = vmatpush1.bf16.msra.mxu0 %v1359
        %1425 = vmatprep.subr.bf16.mxu0 %v1362
        %1426 = vmatpush1.bf16.msra.mxu0 %v1361
        %1427 = vmatprep.subr.bf16.mxu0 %v1364
        %1428 = vmatpush1.bf16.msra.mxu0 %v1363
        %1429 = vmatprep.subr.bf16.mxu0 %v1366
        %1430 = vmatpush1.bf16.msra.mxu0 %v1365
        %1431 = vmatprep.subr.bf16.mxu0 %v1368
        %1432 = vmatpush1.bf16.msra.mxu0 %v1367
        %1433 = vmatprep.subr.bf16.mxu0 %v1370
        %1434 = vmatpush1.bf16.msra.mxu0 %v1369
        %1435 = vmatprep.subr.bf16.mxu0 %v1372
        %1436 = vmatpush1.bf16.msra.mxu0 %v1371
        %1437 = vmatprep.subr.bf16.mxu0 %v1374
        %1438 = vmatpush1.bf16.msra.mxu0 %v1373
        %1439 = vmatprep.subr.bf16.mxu0 %v1376
        %1440 = vmatpush1.bf16.msra.mxu0 %v1375
        %1441 = vmatprep.subr.bf16.mxu0 %v1378
        %1442 = vmatpush1.bf16.msra.mxu0 %v1377
        %1443 = vmatprep.subr.bf16.mxu0 %v1380
        %1444 = vmatpush1.bf16.msra.mxu0 %v1379
        %1445 = vmatprep.mubr.bf16.mxu0 %v1214
        %1446 = vmatmul.mubr.bf16.gmra.mrb[0].mxu0 %v1213
        %v1447 = vpop.f32.mrb[0].mxu0
        %v1448 = vadd.f32 0.0, %v1447
        %v1449 = vpop.f32.mrb[0].mxu0
        %v1450 = vadd.f32 0.0, %v1449
        %v1451 = vpop.f32.mrb[0].mxu0
        %v1452 = vadd.f32 0.0, %v1451
        %v1453 = vpop.f32.mrb[0].mxu0
        %v1454 = vadd.f32 0.0, %v1453
        %1455 = vmatprep.mubr.bf16.mxu0 %v1216
        %1456 = vmatmul.mubr.bf16.gmra.mrb[0].mxu0 %v1215
        %v1457 = vpop.f32.mrb[0].mxu0
        %v1458 = vadd.f32 0.0, %v1457
        %v1459 = vpop.f32.mrb[0].mxu0
        %v1460 = vadd.f32 0.0, %v1459
        %v1461 = vpop.f32.mrb[0].mxu0
        %v1462 = vadd.f32 0.0, %v1461
        %v1463 = vpop.f32.mrb[0].mxu0
        %v1464 = vadd.f32 0.0, %v1463
        %1465 = vmatprep.mubr.bf16.mxu0 %v1218
        %1466 = vmatmul.mubr.bf16.gmra.mrb[0].mxu0 %v1217
        %v1467 = vpop.f32.mrb[0].mxu0
        %v1468 = vadd.f32 0.0, %v1467
        %v1469 = vpop.f32.mrb[0].mxu0
        %v1470 = vadd.f32 0.0, %v1469
        %v1471 = vpop.f32.mrb[0].mxu0
        %v1472 = vadd.f32 0.0, %v1471
        %v1473 = vpop.f32.mrb[0].mxu0
        %v1474 = vadd.f32 0.0, %v1473
        %1475 = vmatprep.mubr.bf16.mxu0 %v1220
        %1476 = vmatmul.mubr.bf16.gmra.mrb[0].mxu0 %v1219
        %v1477 = vpop.f32.mrb[0].mxu0
        %v1478 = vadd.f32 0.0, %v1477
        %v1479 = vpop.f32.mrb[0].mxu0
        %v1480 = vadd.f32 0.0, %v1479
        %v1481 = vpop.f32.mrb[0].mxu0
        %v1482 = vadd.f32 0.0, %v1481
        %v1483 = vpop.f32.mrb[0].mxu0
        %v1484 = vadd.f32 0.0, %v1483
        %1485 = vdwg.mxu0
        %v1486 = vld [vmem:[%s4] sm:$0xf]
        %v1487 = vld [vmem:[%s4 + $0x4] sm:$0xf]
        %v1488 = vld [vmem:[%s4 + $0x8] sm:$0xf]
        %v1489 = vld [vmem:[%s4 + $0xc] sm:$0xf]
        %v1490 = vld [vmem:[%s4 + $0x10] sm:$0xf]
        %v1491 = vld [vmem:[%s4 + $0x14] sm:$0xf]
        %v1492 = vld [vmem:[%s4 + $0x18] sm:$0xf]
        %v1493 = vld [vmem:[%s4 + $0x1c] sm:$0xf]
        %v1494 = vld [vmem:[%s4 + $0x20] sm:$0xf]
        %v1495 = vld [vmem:[%s4 + $0x24] sm:$0xf]
        %v1496 = vld [vmem:[%s4 + $0x28] sm:$0xf]
        %v1497 = vld [vmem:[%s4 + $0x2c] sm:$0xf]
        %v1498 = vld [vmem:[%s4 + $0x30] sm:$0xf]
        %v1499 = vld [vmem:[%s4 + $0x34] sm:$0xf]
        %v1500 = vld [vmem:[%s4 + $0x38] sm:$0xf]
        %v1501 = vld [vmem:[%s4 + $0x3c] sm:$0xf]
        %v1502 = vld [vmem:[%s4 + $0x40] sm:$0xf]
        %v1503 = vld [vmem:[%s4 + $0x44] sm:$0xf]
        %v1504 = vld [vmem:[%s4 + $0x48] sm:$0xf]
        %v1505 = vld [vmem:[%s4 + $0x4c] sm:$0xf]
        %v1506 = vld [vmem:[%s4 + $0x50] sm:$0xf]
        %v1507 = vld [vmem:[%s4 + $0x54] sm:$0xf]
        %v1508 = vld [vmem:[%s4 + $0x58] sm:$0xf]
        %v1509 = vld [vmem:[%s4 + $0x5c] sm:$0xf]
        %v1510 = vld [vmem:[%s4 + $0x60] sm:$0xf]
        %v1511 = vld [vmem:[%s4 + $0x64] sm:$0xf]
        %v1512 = vld [vmem:[%s4 + $0x68] sm:$0xf]
        %v1513 = vld [vmem:[%s4 + $0x6c] sm:$0xf]
        %v1514 = vld [vmem:[%s4 + $0x70] sm:$0xf]
        %v1515 = vld [vmem:[%s4 + $0x74] sm:$0xf]
        %v1516 = vld [vmem:[%s4 + $0x78] sm:$0xf]
        %v1517 = vld [vmem:[%s4 + $0x7c] sm:$0xf]
        %v1518 = vpack.c.bf16 %v1452, %v1448
        %v1519 = vpack.c.bf16 %v1454, %v1450
        %v1520 = vpack.c.bf16 %v1462, %v1458
        %v1521 = vpack.c.bf16 %v1464, %v1460
        %v1522 = vpack.c.bf16 %v1472, %v1468
        %v1523 = vpack.c.bf16 %v1474, %v1470
        %v1524 = vpack.c.bf16 %v1482, %v1478
        %v1525 = vpack.c.bf16 %v1484, %v1480
        %v1526 = vld [vmem:[%s520] sm:$0xff]
        %v1527 = vld [vmem:[%s520 + $0x8] sm:$0xff]
        %v1528 = vld [vmem:[%s520 + $0x10] sm:$0xff]
        %v1529 = vld [vmem:[%s520 + $0x18] sm:$0xff]
        %v1530 = vld [vmem:[%s520 + $0x20] sm:$0xff]
        %v1531 = vld [vmem:[%s520 + $0x28] sm:$0xff]
        %v1532 = vld [vmem:[%s520 + $0x30] sm:$0xff]
        %v1533 = vld [vmem:[%s520 + $0x38] sm:$0xff]
        %v1534 = vld [vmem:[%s520 + $0x40] sm:$0xff]
        %v1535 = vld [vmem:[%s520 + $0x48] sm:$0xff]
        %v1536 = vld [vmem:[%s520 + $0x50] sm:$0xff]
        %v1537 = vld [vmem:[%s520 + $0x58] sm:$0xff]
        %v1538 = vld [vmem:[%s520 + $0x60] sm:$0xff]
        %v1539 = vld [vmem:[%s520 + $0x68] sm:$0xff]
        %v1540 = vld [vmem:[%s520 + $0x70] sm:$0xff]
        %v1541 = vld [vmem:[%s520 + $0x78] sm:$0xff]
        %v1542 = vld [vmem:[%s520 + $0x80] sm:$0xff]
        %v1543 = vld [vmem:[%s520 + $0x88] sm:$0xff]
        %v1544 = vld [vmem:[%s520 + $0x90] sm:$0xff]
        %v1545 = vld [vmem:[%s520 + $0x98] sm:$0xff]
        %v1546 = vld [vmem:[%s520 + $0xa0] sm:$0xff]
        %v1547 = vld [vmem:[%s520 + $0xa8] sm:$0xff]
        %v1548 = vld [vmem:[%s520 + $0xb0] sm:$0xff]
        %v1549 = vld [vmem:[%s520 + $0xb8] sm:$0xff]
        %v1550 = vld [vmem:[%s520 + $0xc0] sm:$0xff]
        %v1551 = vld [vmem:[%s520 + $0xc8] sm:$0xff]
        %v1552 = vld [vmem:[%s520 + $0xd0] sm:$0xff]
        %v1553 = vld [vmem:[%s520 + $0xd8] sm:$0xff]
        %v1554 = vld [vmem:[%s520 + $0xe0] sm:$0xff]
        %v1555 = vld [vmem:[%s520 + $0xe8] sm:$0xff]
        %v1556 = vld [vmem:[%s520 + $0xf0] sm:$0xff]
        %v1557 = vld [vmem:[%s520 + $0xf8] sm:$0xff]
        %v1558 = vld [vmem:[%s5] sm:$0xf]
        %v1559 = vld [vmem:[%s5 + $0x4] sm:$0xf]
        %v1560 = vld [vmem:[%s5 + $0x8] sm:$0xf]
        %v1561 = vld [vmem:[%s5 + $0xc] sm:$0xf]
        %v1562 = vld [vmem:[%s5 + $0x10] sm:$0xf]
        %v1563 = vld [vmem:[%s5 + $0x14] sm:$0xf]
        %v1564 = vld [vmem:[%s5 + $0x18] sm:$0xf]
        %v1565 = vld [vmem:[%s5 + $0x1c] sm:$0xf]
        %v1566 = vld [vmem:[%s5 + $0x20] sm:$0xf]
        %v1567 = vld [vmem:[%s5 + $0x24] sm:$0xf]
        %v1568 = vld [vmem:[%s5 + $0x28] sm:$0xf]
        %v1569 = vld [vmem:[%s5 + $0x2c] sm:$0xf]
        %v1570 = vld [vmem:[%s5 + $0x30] sm:$0xf]
        %v1571 = vld [vmem:[%s5 + $0x34] sm:$0xf]
        %v1572 = vld [vmem:[%s5 + $0x38] sm:$0xf]
        %v1573 = vld [vmem:[%s5 + $0x3c] sm:$0xf]
        %v1574 = vld [vmem:[%s5 + $0x40] sm:$0xf]
        %v1575 = vld [vmem:[%s5 + $0x44] sm:$0xf]
        %v1576 = vld [vmem:[%s5 + $0x48] sm:$0xf]
        %v1577 = vld [vmem:[%s5 + $0x4c] sm:$0xf]
        %v1578 = vld [vmem:[%s5 + $0x50] sm:$0xf]
        %v1579 = vld [vmem:[%s5 + $0x54] sm:$0xf]
        %v1580 = vld [vmem:[%s5 + $0x58] sm:$0xf]
        %v1581 = vld [vmem:[%s5 + $0x5c] sm:$0xf]
        %v1582 = vld [vmem:[%s5 + $0x60] sm:$0xf]
        %v1583 = vld [vmem:[%s5 + $0x64] sm:$0xf]
        %v1584 = vld [vmem:[%s5 + $0x68] sm:$0xf]
        %v1585 = vld [vmem:[%s5 + $0x6c] sm:$0xf]
        %v1586 = vld [vmem:[%s5 + $0x70] sm:$0xf]
        %v1587 = vld [vmem:[%s5 + $0x74] sm:$0xf]
        %v1588 = vld [vmem:[%s5 + $0x78] sm:$0xf]
        %v1589 = vld [vmem:[%s5 + $0x7c] sm:$0xf]
        %v1590 = vld [vmem:[%s6] sm:$0x1]
        %v1592 = vlaneseq
        %v1593 = vshrl.u32 %v1592, 7
        %v1594 = vsub.s32 0, %v1593
        %v1595 = vrot.slane %v1590, %v1594
        %v1629 = vunpack.c.l.b16 %v1526
        %v1630 = vunpack.c.h.b16 %v1526
        %v1631 = vunpack.c.l.b16 %v1527
        %v1632 = vunpack.c.h.b16 %v1527
        %v1633 = vunpack.c.l.b16 %v1528
        %v1634 = vunpack.c.h.b16 %v1528
        %v1635 = vunpack.c.l.b16 %v1529
        %v1636 = vunpack.c.h.b16 %v1529
        %v1637 = vunpack.c.l.b16 %v1530
        %v1638 = vunpack.c.h.b16 %v1530
        %v1639 = vunpack.c.l.b16 %v1531
        %v1640 = vunpack.c.h.b16 %v1531
        %v1641 = vunpack.c.l.b16 %v1532
        %v1642 = vunpack.c.h.b16 %v1532
        %v1643 = vunpack.c.l.b16 %v1533
        %v1644 = vunpack.c.h.b16 %v1533
        %v1645 = vunpack.c.l.b16 %v1534
        %v1646 = vunpack.c.h.b16 %v1534
        %v1647 = vunpack.c.l.b16 %v1535
        %v1648 = vunpack.c.h.b16 %v1535
        %v1649 = vunpack.c.l.b16 %v1536
        %v1650 = vunpack.c.h.b16 %v1536
        %v1651 = vunpack.c.l.b16 %v1537
        %v1652 = vunpack.c.h.b16 %v1537
        %v1653 = vunpack.c.l.b16 %v1538
        %v1654 = vunpack.c.h.b16 %v1538
        %v1655 = vunpack.c.l.b16 %v1539
        %v1656 = vunpack.c.h.b16 %v1539
        %v1657 = vunpack.c.l.b16 %v1540
        %v1658 = vunpack.c.h.b16 %v1540
        %v1659 = vunpack.c.l.b16 %v1541
        %v1660 = vunpack.c.h.b16 %v1541
        %v1661 = vunpack.c.l.b16 %v1542
        %v1662 = vunpack.c.h.b16 %v1542
        %v1663 = vunpack.c.l.b16 %v1543
        %v1664 = vunpack.c.h.b16 %v1543
        %v1665 = vunpack.c.l.b16 %v1544
        %v1666 = vunpack.c.h.b16 %v1544
        %v1667 = vunpack.c.l.b16 %v1545
        %v1668 = vunpack.c.h.b16 %v1545
        %v1669 = vunpack.c.l.b16 %v1546
        %v1670 = vunpack.c.h.b16 %v1546
        %v1671 = vunpack.c.l.b16 %v1547
        %v1672 = vunpack.c.h.b16 %v1547
        %v1673 = vunpack.c.l.b16 %v1548
        %v1674 = vunpack.c.h.b16 %v1548
        %v1675 = vunpack.c.l.b16 %v1549
        %v1676 = vunpack.c.h.b16 %v1549
        %v1677 = vunpack.c.l.b16 %v1550
        %v1678 = vunpack.c.h.b16 %v1550
        %v1679 = vunpack.c.l.b16 %v1551
        %v1680 = vunpack.c.h.b16 %v1551
        %v1681 = vunpack.c.l.b16 %v1552
        %v1682 = vunpack.c.h.b16 %v1552
        %v1683 = vunpack.c.l.b16 %v1553
        %v1684 = vunpack.c.h.b16 %v1553
        %v1685 = vunpack.c.l.b16 %v1554
        %v1686 = vunpack.c.h.b16 %v1554
        %v1687 = vunpack.c.l.b16 %v1555
        %v1688 = vunpack.c.h.b16 %v1555
        %v1689 = vunpack.c.l.b16 %v1556
        %v1690 = vunpack.c.h.b16 %v1556
        %v1691 = vunpack.c.l.b16 %v1557
        %v1692 = vunpack.c.h.b16 %v1557
        %v1693 = vpack.c.b16 %v1631, %v1629
        %v1694 = vpack.c.b16 %v1632, %v1630
        %v1695 = vpack.c.b16 %v1635, %v1633
        %v1696 = vpack.c.b16 %v1636, %v1634
        %v1697 = vpack.c.b16 %v1639, %v1637
        %v1698 = vpack.c.b16 %v1640, %v1638
        %v1699 = vpack.c.b16 %v1643, %v1641
        %v1700 = vpack.c.b16 %v1644, %v1642
        %v1701 = vpack.c.b16 %v1647, %v1645
        %v1702 = vpack.c.b16 %v1648, %v1646
        %v1703 = vpack.c.b16 %v1651, %v1649
        %v1704 = vpack.c.b16 %v1652, %v1650
        %v1705 = vpack.c.b16 %v1655, %v1653
        %v1706 = vpack.c.b16 %v1656, %v1654
        %v1707 = vpack.c.b16 %v1659, %v1657
        %v1708 = vpack.c.b16 %v1660, %v1658
        %v1709 = vpack.c.b16 %v1663, %v1661
        %v1710 = vpack.c.b16 %v1664, %v1662
        %v1711 = vpack.c.b16 %v1667, %v1665
        %v1712 = vpack.c.b16 %v1668, %v1666
        %v1713 = vpack.c.b16 %v1671, %v1669
        %v1714 = vpack.c.b16 %v1672, %v1670
        %v1715 = vpack.c.b16 %v1675, %v1673
        %v1716 = vpack.c.b16 %v1676, %v1674
        %v1717 = vpack.c.b16 %v1679, %v1677
        %v1718 = vpack.c.b16 %v1680, %v1678
        %v1719 = vpack.c.b16 %v1683, %v1681
        %v1720 = vpack.c.b16 %v1684, %v1682
        %v1721 = vpack.c.b16 %v1687, %v1685
        %v1722 = vpack.c.b16 %v1688, %v1686
        %v1723 = vpack.c.b16 %v1691, %v1689
        %v1724 = vpack.c.b16 %v1692, %v1690
        %v1789 = vunpack.c.l.b16 %v1558
        %v1790 = vunpack.c.l.b16 %v1559
        %v1791 = vunpack.c.l.b16 %v1560
        %v1792 = vunpack.c.l.b16 %v1561
        %v1793 = vunpack.c.l.b16 %v1562
        %v1794 = vunpack.c.l.b16 %v1563
        %v1795 = vunpack.c.l.b16 %v1564
        %v1796 = vunpack.c.l.b16 %v1565
        %v1797 = vunpack.c.l.b16 %v1566
        %v1798 = vunpack.c.l.b16 %v1567
        %v1799 = vunpack.c.l.b16 %v1568
        %v1800 = vunpack.c.l.b16 %v1569
        %v1801 = vunpack.c.l.b16 %v1570
        %v1802 = vunpack.c.l.b16 %v1571
        %v1803 = vunpack.c.l.b16 %v1572
        %v1804 = vunpack.c.l.b16 %v1573
        %v1805 = vunpack.c.l.b16 %v1574
        %v1806 = vunpack.c.l.b16 %v1575
        %v1807 = vunpack.c.l.b16 %v1576
        %v1808 = vunpack.c.l.b16 %v1577
        %v1809 = vunpack.c.l.b16 %v1578
        %v1810 = vunpack.c.l.b16 %v1579
        %v1811 = vunpack.c.l.b16 %v1580
        %v1812 = vunpack.c.l.b16 %v1581
        %v1813 = vunpack.c.l.b16 %v1582
        %v1814 = vunpack.c.l.b16 %v1583
        %v1815 = vunpack.c.l.b16 %v1584
        %v1816 = vunpack.c.l.b16 %v1585
        %v1817 = vunpack.c.l.b16 %v1586
        %v1818 = vunpack.c.l.b16 %v1587
        %v1819 = vunpack.c.l.b16 %v1588
        %v1820 = vunpack.c.l.b16 %v1589
        %v1821 = vpack.c.b16 %v1790, %v1789
        %v1822 = vpack.c.b16 %v1792, %v1791
        %v1823 = vpack.c.b16 %v1794, %v1793
        %v1824 = vpack.c.b16 %v1796, %v1795
        %v1825 = vpack.c.b16 %v1798, %v1797
        %v1826 = vpack.c.b16 %v1800, %v1799
        %v1827 = vpack.c.b16 %v1802, %v1801
        %v1828 = vpack.c.b16 %v1804, %v1803
        %v1829 = vpack.c.b16 %v1806, %v1805
        %v1830 = vpack.c.b16 %v1808, %v1807
        %v1831 = vpack.c.b16 %v1810, %v1809
        %v1832 = vpack.c.b16 %v1812, %v1811
        %v1833 = vpack.c.b16 %v1814, %v1813
        %v1834 = vpack.c.b16 %v1816, %v1815
        %v1835 = vpack.c.b16 %v1818, %v1817
        %v1836 = vpack.c.b16 %v1820, %v1819
        %1853 = vmatprep.subr.bf16.mxu0 0
        %1854 = vmatpush1.bf16.msra.mxu0 %v1821
        %1855 = vmatprep.subr.bf16.mxu0 0
        %1856 = vmatpush1.bf16.msra.mxu0 %v1822
        %1857 = vmatprep.subr.bf16.mxu0 0
        %1858 = vmatpush1.bf16.msra.mxu0 %v1823
        %1859 = vmatprep.subr.bf16.mxu0 0
        %1860 = vmatpush1.bf16.msra.mxu0 %v1824
        %1861 = vmatprep.subr.bf16.mxu0 0
        %1862 = vmatpush1.bf16.msra.mxu0 %v1825
        %1863 = vmatprep.subr.bf16.mxu0 0
        %1864 = vmatpush1.bf16.msra.mxu0 %v1826
        %1865 = vmatprep.subr.bf16.mxu0 0
        %1866 = vmatpush1.bf16.msra.mxu0 %v1827
        %1867 = vmatprep.subr.bf16.mxu0 0
        %1868 = vmatpush1.bf16.msra.mxu0 %v1828
        %1869 = vmatprep.subr.bf16.mxu0 0
        %1870 = vmatpush1.bf16.msra.mxu0 %v1829
        %1871 = vmatprep.subr.bf16.mxu0 0
        %1872 = vmatpush1.bf16.msra.mxu0 %v1830
        %1873 = vmatprep.subr.bf16.mxu0 0
        %1874 = vmatpush1.bf16.msra.mxu0 %v1831
        %1875 = vmatprep.subr.bf16.mxu0 0
        %1876 = vmatpush1.bf16.msra.mxu0 %v1832
        %1877 = vmatprep.subr.bf16.mxu0 0
        %1878 = vmatpush1.bf16.msra.mxu0 %v1833
        %1879 = vmatprep.subr.bf16.mxu0 0
        %1880 = vmatpush1.bf16.msra.mxu0 %v1834
        %1881 = vmatprep.subr.bf16.mxu0 0
        %1882 = vmatpush1.bf16.msra.mxu0 %v1835
        %1883 = vmatprep.subr.bf16.mxu0 0
        %1884 = vmatpush1.bf16.msra.mxu0 %v1836
        %1885 = vmatprep.mubr.bf16.mxu0 %v1694
        %1886 = vmatmul.mubr.bf16.gmra.mrb[0].mxu0 %v1693
        %v1887 = vpop.f32.mrb[0].mxu0
        %v1888 = vadd.f32 %v1595, %v1887
        %v1889 = vpop.f32.mrb[0].mxu0
        %v1890 = vpop.f32.mrb[0].mxu0
        %v1891 = vadd.f32 %v1595, %v1890
        %v1892 = vpop.f32.mrb[0].mxu0
        %1893 = vmatprep.mubr.bf16.mxu0 %v1696
        %1894 = vmatmul.mubr.bf16.gmra.mrb[0].mxu0 %v1695
        %v1895 = vpop.f32.mrb[0].mxu0
        %v1896 = vadd.f32 %v1595, %v1895
        %v1897 = vpop.f32.mrb[0].mxu0
        %v1898 = vpop.f32.mrb[0].mxu0
        %v1899 = vadd.f32 %v1595, %v1898
        %v1900 = vpop.f32.mrb[0].mxu0
        %1901 = vmatprep.mubr.bf16.mxu0 %v1698
        %1902 = vmatmul.mubr.bf16.gmra.mrb[0].mxu0 %v1697
        %v1903 = vpop.f32.mrb[0].mxu0
        %v1904 = vadd.f32 %v1595, %v1903
        %v1905 = vpop.f32.mrb[0].mxu0
        %v1906 = vpop.f32.mrb[0].mxu0
        %v1907 = vadd.f32 %v1595, %v1906
        %v1908 = vpop.f32.mrb[0].mxu0
        %1909 = vmatprep.mubr.bf16.mxu0 %v1700
        %1910 = vmatmul.mubr.bf16.gmra.mrb[0].mxu0 %v1699
        %v1911 = vpop.f32.mrb[0].mxu0
        %v1912 = vadd.f32 %v1595, %v1911
        %v1913 = vpop.f32.mrb[0].mxu0
        %v1914 = vpop.f32.mrb[0].mxu0
        %v1915 = vadd.f32 %v1595, %v1914
        %v1916 = vpop.f32.mrb[0].mxu0
        %1917 = vmatprep.mubr.bf16.mxu0 %v1702
        %1918 = vmatmul.mubr.bf16.gmra.mrb[0].mxu0 %v1701
        %v1919 = vpop.f32.mrb[0].mxu0
        %v1920 = vadd.f32 %v1595, %v1919
        %v1921 = vpop.f32.mrb[0].mxu0
        %v1922 = vpop.f32.mrb[0].mxu0
        %v1923 = vadd.f32 %v1595, %v1922
        %v1924 = vpop.f32.mrb[0].mxu0
        %1925 = vmatprep.mubr.bf16.mxu0 %v1704
        %1926 = vmatmul.mubr.bf16.gmra.mrb[0].mxu0 %v1703
        %v1927 = vpop.f32.mrb[0].mxu0
        %v1928 = vadd.f32 %v1595, %v1927
        %v1929 = vpop.f32.mrb[0].mxu0
        %v1930 = vpop.f32.mrb[0].mxu0
        %v1931 = vadd.f32 %v1595, %v1930
        %v1932 = vpop.f32.mrb[0].mxu0
        %1933 = vmatprep.mubr.bf16.mxu0 %v1706
        %1934 = vmatmul.mubr.bf16.gmra.mrb[0].mxu0 %v1705
        %v1935 = vpop.f32.mrb[0].mxu0
        %v1936 = vadd.f32 %v1595, %v1935
        %v1937 = vpop.f32.mrb[0].mxu0
        %v1938 = vpop.f32.mrb[0].mxu0
        %v1939 = vadd.f32 %v1595, %v1938
        %v1940 = vpop.f32.mrb[0].mxu0
        %1941 = vmatprep.mubr.bf16.mxu0 %v1708
        %1942 = vmatmul.mubr.bf16.gmra.mrb[0].mxu0 %v1707
        %v1943 = vpop.f32.mrb[0].mxu0
        %v1944 = vadd.f32 %v1595, %v1943
        %v1945 = vpop.f32.mrb[0].mxu0
        %v1946 = vpop.f32.mrb[0].mxu0
        %v1947 = vadd.f32 %v1595, %v1946
        %v1948 = vpop.f32.mrb[0].mxu0
        %1949 = vmatprep.mubr.bf16.mxu0 %v1710
        %1950 = vmatmul.mubr.bf16.gmra.mrb[0].mxu0 %v1709
        %v1951 = vpop.f32.mrb[0].mxu0
        %v1952 = vadd.f32 %v1595, %v1951
        %v1953 = vpop.f32.mrb[0].mxu0
        %v1954 = vpop.f32.mrb[0].mxu0
        %v1955 = vadd.f32 %v1595, %v1954
        %v1956 = vpop.f32.mrb[0].mxu0
        %1957 = vmatprep.mubr.bf16.mxu0 %v1712
        %1958 = vmatmul.mubr.bf16.gmra.mrb[0].mxu0 %v1711
        %v1959 = vpop.f32.mrb[0].mxu0
        %v1960 = vadd.f32 %v1595, %v1959
        %v1961 = vpop.f32.mrb[0].mxu0
        %v1962 = vpop.f32.mrb[0].mxu0
        %v1963 = vadd.f32 %v1595, %v1962
        %v1964 = vpop.f32.mrb[0].mxu0
        %1965 = vmatprep.mubr.bf16.mxu0 %v1714
        %1966 = vmatmul.mubr.bf16.gmra.mrb[0].mxu0 %v1713
        %v1967 = vpop.f32.mrb[0].mxu0
        %v1968 = vadd.f32 %v1595, %v1967
        %v1969 = vpop.f32.mrb[0].mxu0
        %v1970 = vpop.f32.mrb[0].mxu0
        %v1971 = vadd.f32 %v1595, %v1970
        %v1972 = vpop.f32.mrb[0].mxu0
        %1973 = vmatprep.mubr.bf16.mxu0 %v1716
        %1974 = vmatmul.mubr.bf16.gmra.mrb[0].mxu0 %v1715
        %v1975 = vpop.f32.mrb[0].mxu0
        %v1976 = vadd.f32 %v1595, %v1975
        %v1977 = vpop.f32.mrb[0].mxu0
        %v1978 = vpop.f32.mrb[0].mxu0
        %v1979 = vadd.f32 %v1595, %v1978
        %v1980 = vpop.f32.mrb[0].mxu0
        %1981 = vmatprep.mubr.bf16.mxu0 %v1718
        %1982 = vmatmul.mubr.bf16.gmra.mrb[0].mxu0 %v1717
        %v1983 = vpop.f32.mrb[0].mxu0
        %v1984 = vadd.f32 %v1595, %v1983
        %v1985 = vpop.f32.mrb[0].mxu0
        %v1986 = vpop.f32.mrb[0].mxu0
        %v1987 = vadd.f32 %v1595, %v1986
        %v1988 = vpop.f32.mrb[0].mxu0
        %1989 = vmatprep.mubr.bf16.mxu0 %v1720
        %1990 = vmatmul.mubr.bf16.gmra.mrb[0].mxu0 %v1719
        %v1991 = vpop.f32.mrb[0].mxu0
        %v1992 = vadd.f32 %v1595, %v1991
        %v1993 = vpop.f32.mrb[0].mxu0
        %v1994 = vpop.f32.mrb[0].mxu0
        %v1995 = vadd.f32 %v1595, %v1994
        %v1996 = vpop.f32.mrb[0].mxu0
        %1997 = vmatprep.mubr.bf16.mxu0 %v1722
        %1998 = vmatmul.mubr.bf16.gmra.mrb[0].mxu0 %v1721
        %v1999 = vpop.f32.mrb[0].mxu0
        %v2000 = vadd.f32 %v1595, %v1999
        %v2001 = vpop.f32.mrb[0].mxu0
        %v2002 = vpop.f32.mrb[0].mxu0
        %v2003 = vadd.f32 %v1595, %v2002
        %v2004 = vpop.f32.mrb[0].mxu0
        %2005 = vmatprep.mubr.bf16.mxu0 %v1724
        %2006 = vmatmul.mubr.bf16.gmra.mrb[0].mxu0 %v1723
        %v2007 = vpop.f32.mrb[0].mxu0
        %v2008 = vadd.f32 %v1595, %v2007
        %v2009 = vpop.f32.mrb[0].mxu0
        %v2010 = vpop.f32.mrb[0].mxu0
        %v2011 = vadd.f32 %v1595, %v2010
        %v2012 = vpop.f32.mrb[0].mxu0
        %2013 = vdwg.mxu0
        %vm2014 = vcmp.ge.f32.partialorder %v1888, 0.0
        %vm2015 = vcmp.ge.f32.partialorder %v1891, 0.0
        %vm2016 = vcmp.ge.f32.partialorder %v1896, 0.0
        %vm2017 = vcmp.ge.f32.partialorder %v1899, 0.0
        %vm2018 = vcmp.ge.f32.partialorder %v1904, 0.0
        %vm2019 = vcmp.ge.f32.partialorder %v1907, 0.0
        %vm2020 = vcmp.ge.f32.partialorder %v1912, 0.0
        %vm2021 = vcmp.ge.f32.partialorder %v1915, 0.0
        %vm2022 = vcmp.ge.f32.partialorder %v1920, 0.0
        %vm2023 = vcmp.ge.f32.partialorder %v1923, 0.0
        %vm2024 = vcmp.ge.f32.partialorder %v1928, 0.0
        %vm2025 = vcmp.ge.f32.partialorder %v1931, 0.0
        %vm2026 = vcmp.ge.f32.partialorder %v1936, 0.0
        %vm2027 = vcmp.ge.f32.partialorder %v1939, 0.0
        %vm2028 = vcmp.ge.f32.partialorder %v1944, 0.0
        %vm2029 = vcmp.ge.f32.partialorder %v1947, 0.0
        %vm2030 = vcmp.ge.f32.partialorder %v1952, 0.0
        %vm2031 = vcmp.ge.f32.partialorder %v1955, 0.0
        %vm2032 = vcmp.ge.f32.partialorder %v1960, 0.0
        %vm2033 = vcmp.ge.f32.partialorder %v1963, 0.0
        %vm2034 = vcmp.ge.f32.partialorder %v1968, 0.0
        %vm2035 = vcmp.ge.f32.partialorder %v1971, 0.0
        %vm2036 = vcmp.ge.f32.partialorder %v1976, 0.0
        %vm2037 = vcmp.ge.f32.partialorder %v1979, 0.0
        %vm2038 = vcmp.ge.f32.partialorder %v1984, 0.0
        %vm2039 = vcmp.ge.f32.partialorder %v1987, 0.0
        %vm2040 = vcmp.ge.f32.partialorder %v1992, 0.0
        %vm2041 = vcmp.ge.f32.partialorder %v1995, 0.0
        %vm2042 = vcmp.ge.f32.partialorder %v2000, 0.0
        %vm2043 = vcmp.ge.f32.partialorder %v2003, 0.0
        %vm2044 = vcmp.ge.f32.partialorder %v2008, 0.0
        %vm2045 = vcmp.ge.f32.partialorder %v2011, 0.0
        %v2046 = vmul.f32 %v1888, 0.01
        %v2047 = vmul.f32 %v1891, 0.01
        %v2048 = vmul.f32 %v1896, 0.01
        %v2049 = vmul.f32 %v1899, 0.01
        %v2050 = vmul.f32 %v1904, 0.01
        %v2051 = vmul.f32 %v1907, 0.01
        %v2052 = vmul.f32 %v1912, 0.01
        %v2053 = vmul.f32 %v1915, 0.01
        %v2054 = vmul.f32 %v1920, 0.01
        %v2055 = vmul.f32 %v1923, 0.01
        %v2056 = vmul.f32 %v1928, 0.01
        %v2057 = vmul.f32 %v1931, 0.01
        %v2058 = vmul.f32 %v1936, 0.01
        %v2059 = vmul.f32 %v1939, 0.01
        %v2060 = vmul.f32 %v1944, 0.01
        %v2061 = vmul.f32 %v1947, 0.01
        %v2062 = vmul.f32 %v1952, 0.01
        %v2063 = vmul.f32 %v1955, 0.01
        %v2064 = vmul.f32 %v1960, 0.01
        %v2065 = vmul.f32 %v1963, 0.01
        %v2066 = vmul.f32 %v1968, 0.01
        %v2067 = vmul.f32 %v1971, 0.01
        %v2068 = vmul.f32 %v1976, 0.01
        %v2069 = vmul.f32 %v1979, 0.01
        %v2070 = vmul.f32 %v1984, 0.01
        %v2071 = vmul.f32 %v1987, 0.01
        %v2072 = vmul.f32 %v1992, 0.01
        %v2073 = vmul.f32 %v1995, 0.01
        %v2074 = vmul.f32 %v2000, 0.01
        %v2075 = vmul.f32 %v2003, 0.01
        %v2076 = vmul.f32 %v2008, 0.01
        %v2077 = vmul.f32 %v2011, 0.01
        %v2078 = vsel %vm2014, %v1888, %v2046
        %v2079 = vsel %vm2015, %v1891, %v2047
        %v2080 = vsel %vm2016, %v1896, %v2048
        %v2081 = vsel %vm2017, %v1899, %v2049
        %v2082 = vsel %vm2018, %v1904, %v2050
        %v2083 = vsel %vm2019, %v1907, %v2051
        %v2084 = vsel %vm2020, %v1912, %v2052
        %v2085 = vsel %vm2021, %v1915, %v2053
        %v2086 = vsel %vm2022, %v1920, %v2054
        %v2087 = vsel %vm2023, %v1923, %v2055
        %v2088 = vsel %vm2024, %v1928, %v2056
        %v2089 = vsel %vm2025, %v1931, %v2057
        %v2090 = vsel %vm2026, %v1936, %v2058
        %v2091 = vsel %vm2027, %v1939, %v2059
        %v2092 = vsel %vm2028, %v1944, %v2060
        %v2093 = vsel %vm2029, %v1947, %v2061
        %v2094 = vsel %vm2030, %v1952, %v2062
        %v2095 = vsel %vm2031, %v1955, %v2063
        %v2096 = vsel %vm2032, %v1960, %v2064
        %v2097 = vsel %vm2033, %v1963, %v2065
        %v2098 = vsel %vm2034, %v1968, %v2066
        %v2099 = vsel %vm2035, %v1971, %v2067
        %v2100 = vsel %vm2036, %v1976, %v2068
        %v2101 = vsel %vm2037, %v1979, %v2069
        %v2102 = vsel %vm2038, %v1984, %v2070
        %v2103 = vsel %vm2039, %v1987, %v2071
        %v2104 = vsel %vm2040, %v1992, %v2072
        %v2105 = vsel %vm2041, %v1995, %v2073
        %v2106 = vsel %vm2042, %v2000, %v2074
        %v2107 = vsel %vm2043, %v2003, %v2075
        %v2108 = vsel %vm2044, %v2008, %v2076
        %v2109 = vsel %vm2045, %v2011, %v2077
        %v2110 = vpack.c.bf16 %v2079, %v2078
        %v2111 = vpack.c.bf16 %v2081, %v2080
        %v2112 = vpack.c.bf16 %v2083, %v2082
        %v2113 = vpack.c.bf16 %v2085, %v2084
        %v2114 = vpack.c.bf16 %v2087, %v2086
        %v2115 = vpack.c.bf16 %v2089, %v2088
        %v2116 = vpack.c.bf16 %v2091, %v2090
        %v2117 = vpack.c.bf16 %v2093, %v2092
        %v2118 = vpack.c.bf16 %v2095, %v2094
        %v2119 = vpack.c.bf16 %v2097, %v2096
        %v2120 = vpack.c.bf16 %v2099, %v2098
        %v2121 = vpack.c.bf16 %v2101, %v2100
        %v2122 = vpack.c.bf16 %v2103, %v2102
        %v2123 = vpack.c.bf16 %v2105, %v2104
        %v2124 = vpack.c.bf16 %v2107, %v2106
        %v2125 = vpack.c.bf16 %v2109, %v2108
        %v2126 = vld [vmem:[%s8] sm:$0xff]
        %v2127 = vld [vmem:[%s8 + $0x8] sm:$0xff]
        %v2128 = vld [vmem:[%s8 + $0x10] sm:$0xff]
        %v2129 = vld [vmem:[%s8 + $0x18] sm:$0xff]
        %v2130 = vld [vmem:[%s8 + $0x20] sm:$0xff]
        %v2131 = vld [vmem:[%s8 + $0x28] sm:$0xff]
        %v2132 = vld [vmem:[%s8 + $0x30] sm:$0xff]
        %v2133 = vld [vmem:[%s8 + $0x38] sm:$0xff]
        %v2134 = vld [vmem:[%s8 + $0x40] sm:$0xff]
        %v2135 = vld [vmem:[%s8 + $0x48] sm:$0xff]
        %v2136 = vld [vmem:[%s8 + $0x50] sm:$0xff]
        %v2137 = vld [vmem:[%s8 + $0x58] sm:$0xff]
        %v2138 = vld [vmem:[%s8 + $0x60] sm:$0xff]
        %v2139 = vld [vmem:[%s8 + $0x68] sm:$0xff]
        %v2140 = vld [vmem:[%s8 + $0x70] sm:$0xff]
        %v2141 = vld [vmem:[%s8 + $0x78] sm:$0xff]
        %v2158 = vunpack.c.l.b16 %v2126
        %v2159 = vunpack.c.h.b16 %v2126
        %v2160 = vunpack.c.l.b16 %v2127
        %v2161 = vunpack.c.h.b16 %v2127
        %v2162 = vunpack.c.l.b16 %v2128
        %v2163 = vunpack.c.h.b16 %v2128
        %v2164 = vunpack.c.l.b16 %v2129
        %v2165 = vunpack.c.h.b16 %v2129
        %v2166 = vunpack.c.l.b16 %v2130
        %v2167 = vunpack.c.h.b16 %v2130
        %v2168 = vunpack.c.l.b16 %v2131
        %v2169 = vunpack.c.h.b16 %v2131
        %v2170 = vunpack.c.l.b16 %v2132
        %v2171 = vunpack.c.h.b16 %v2132
        %v2172 = vunpack.c.l.b16 %v2133
        %v2173 = vunpack.c.h.b16 %v2133
        %v2174 = vunpack.c.l.b16 %v2134
        %v2175 = vunpack.c.h.b16 %v2134
        %v2176 = vunpack.c.l.b16 %v2135
        %v2177 = vunpack.c.h.b16 %v2135
        %v2178 = vunpack.c.l.b16 %v2136
        %v2179 = vunpack.c.h.b16 %v2136
        %v2180 = vunpack.c.l.b16 %v2137
        %v2181 = vunpack.c.h.b16 %v2137
        %v2182 = vunpack.c.l.b16 %v2138
        %v2183 = vunpack.c.h.b16 %v2138
        %v2184 = vunpack.c.l.b16 %v2139
        %v2185 = vunpack.c.h.b16 %v2139
        %v2186 = vunpack.c.l.b16 %v2140
        %v2187 = vunpack.c.h.b16 %v2140
        %v2188 = vunpack.c.l.b16 %v2141
        %v2189 = vunpack.c.h.b16 %v2141
        %v2190 = vpack.c.b16 %v2160, %v2158
        %v2191 = vpack.c.b16 %v2161, %v2159
        %v2192 = vpack.c.b16 %v2164, %v2162
        %v2193 = vpack.c.b16 %v2165, %v2163
        %v2194 = vpack.c.b16 %v2168, %v2166
        %v2195 = vpack.c.b16 %v2169, %v2167
        %v2196 = vpack.c.b16 %v2172, %v2170
        %v2197 = vpack.c.b16 %v2173, %v2171
        %v2198 = vpack.c.b16 %v2176, %v2174
        %v2199 = vpack.c.b16 %v2177, %v2175
        %v2200 = vpack.c.b16 %v2180, %v2178
        %v2201 = vpack.c.b16 %v2181, %v2179
        %v2202 = vpack.c.b16 %v2184, %v2182
        %v2203 = vpack.c.b16 %v2185, %v2183
        %v2204 = vpack.c.b16 %v2188, %v2186
        %v2205 = vpack.c.b16 %v2189, %v2187
        %2222 = vmatprep.subr.bf16.mxu0 %v2191
        %2223 = vmatpush1.bf16.msra.mxu0 %v2190
        %2224 = vmatprep.subr.bf16.mxu0 %v2193
        %2225 = vmatpush1.bf16.msra.mxu0 %v2192
        %2226 = vmatprep.subr.bf16.mxu0 %v2195
        %2227 = vmatpush1.bf16.msra.mxu0 %v2194
        %2228 = vmatprep.subr.bf16.mxu0 %v2197
        %2229 = vmatpush1.bf16.msra.mxu0 %v2196
        %2230 = vmatprep.subr.bf16.mxu0 %v2199
        %2231 = vmatpush1.bf16.msra.mxu0 %v2198
        %2232 = vmatprep.subr.bf16.mxu0 %v2201
        %2233 = vmatpush1.bf16.msra.mxu0 %v2200
        %2234 = vmatprep.subr.bf16.mxu0 %v2203
        %2235 = vmatpush1.bf16.msra.mxu0 %v2202
        %2236 = vmatprep.subr.bf16.mxu0 %v2205
        %2237 = vmatpush1.bf16.msra.mxu0 %v2204
        %2238 = vmatprep.subr.bf16.mxu0 0
        %2239 = vmatpush1.bf16.msra.mxu0 0
        %2240 = vmatprep.subr.bf16.mxu0 0
        %2241 = vmatpush1.bf16.msra.mxu0 0
        %2242 = vmatprep.subr.bf16.mxu0 0
        %2243 = vmatpush1.bf16.msra.mxu0 0
        %2244 = vmatprep.subr.bf16.mxu0 0
        %2245 = vmatpush1.bf16.msra.mxu0 0
        %2246 = vmatprep.subr.bf16.mxu0 0
        %2247 = vmatpush1.bf16.msra.mxu0 0
        %2248 = vmatprep.subr.bf16.mxu0 0
        %2249 = vmatpush1.bf16.msra.mxu0 0
        %2250 = vmatprep.subr.bf16.mxu0 0
        %2251 = vmatpush1.bf16.msra.mxu0 0
        %2252 = vmatprep.subr.bf16.mxu0 0
        %2253 = vmatpush1.bf16.msra.mxu0 0
        %2254 = vmatprep.mubr.bf16.mxu0 0
        %2255 = vmatmul.mubr.bf16.gmra.mrb[0].mxu0 %v2110
        %v2256 = vpop.f32.mrb[0].mxu0
        %v2257 = vadd.f32 0.0, %v2256
        %v2258 = vpop.f32.mrb[0].mxu0
        %v2259 = vadd.f32 0.0, %v2258
        %v2260 = vpop.f32.mrb[0].mxu0
        %v2261 = vadd.f32 0.0, %v2260
        %v2262 = vpop.f32.mrb[0].mxu0
        %v2263 = vadd.f32 0.0, %v2262
        %2264 = vmatprep.mubr.bf16.mxu0 0
        %2265 = vmatmul.mubr.bf16.gmra.mrb[0].mxu0 %v2111
        %v2266 = vpop.f32.mrb[0].mxu0
        %v2267 = vadd.f32 0.0, %v2266
        %v2268 = vpop.f32.mrb[0].mxu0
        %v2269 = vadd.f32 0.0, %v2268
        %v2270 = vpop.f32.mrb[0].mxu0
        %v2271 = vadd.f32 0.0, %v2270
        %v2272 = vpop.f32.mrb[0].mxu0
        %v2273 = vadd.f32 0.0, %v2272
        %2274 = vmatprep.mubr.bf16.mxu0 0
        %2275 = vmatmul.mubr.bf16.gmra.mrb[0].mxu0 %v2112
        %v2276 = vpop.f32.mrb[0].mxu0
        %v2277 = vadd.f32 0.0, %v2276
        %v2278 = vpop.f32.mrb[0].mxu0
        %v2279 = vadd.f32 0.0, %v2278
        %v2280 = vpop.f32.mrb[0].mxu0
        %v2281 = vadd.f32 0.0, %v2280
        %v2282 = vpop.f32.mrb[0].mxu0
        %v2283 = vadd.f32 0.0, %v2282
        %2284 = vmatprep.mubr.bf16.mxu0 0
        %2285 = vmatmul.mubr.bf16.gmra.mrb[0].mxu0 %v2113
        %v2286 = vpop.f32.mrb[0].mxu0
        %v2287 = vadd.f32 0.0, %v2286
        %v2288 = vpop.f32.mrb[0].mxu0
        %v2289 = vadd.f32 0.0, %v2288
        %v2290 = vpop.f32.mrb[0].mxu0
        %v2291 = vadd.f32 0.0, %v2290
        %v2292 = vpop.f32.mrb[0].mxu0
        %v2293 = vadd.f32 0.0, %v2292
        %2294 = vmatprep.mubr.bf16.mxu0 0
        %2295 = vmatmul.mubr.bf16.gmra.mrb[0].mxu0 %v2114
        %v2296 = vpop.f32.mrb[0].mxu0
        %v2297 = vadd.f32 0.0, %v2296
        %v2298 = vpop.f32.mrb[0].mxu0
        %v2299 = vadd.f32 0.0, %v2298
        %v2300 = vpop.f32.mrb[0].mxu0
        %v2301 = vadd.f32 0.0, %v2300
        %v2302 = vpop.f32.mrb[0].mxu0
        %v2303 = vadd.f32 0.0, %v2302
        %2304 = vmatprep.mubr.bf16.mxu0 0
        %2305 = vmatmul.mubr.bf16.gmra.mrb[0].mxu0 %v2115
        %v2306 = vpop.f32.mrb[0].mxu0
        %v2307 = vadd.f32 0.0, %v2306
        %v2308 = vpop.f32.mrb[0].mxu0
        %v2309 = vadd.f32 0.0, %v2308
        %v2310 = vpop.f32.mrb[0].mxu0
        %v2311 = vadd.f32 0.0, %v2310
        %v2312 = vpop.f32.mrb[0].mxu0
        %v2313 = vadd.f32 0.0, %v2312
        %2314 = vmatprep.mubr.bf16.mxu0 0
        %2315 = vmatmul.mubr.bf16.gmra.mrb[0].mxu0 %v2116
        %v2316 = vpop.f32.mrb[0].mxu0
        %v2317 = vadd.f32 0.0, %v2316
        %v2318 = vpop.f32.mrb[0].mxu0
        %v2319 = vadd.f32 0.0, %v2318
        %v2320 = vpop.f32.mrb[0].mxu0
        %v2321 = vadd.f32 0.0, %v2320
        %v2322 = vpop.f32.mrb[0].mxu0
        %v2323 = vadd.f32 0.0, %v2322
        %2324 = vmatprep.mubr.bf16.mxu0 0
        %2325 = vmatmul.mubr.bf16.gmra.mrb[0].mxu0 %v2117
        %v2326 = vpop.f32.mrb[0].mxu0
        %v2327 = vadd.f32 0.0, %v2326
        %v2328 = vpop.f32.mrb[0].mxu0
        %v2329 = vadd.f32 0.0, %v2328
        %v2330 = vpop.f32.mrb[0].mxu0
        %v2331 = vadd.f32 0.0, %v2330
        %v2332 = vpop.f32.mrb[0].mxu0
        %v2333 = vadd.f32 0.0, %v2332
        %2334 = vmatprep.mubr.bf16.mxu0 0
        %2335 = vmatmul.mubr.bf16.gmra.mrb[0].mxu0 %v2118
        %v2336 = vpop.f32.mrb[0].mxu0
        %v2337 = vadd.f32 0.0, %v2336
        %v2338 = vpop.f32.mrb[0].mxu0
        %v2339 = vadd.f32 0.0, %v2338
        %v2340 = vpop.f32.mrb[0].mxu0
        %v2341 = vadd.f32 0.0, %v2340
        %v2342 = vpop.f32.mrb[0].mxu0
        %v2343 = vadd.f32 0.0, %v2342
        %2344 = vmatprep.mubr.bf16.mxu0 0
        %2345 = vmatmul.mubr.bf16.gmra.mrb[0].mxu0 %v2119
        %v2346 = vpop.f32.mrb[0].mxu0
        %v2347 = vadd.f32 0.0, %v2346
        %v2348 = vpop.f32.mrb[0].mxu0
        %v2349 = vadd.f32 0.0, %v2348
        %v2350 = vpop.f32.mrb[0].mxu0
        %v2351 = vadd.f32 0.0, %v2350
        %v2352 = vpop.f32.mrb[0].mxu0
        %v2353 = vadd.f32 0.0, %v2352
        %2354 = vmatprep.mubr.bf16.mxu0 0
        %2355 = vmatmul.mubr.bf16.gmra.mrb[0].mxu0 %v2120
        %v2356 = vpop.f32.mrb[0].mxu0
        %v2357 = vadd.f32 0.0, %v2356
        %v2358 = vpop.f32.mrb[0].mxu0
        %v2359 = vadd.f32 0.0, %v2358
        %v2360 = vpop.f32.mrb[0].mxu0
        %v2361 = vadd.f32 0.0, %v2360
        %v2362 = vpop.f32.mrb[0].mxu0
        %v2363 = vadd.f32 0.0, %v2362
        %2364 = vmatprep.mubr.bf16.mxu0 0
        %2365 = vmatmul.mubr.bf16.gmra.mrb[0].mxu0 %v2121
        %v2366 = vpop.f32.mrb[0].mxu0
        %v2367 = vadd.f32 0.0, %v2366
        %v2368 = vpop.f32.mrb[0].mxu0
        %v2369 = vadd.f32 0.0, %v2368
        %v2370 = vpop.f32.mrb[0].mxu0
        %v2371 = vadd.f32 0.0, %v2370
        %v2372 = vpop.f32.mrb[0].mxu0
        %v2373 = vadd.f32 0.0, %v2372
        %2374 = vmatprep.mubr.bf16.mxu0 0
        %2375 = vmatmul.mubr.bf16.gmra.mrb[0].mxu0 %v2122
        %v2376 = vpop.f32.mrb[0].mxu0
        %v2377 = vadd.f32 0.0, %v2376
        %v2378 = vpop.f32.mrb[0].mxu0
        %v2379 = vadd.f32 0.0, %v2378
        %v2380 = vpop.f32.mrb[0].mxu0
        %v2381 = vadd.f32 0.0, %v2380
        %v2382 = vpop.f32.mrb[0].mxu0
        %v2383 = vadd.f32 0.0, %v2382
        %2384 = vmatprep.mubr.bf16.mxu0 0
        %2385 = vmatmul.mubr.bf16.gmra.mrb[0].mxu0 %v2123
        %v2386 = vpop.f32.mrb[0].mxu0
        %v2387 = vadd.f32 0.0, %v2386
        %v2388 = vpop.f32.mrb[0].mxu0
        %v2389 = vadd.f32 0.0, %v2388
        %v2390 = vpop.f32.mrb[0].mxu0
        %v2391 = vadd.f32 0.0, %v2390
        %v2392 = vpop.f32.mrb[0].mxu0
        %v2393 = vadd.f32 0.0, %v2392
        %2394 = vmatprep.mubr.bf16.mxu0 0
        %2395 = vmatmul.mubr.bf16.gmra.mrb[0].mxu0 %v2124
        %v2396 = vpop.f32.mrb[0].mxu0
        %v2397 = vadd.f32 0.0, %v2396
        %v2398 = vpop.f32.mrb[0].mxu0
        %v2399 = vadd.f32 0.0, %v2398
        %v2400 = vpop.f32.mrb[0].mxu0
        %v2401 = vadd.f32 0.0, %v2400
        %v2402 = vpop.f32.mrb[0].mxu0
        %v2403 = vadd.f32 0.0, %v2402
        %2404 = vmatprep.mubr.bf16.mxu0 0
        %2405 = vmatmul.mubr.bf16.gmra.mrb[0].mxu0 %v2125
        %v2406 = vpop.f32.mrb[0].mxu0
        %v2407 = vadd.f32 0.0, %v2406
        %v2408 = vpop.f32.mrb[0].mxu0
        %v2409 = vadd.f32 0.0, %v2408
        %v2410 = vpop.f32.mrb[0].mxu0
        %v2411 = vadd.f32 0.0, %v2410
        %v2412 = vpop.f32.mrb[0].mxu0
        %v2413 = vadd.f32 0.0, %v2412
        %2414 = vdwg.mxu0
        %v2447 = vunpack.c.l.b16 %v1486
        %v2448 = vunpack.c.l.b16 %v1487
        %v2449 = vunpack.c.l.b16 %v1488
        %v2450 = vunpack.c.l.b16 %v1489
        %v2451 = vunpack.c.l.b16 %v1490
        %v2452 = vunpack.c.l.b16 %v1491
        %v2453 = vunpack.c.l.b16 %v1492
        %v2454 = vunpack.c.l.b16 %v1493
        %v2455 = vunpack.c.l.b16 %v1494
        %v2456 = vunpack.c.l.b16 %v1495
        %v2457 = vunpack.c.l.b16 %v1496
        %v2458 = vunpack.c.l.b16 %v1497
        %v2459 = vunpack.c.l.b16 %v1498
        %v2460 = vunpack.c.l.b16 %v1499
        %v2461 = vunpack.c.l.b16 %v1500
        %v2462 = vunpack.c.l.b16 %v1501
        %v2463 = vunpack.c.l.b16 %v1502
        %v2464 = vunpack.c.l.b16 %v1503
        %v2465 = vunpack.c.l.b16 %v1504
        %v2466 = vunpack.c.l.b16 %v1505
        %v2467 = vunpack.c.l.b16 %v1506
        %v2468 = vunpack.c.l.b16 %v1507
        %v2469 = vunpack.c.l.b16 %v1508
        %v2470 = vunpack.c.l.b16 %v1509
        %v2471 = vunpack.c.l.b16 %v1510
        %v2472 = vunpack.c.l.b16 %v1511
        %v2473 = vunpack.c.l.b16 %v1512
        %v2474 = vunpack.c.l.b16 %v1513
        %v2475 = vunpack.c.l.b16 %v1514
        %v2476 = vunpack.c.l.b16 %v1515
        %v2477 = vunpack.c.l.b16 %v1516
        %v2478 = vunpack.c.l.b16 %v1517
        %v2479 = vpack.c.b16 %v2448, %v2447
        %v2480 = vpack.c.b16 %v2450, %v2449
        %v2481 = vpack.c.b16 %v2452, %v2451
        %v2482 = vpack.c.b16 %v2454, %v2453
        %v2483 = vpack.c.b16 %v2456, %v2455
        %v2484 = vpack.c.b16 %v2458, %v2457
        %v2485 = vpack.c.b16 %v2460, %v2459
        %v2486 = vpack.c.b16 %v2462, %v2461
        %v2487 = vpack.c.b16 %v2464, %v2463
        %v2488 = vpack.c.b16 %v2466, %v2465
        %v2489 = vpack.c.b16 %v2468, %v2467
        %v2490 = vpack.c.b16 %v2470, %v2469
        %v2491 = vpack.c.b16 %v2472, %v2471
        %v2492 = vpack.c.b16 %v2474, %v2473
        %v2493 = vpack.c.b16 %v2476, %v2475
        %v2494 = vpack.c.b16 %v2478, %v2477
        %vm2495 = vcmask 523264
        %v2497 = vsel %vm2495, %v2479, 0
        %v2500 = vsel %vm2495, %v2480, 0
        %v2503 = vsel %vm2495, %v2481, 0
        %v2506 = vsel %vm2495, %v2482, 0
        %v2509 = vsel %vm2495, %v2483, 0
        %v2512 = vsel %vm2495, %v2484, 0
        %v2515 = vsel %vm2495, %v2485, 0
        %v2518 = vsel %vm2495, %v2486, 0
        %v2521 = vsel %vm2495, %v2487, 0
        %v2524 = vsel %vm2495, %v2488, 0
        %v2527 = vsel %vm2495, %v2489, 0
        %v2530 = vsel %vm2495, %v2490, 0
        %v2533 = vsel %vm2495, %v2491, 0
        %v2536 = vsel %vm2495, %v2492, 0
        %v2539 = vsel %vm2495, %v2493, 0
        %v2542 = vsel %vm2495, %v2494, 0
        %2544 = vmatprep.subr.bf16.mxu0 %v1519
        %2545 = vmatpush1.bf16.msra.mxu0 %v1518
        %2546 = vmatprep.subr.bf16.mxu0 %v1521
        %2547 = vmatpush1.bf16.msra.mxu0 %v1520
        %2548 = vmatprep.subr.bf16.mxu0 %v1523
        %2549 = vmatpush1.bf16.msra.mxu0 %v1522
        %2550 = vmatprep.subr.bf16.mxu0 %v1525
        %2551 = vmatpush1.bf16.msra.mxu0 %v1524
        %2552 = vmatprep.subr.bf16.mxu0 0
        %2553 = vmatpush1.bf16.msra.mxu0 0
        %2554 = vmatprep.subr.bf16.mxu0 0
        %2555 = vmatpush1.bf16.msra.mxu0 0
        %2556 = vmatprep.subr.bf16.mxu0 0
        %2557 = vmatpush1.bf16.msra.mxu0 0
        %2558 = vmatprep.subr.bf16.mxu0 0
        %2559 = vmatpush1.bf16.msra.mxu0 0
        %2560 = vmatprep.subr.bf16.mxu0 0
        %2561 = vmatpush1.bf16.msra.mxu0 0
        %2562 = vmatprep.subr.bf16.mxu0 0
        %2563 = vmatpush1.bf16.msra.mxu0 0
        %2564 = vmatprep.subr.bf16.mxu0 0
        %2565 = vmatpush1.bf16.msra.mxu0 0
        %2566 = vmatprep.subr.bf16.mxu0 0
        %2567 = vmatpush1.bf16.msra.mxu0 0
        %2568 = vmatprep.subr.bf16.mxu0 0
        %2569 = vmatpush1.bf16.msra.mxu0 0
        %2570 = vmatprep.subr.bf16.mxu0 0
        %2571 = vmatpush1.bf16.msra.mxu0 0
        %2572 = vmatprep.subr.bf16.mxu0 0
        %2573 = vmatpush1.bf16.msra.mxu0 0
        %2574 = vmatprep.subr.bf16.mxu0 0
        %2575 = vmatpush1.bf16.msra.mxu0 0
        %2576 = vmatprep.mubr.bf16.mxu0 0
        %2577 = vmatmul.mubr.bf16.gmra.mrb[0].mxu0 %v2497
        %v2578 = vpop.f32.mrb[0].mxu0
        %v2579 = vadd.f32 %v2257, %v2578
        %v2580 = vpop.f32.mrb[0].mxu0
        %v2581 = vadd.f32 %v2259, %v2580
        %v2582 = vpop.f32.mrb[0].mxu0
        %v2583 = vadd.f32 %v2261, %v2582
        %v2584 = vpop.f32.mrb[0].mxu0
        %v2585 = vadd.f32 %v2263, %v2584
        %2586 = vmatprep.mubr.bf16.mxu0 0
        %2587 = vmatmul.mubr.bf16.gmra.mrb[0].mxu0 %v2500
        %v2588 = vpop.f32.mrb[0].mxu0
        %v2589 = vadd.f32 %v2267, %v2588
        %v2590 = vpop.f32.mrb[0].mxu0
        %v2591 = vadd.f32 %v2269, %v2590
        %v2592 = vpop.f32.mrb[0].mxu0
        %v2593 = vadd.f32 %v2271, %v2592
        %v2594 = vpop.f32.mrb[0].mxu0
        %v2595 = vadd.f32 %v2273, %v2594
        %2596 = vmatprep.mubr.bf16.mxu0 0
        %2597 = vmatmul.mubr.bf16.gmra.mrb[0].mxu0 %v2503
        %v2598 = vpop.f32.mrb[0].mxu0
        %v2599 = vadd.f32 %v2277, %v2598
        %v2600 = vpop.f32.mrb[0].mxu0
        %v2601 = vadd.f32 %v2279, %v2600
        %v2602 = vpop.f32.mrb[0].mxu0
        %v2603 = vadd.f32 %v2281, %v2602
        %v2604 = vpop.f32.mrb[0].mxu0
        %v2605 = vadd.f32 %v2283, %v2604
        %2606 = vmatprep.mubr.bf16.mxu0 0
        %2607 = vmatmul.mubr.bf16.gmra.mrb[0].mxu0 %v2506
        %v2608 = vpop.f32.mrb[0].mxu0
        %v2609 = vadd.f32 %v2287, %v2608
        %v2610 = vpop.f32.mrb[0].mxu0
        %v2611 = vadd.f32 %v2289, %v2610
        %v2612 = vpop.f32.mrb[0].mxu0
        %v2613 = vadd.f32 %v2291, %v2612
        %v2614 = vpop.f32.mrb[0].mxu0
        %v2615 = vadd.f32 %v2293, %v2614
        %2616 = vmatprep.mubr.bf16.mxu0 0
        %2617 = vmatmul.mubr.bf16.gmra.mrb[0].mxu0 %v2509
        %v2618 = vpop.f32.mrb[0].mxu0
        %v2619 = vadd.f32 %v2297, %v2618
        %v2620 = vpop.f32.mrb[0].mxu0
        %v2621 = vadd.f32 %v2299, %v2620
        %v2622 = vpop.f32.mrb[0].mxu0
        %v2623 = vadd.f32 %v2301, %v2622
        %v2624 = vpop.f32.mrb[0].mxu0
        %v2625 = vadd.f32 %v2303, %v2624
        %2626 = vmatprep.mubr.bf16.mxu0 0
        %2627 = vmatmul.mubr.bf16.gmra.mrb[0].mxu0 %v2512
        %v2628 = vpop.f32.mrb[0].mxu0
        %v2629 = vadd.f32 %v2307, %v2628
        %v2630 = vpop.f32.mrb[0].mxu0
        %v2631 = vadd.f32 %v2309, %v2630
        %v2632 = vpop.f32.mrb[0].mxu0
        %v2633 = vadd.f32 %v2311, %v2632
        %v2634 = vpop.f32.mrb[0].mxu0
        %v2635 = vadd.f32 %v2313, %v2634
        %2636 = vmatprep.mubr.bf16.mxu0 0
        %2637 = vmatmul.mubr.bf16.gmra.mrb[0].mxu0 %v2515
        %v2638 = vpop.f32.mrb[0].mxu0
        %v2639 = vadd.f32 %v2317, %v2638
        %v2640 = vpop.f32.mrb[0].mxu0
        %v2641 = vadd.f32 %v2319, %v2640
        %v2642 = vpop.f32.mrb[0].mxu0
        %v2643 = vadd.f32 %v2321, %v2642
        %v2644 = vpop.f32.mrb[0].mxu0
        %v2645 = vadd.f32 %v2323, %v2644
        %2646 = vmatprep.mubr.bf16.mxu0 0
        %2647 = vmatmul.mubr.bf16.gmra.mrb[0].mxu0 %v2518
        %v2648 = vpop.f32.mrb[0].mxu0
        %v2649 = vadd.f32 %v2327, %v2648
        %v2650 = vpop.f32.mrb[0].mxu0
        %v2651 = vadd.f32 %v2329, %v2650
        %v2652 = vpop.f32.mrb[0].mxu0
        %v2653 = vadd.f32 %v2331, %v2652
        %v2654 = vpop.f32.mrb[0].mxu0
        %v2655 = vadd.f32 %v2333, %v2654
        %2656 = vmatprep.mubr.bf16.mxu0 0
        %2657 = vmatmul.mubr.bf16.gmra.mrb[0].mxu0 %v2521
        %v2658 = vpop.f32.mrb[0].mxu0
        %v2659 = vadd.f32 %v2337, %v2658
        %v2660 = vpop.f32.mrb[0].mxu0
        %v2661 = vadd.f32 %v2339, %v2660
        %v2662 = vpop.f32.mrb[0].mxu0
        %v2663 = vadd.f32 %v2341, %v2662
        %v2664 = vpop.f32.mrb[0].mxu0
        %v2665 = vadd.f32 %v2343, %v2664
        %2666 = vmatprep.mubr.bf16.mxu0 0
        %2667 = vmatmul.mubr.bf16.gmra.mrb[0].mxu0 %v2524
        %v2668 = vpop.f32.mrb[0].mxu0
        %v2669 = vadd.f32 %v2347, %v2668
        %v2670 = vpop.f32.mrb[0].mxu0
        %v2671 = vadd.f32 %v2349, %v2670
        %v2672 = vpop.f32.mrb[0].mxu0
        %v2673 = vadd.f32 %v2351, %v2672
        %v2674 = vpop.f32.mrb[0].mxu0
        %v2675 = vadd.f32 %v2353, %v2674
        %2676 = vmatprep.mubr.bf16.mxu0 0
        %2677 = vmatmul.mubr.bf16.gmra.mrb[0].mxu0 %v2527
        %v2678 = vpop.f32.mrb[0].mxu0
        %v2679 = vadd.f32 %v2357, %v2678
        %v2680 = vpop.f32.mrb[0].mxu0
        %v2681 = vadd.f32 %v2359, %v2680
        %v2682 = vpop.f32.mrb[0].mxu0
        %v2683 = vadd.f32 %v2361, %v2682
        %v2684 = vpop.f32.mrb[0].mxu0
        %v2685 = vadd.f32 %v2363, %v2684
        %2686 = vmatprep.mubr.bf16.mxu0 0
        %2687 = vmatmul.mubr.bf16.gmra.mrb[0].mxu0 %v2530
        %v2688 = vpop.f32.mrb[0].mxu0
        %v2689 = vadd.f32 %v2367, %v2688
        %v2690 = vpop.f32.mrb[0].mxu0
        %v2691 = vadd.f32 %v2369, %v2690
        %v2692 = vpop.f32.mrb[0].mxu0
        %v2693 = vadd.f32 %v2371, %v2692
        %v2694 = vpop.f32.mrb[0].mxu0
        %v2695 = vadd.f32 %v2373, %v2694
        %2696 = vmatprep.mubr.bf16.mxu0 0
        %2697 = vmatmul.mubr.bf16.gmra.mrb[0].mxu0 %v2533
        %v2698 = vpop.f32.mrb[0].mxu0
        %v2699 = vadd.f32 %v2377, %v2698
        %v2700 = vpop.f32.mrb[0].mxu0
        %v2701 = vadd.f32 %v2379, %v2700
        %v2702 = vpop.f32.mrb[0].mxu0
        %v2703 = vadd.f32 %v2381, %v2702
        %v2704 = vpop.f32.mrb[0].mxu0
        %v2705 = vadd.f32 %v2383, %v2704
        %2706 = vmatprep.mubr.bf16.mxu0 0
        %2707 = vmatmul.mubr.bf16.gmra.mrb[0].mxu0 %v2536
        %v2708 = vpop.f32.mrb[0].mxu0
        %v2709 = vadd.f32 %v2387, %v2708
        %v2710 = vpop.f32.mrb[0].mxu0
        %v2711 = vadd.f32 %v2389, %v2710
        %v2712 = vpop.f32.mrb[0].mxu0
        %v2713 = vadd.f32 %v2391, %v2712
        %v2714 = vpop.f32.mrb[0].mxu0
        %v2715 = vadd.f32 %v2393, %v2714
        %2716 = vmatprep.mubr.bf16.mxu0 0
        %2717 = vmatmul.mubr.bf16.gmra.mrb[0].mxu0 %v2539
        %v2718 = vpop.f32.mrb[0].mxu0
        %v2719 = vadd.f32 %v2397, %v2718
        %v2720 = vpop.f32.mrb[0].mxu0
        %v2721 = vadd.f32 %v2399, %v2720
        %v2722 = vpop.f32.mrb[0].mxu0
        %v2723 = vadd.f32 %v2401, %v2722
        %v2724 = vpop.f32.mrb[0].mxu0
        %v2725 = vadd.f32 %v2403, %v2724
        %2726 = vmatprep.mubr.bf16.mxu0 0
        %2727 = vmatmul.mubr.bf16.gmra.mrb[0].mxu0 %v2542
        %v2728 = vpop.f32.mrb[0].mxu0
        %v2729 = vadd.f32 %v2407, %v2728
        %v2730 = vpop.f32.mrb[0].mxu0
        %v2731 = vadd.f32 %v2409, %v2730
        %v2732 = vpop.f32.mrb[0].mxu0
        %v2733 = vadd.f32 %v2411, %v2732
        %v2734 = vpop.f32.mrb[0].mxu0
        %v2735 = vadd.f32 %v2413, %v2734
        %2736 = vdwg.mxu0
        %v2737 = vld [vmem:[%s9] sm:$0x3]
        %v2739 = vlaneseq
        %v2740 = vshrl.u32 %v2739, 7
        %v2741 = vsub.s32 0, %v2740
        %v2742 = vrot.slane %v2737, %v2741
        %v2743 = vlaneseq
        %v2744 = vshrl.u32 %v2743, 7
        %v2745 = vsub.s32 1, %v2744
        %v2746 = vrot.slane %v2737, %v2745
        %v2749 = vadd.f32 %v2579, %v2742
        %v2750 = vadd.f32 %v2581, %v2746
        %v2751 = vadd.f32 %v2583, %v2742
        %v2752 = vadd.f32 %v2585, %v2746
        %v2753 = vadd.f32 %v2589, %v2742
        %v2754 = vadd.f32 %v2591, %v2746
        %v2755 = vadd.f32 %v2593, %v2742
        %v2756 = vadd.f32 %v2595, %v2746
        %v2757 = vadd.f32 %v2599, %v2742
        %v2758 = vadd.f32 %v2601, %v2746
        %v2759 = vadd.f32 %v2603, %v2742
        %v2760 = vadd.f32 %v2605, %v2746
        %v2761 = vadd.f32 %v2609, %v2742
        %v2762 = vadd.f32 %v2611, %v2746
        %v2763 = vadd.f32 %v2613, %v2742
        %v2764 = vadd.f32 %v2615, %v2746
        %v2765 = vadd.f32 %v2619, %v2742
        %v2766 = vadd.f32 %v2621, %v2746
        %v2767 = vadd.f32 %v2623, %v2742
        %v2768 = vadd.f32 %v2625, %v2746
        %v2769 = vadd.f32 %v2629, %v2742
        %v2770 = vadd.f32 %v2631, %v2746
        %v2771 = vadd.f32 %v2633, %v2742
        %v2772 = vadd.f32 %v2635, %v2746
        %v2773 = vadd.f32 %v2639, %v2742
        %v2774 = vadd.f32 %v2641, %v2746
        %v2775 = vadd.f32 %v2643, %v2742
        %v2776 = vadd.f32 %v2645, %v2746
        %v2777 = vadd.f32 %v2649, %v2742
        %v2778 = vadd.f32 %v2651, %v2746
        %v2779 = vadd.f32 %v2653, %v2742
        %v2780 = vadd.f32 %v2655, %v2746
        %v2781 = vadd.f32 %v2659, %v2742
        %v2782 = vadd.f32 %v2661, %v2746
        %v2783 = vadd.f32 %v2663, %v2742
        %v2784 = vadd.f32 %v2665, %v2746
        %v2785 = vadd.f32 %v2669, %v2742
        %v2786 = vadd.f32 %v2671, %v2746
        %v2787 = vadd.f32 %v2673, %v2742
        %v2788 = vadd.f32 %v2675, %v2746
        %v2789 = vadd.f32 %v2679, %v2742
        %v2790 = vadd.f32 %v2681, %v2746
        %v2791 = vadd.f32 %v2683, %v2742
        %v2792 = vadd.f32 %v2685, %v2746
        %v2793 = vadd.f32 %v2689, %v2742
        %v2794 = vadd.f32 %v2691, %v2746
        %v2795 = vadd.f32 %v2693, %v2742
        %v2796 = vadd.f32 %v2695, %v2746
        %v2797 = vadd.f32 %v2699, %v2742
        %v2798 = vadd.f32 %v2701, %v2746
        %v2799 = vadd.f32 %v2703, %v2742
        %v2800 = vadd.f32 %v2705, %v2746
        %v2801 = vadd.f32 %v2709, %v2742
        %v2802 = vadd.f32 %v2711, %v2746
        %v2803 = vadd.f32 %v2713, %v2742
        %v2804 = vadd.f32 %v2715, %v2746
        %v2805 = vadd.f32 %v2719, %v2742
        %v2806 = vadd.f32 %v2721, %v2746
        %v2807 = vadd.f32 %v2723, %v2742
        %v2808 = vadd.f32 %v2725, %v2746
        %v2809 = vadd.f32 %v2729, %v2742
        %v2810 = vadd.f32 %v2731, %v2746
        %v2811 = vadd.f32 %v2733, %v2742
        %v2812 = vadd.f32 %v2735, %v2746
        %vm2813 = vcmp.ge.f32.partialorder %v2749, 0.0
        %vm2814 = vcmp.ge.f32.partialorder %v2750, 0.0
        %vm2815 = vcmp.ge.f32.partialorder %v2751, 0.0
        %vm2816 = vcmp.ge.f32.partialorder %v2752, 0.0
        %vm2817 = vcmp.ge.f32.partialorder %v2753, 0.0
        %vm2818 = vcmp.ge.f32.partialorder %v2754, 0.0
        %vm2819 = vcmp.ge.f32.partialorder %v2755, 0.0
        %vm2820 = vcmp.ge.f32.partialorder %v2756, 0.0
        %vm2821 = vcmp.ge.f32.partialorder %v2757, 0.0
        %vm2822 = vcmp.ge.f32.partialorder %v2758, 0.0
        %vm2823 = vcmp.ge.f32.partialorder %v2759, 0.0
        %vm2824 = vcmp.ge.f32.partialorder %v2760, 0.0
        %vm2825 = vcmp.ge.f32.partialorder %v2761, 0.0
        %vm2826 = vcmp.ge.f32.partialorder %v2762, 0.0
        %vm2827 = vcmp.ge.f32.partialorder %v2763, 0.0
        %vm2828 = vcmp.ge.f32.partialorder %v2764, 0.0
        %vm2829 = vcmp.ge.f32.partialorder %v2765, 0.0
        %vm2830 = vcmp.ge.f32.partialorder %v2766, 0.0
        %vm2831 = vcmp.ge.f32.partialorder %v2767, 0.0
        %vm2832 = vcmp.ge.f32.partialorder %v2768, 0.0
        %vm2833 = vcmp.ge.f32.partialorder %v2769, 0.0
        %vm2834 = vcmp.ge.f32.partialorder %v2770, 0.0
        %vm2835 = vcmp.ge.f32.partialorder %v2771, 0.0
        %vm2836 = vcmp.ge.f32.partialorder %v2772, 0.0
        %vm2837 = vcmp.ge.f32.partialorder %v2773, 0.0
        %vm2838 = vcmp.ge.f32.partialorder %v2774, 0.0
        %vm2839 = vcmp.ge.f32.partialorder %v2775, 0.0
        %vm2840 = vcmp.ge.f32.partialorder %v2776, 0.0
        %vm2841 = vcmp.ge.f32.partialorder %v2777, 0.0
        %vm2842 = vcmp.ge.f32.partialorder %v2778, 0.0
        %vm2843 = vcmp.ge.f32.partialorder %v2779, 0.0
        %vm2844 = vcmp.ge.f32.partialorder %v2780, 0.0
        %vm2845 = vcmp.ge.f32.partialorder %v2781, 0.0
        %vm2846 = vcmp.ge.f32.partialorder %v2782, 0.0
        %vm2847 = vcmp.ge.f32.partialorder %v2783, 0.0
        %vm2848 = vcmp.ge.f32.partialorder %v2784, 0.0
        %vm2849 = vcmp.ge.f32.partialorder %v2785, 0.0
        %vm2850 = vcmp.ge.f32.partialorder %v2786, 0.0
        %vm2851 = vcmp.ge.f32.partialorder %v2787, 0.0
        %vm2852 = vcmp.ge.f32.partialorder %v2788, 0.0
        %vm2853 = vcmp.ge.f32.partialorder %v2789, 0.0
        %vm2854 = vcmp.ge.f32.partialorder %v2790, 0.0
        %vm2855 = vcmp.ge.f32.partialorder %v2791, 0.0
        %vm2856 = vcmp.ge.f32.partialorder %v2792, 0.0
        %vm2857 = vcmp.ge.f32.partialorder %v2793, 0.0
        %vm2858 = vcmp.ge.f32.partialorder %v2794, 0.0
        %vm2859 = vcmp.ge.f32.partialorder %v2795, 0.0
        %vm2860 = vcmp.ge.f32.partialorder %v2796, 0.0
        %vm2861 = vcmp.ge.f32.partialorder %v2797, 0.0
        %vm2862 = vcmp.ge.f32.partialorder %v2798, 0.0
        %vm2863 = vcmp.ge.f32.partialorder %v2799, 0.0
        %vm2864 = vcmp.ge.f32.partialorder %v2800, 0.0
        %vm2865 = vcmp.ge.f32.partialorder %v2801, 0.0
        %vm2866 = vcmp.ge.f32.partialorder %v2802, 0.0
        %vm2867 = vcmp.ge.f32.partialorder %v2803, 0.0
        %vm2868 = vcmp.ge.f32.partialorder %v2804, 0.0
        %vm2869 = vcmp.ge.f32.partialorder %v2805, 0.0
        %vm2870 = vcmp.ge.f32.partialorder %v2806, 0.0
        %vm2871 = vcmp.ge.f32.partialorder %v2807, 0.0
        %vm2872 = vcmp.ge.f32.partialorder %v2808, 0.0
        %vm2873 = vcmp.ge.f32.partialorder %v2809, 0.0
        %vm2874 = vcmp.ge.f32.partialorder %v2810, 0.0
        %vm2875 = vcmp.ge.f32.partialorder %v2811, 0.0
        %vm2876 = vcmp.ge.f32.partialorder %v2812, 0.0
        %v2877 = vmul.f32 %v2749, 0.01
        %v2878 = vmul.f32 %v2750, 0.01
        %v2879 = vmul.f32 %v2751, 0.01
        %v2880 = vmul.f32 %v2752, 0.01
        %v2881 = vmul.f32 %v2753, 0.01
        %v2882 = vmul.f32 %v2754, 0.01
        %v2883 = vmul.f32 %v2755, 0.01
        %v2884 = vmul.f32 %v2756, 0.01
        %v2885 = vmul.f32 %v2757, 0.01
        %v2886 = vmul.f32 %v2758, 0.01
        %v2887 = vmul.f32 %v2759, 0.01
        %v2888 = vmul.f32 %v2760, 0.01
        %v2889 = vmul.f32 %v2761, 0.01
        %v2890 = vmul.f32 %v2762, 0.01
        %v2891 = vmul.f32 %v2763, 0.01
        %v2892 = vmul.f32 %v2764, 0.01
        %v2893 = vmul.f32 %v2765, 0.01
        %v2894 = vmul.f32 %v2766, 0.01
        %v2895 = vmul.f32 %v2767, 0.01
        %v2896 = vmul.f32 %v2768, 0.01
        %v2897 = vmul.f32 %v2769, 0.01
        %v2898 = vmul.f32 %v2770, 0.01
        %v2899 = vmul.f32 %v2771, 0.01
        %v2900 = vmul.f32 %v2772, 0.01
        %v2901 = vmul.f32 %v2773, 0.01
        %v2902 = vmul.f32 %v2774, 0.01
        %v2903 = vmul.f32 %v2775, 0.01
        %v2904 = vmul.f32 %v2776, 0.01
        %v2905 = vmul.f32 %v2777, 0.01
        %v2906 = vmul.f32 %v2778, 0.01
        %v2907 = vmul.f32 %v2779, 0.01
        %v2908 = vmul.f32 %v2780, 0.01
        %v2909 = vmul.f32 %v2781, 0.01
        %v2910 = vmul.f32 %v2782, 0.01
        %v2911 = vmul.f32 %v2783, 0.01
        %v2912 = vmul.f32 %v2784, 0.01
        %v2913 = vmul.f32 %v2785, 0.01
        %v2914 = vmul.f32 %v2786, 0.01
        %v2915 = vmul.f32 %v2787, 0.01
        %v2916 = vmul.f32 %v2788, 0.01
        %v2917 = vmul.f32 %v2789, 0.01
        %v2918 = vmul.f32 %v2790, 0.01
        %v2919 = vmul.f32 %v2791, 0.01
        %v2920 = vmul.f32 %v2792, 0.01
        %v2921 = vmul.f32 %v2793, 0.01
        %v2922 = vmul.f32 %v2794, 0.01
        %v2923 = vmul.f32 %v2795, 0.01
        %v2924 = vmul.f32 %v2796, 0.01
        %v2925 = vmul.f32 %v2797, 0.01
        %v2926 = vmul.f32 %v2798, 0.01
        %v2927 = vmul.f32 %v2799, 0.01
        %v2928 = vmul.f32 %v2800, 0.01
        %v2929 = vmul.f32 %v2801, 0.01
        %v2930 = vmul.f32 %v2802, 0.01
        %v2931 = vmul.f32 %v2803, 0.01
        %v2932 = vmul.f32 %v2804, 0.01
        %v2933 = vmul.f32 %v2805, 0.01
        %v2934 = vmul.f32 %v2806, 0.01
        %v2935 = vmul.f32 %v2807, 0.01
        %v2936 = vmul.f32 %v2808, 0.01
        %v2937 = vmul.f32 %v2809, 0.01
        %v2938 = vmul.f32 %v2810, 0.01
        %v2939 = vmul.f32 %v2811, 0.01
        %v2940 = vmul.f32 %v2812, 0.01
        %v2941 = vsel %vm2813, %v2749, %v2877
        %v2942 = vsel %vm2814, %v2750, %v2878
        %v2943 = vsel %vm2815, %v2751, %v2879
        %v2944 = vsel %vm2816, %v2752, %v2880
        %v2945 = vsel %vm2817, %v2753, %v2881
        %v2946 = vsel %vm2818, %v2754, %v2882
        %v2947 = vsel %vm2819, %v2755, %v2883
        %v2948 = vsel %vm2820, %v2756, %v2884
        %v2949 = vsel %vm2821, %v2757, %v2885
        %v2950 = vsel %vm2822, %v2758, %v2886
        %v2951 = vsel %vm2823, %v2759, %v2887
        %v2952 = vsel %vm2824, %v2760, %v2888
        %v2953 = vsel %vm2825, %v2761, %v2889
        %v2954 = vsel %vm2826, %v2762, %v2890
        %v2955 = vsel %vm2827, %v2763, %v2891
        %v2956 = vsel %vm2828, %v2764, %v2892
        %v2957 = vsel %vm2829, %v2765, %v2893
        %v2958 = vsel %vm2830, %v2766, %v2894
        %v2959 = vsel %vm2831, %v2767, %v2895
        %v2960 = vsel %vm2832, %v2768, %v2896
        %v2961 = vsel %vm2833, %v2769, %v2897
        %v2962 = vsel %vm2834, %v2770, %v2898
        %v2963 = vsel %vm2835, %v2771, %v2899
        %v2964 = vsel %vm2836, %v2772, %v2900
        %v2965 = vsel %vm2837, %v2773, %v2901
        %v2966 = vsel %vm2838, %v2774, %v2902
        %v2967 = vsel %vm2839, %v2775, %v2903
        %v2968 = vsel %vm2840, %v2776, %v2904
        %v2969 = vsel %vm2841, %v2777, %v2905
        %v2970 = vsel %vm2842, %v2778, %v2906
        %v2971 = vsel %vm2843, %v2779, %v2907
        %v2972 = vsel %vm2844, %v2780, %v2908
        %v2973 = vsel %vm2845, %v2781, %v2909
        %v2974 = vsel %vm2846, %v2782, %v2910
        %v2975 = vsel %vm2847, %v2783, %v2911
        %v2976 = vsel %vm2848, %v2784, %v2912
        %v2977 = vsel %vm2849, %v2785, %v2913
        %v2978 = vsel %vm2850, %v2786, %v2914
        %v2979 = vsel %vm2851, %v2787, %v2915
        %v2980 = vsel %vm2852, %v2788, %v2916
        %v2981 = vsel %vm2853, %v2789, %v2917
        %v2982 = vsel %vm2854, %v2790, %v2918
        %v2983 = vsel %vm2855, %v2791, %v2919
        %v2984 = vsel %vm2856, %v2792, %v2920
        %v2985 = vsel %vm2857, %v2793, %v2921
        %v2986 = vsel %vm2858, %v2794, %v2922
        %v2987 = vsel %vm2859, %v2795, %v2923
        %v2988 = vsel %vm2860, %v2796, %v2924
        %v2989 = vsel %vm2861, %v2797, %v2925
        %v2990 = vsel %vm2862, %v2798, %v2926
        %v2991 = vsel %vm2863, %v2799, %v2927
        %v2992 = vsel %vm2864, %v2800, %v2928
        %v2993 = vsel %vm2865, %v2801, %v2929
        %v2994 = vsel %vm2866, %v2802, %v2930
        %v2995 = vsel %vm2867, %v2803, %v2931
        %v2996 = vsel %vm2868, %v2804, %v2932
        %v2997 = vsel %vm2869, %v2805, %v2933
        %v2998 = vsel %vm2870, %v2806, %v2934
        %v2999 = vsel %vm2871, %v2807, %v2935
        %v3000 = vsel %vm2872, %v2808, %v2936
        %v3001 = vsel %vm2873, %v2809, %v2937
        %v3002 = vsel %vm2874, %v2810, %v2938
        %v3003 = vsel %vm2875, %v2811, %v2939
        %v3004 = vsel %vm2876, %v2812, %v2940
        %v3005 = vpack.c.bf16 %v2943, %v2941
        %v3006 = vpack.c.bf16 %v2944, %v2942
        %v3007 = vpack.c.bf16 %v2947, %v2945
        %v3008 = vpack.c.bf16 %v2948, %v2946
        %v3009 = vpack.c.bf16 %v2951, %v2949
        %v3010 = vpack.c.bf16 %v2952, %v2950
        %v3011 = vpack.c.bf16 %v2955, %v2953
        %v3012 = vpack.c.bf16 %v2956, %v2954
        %v3013 = vpack.c.bf16 %v2959, %v2957
        %v3014 = vpack.c.bf16 %v2960, %v2958
        %v3015 = vpack.c.bf16 %v2963, %v2961
        %v3016 = vpack.c.bf16 %v2964, %v2962
        %v3017 = vpack.c.bf16 %v2967, %v2965
        %v3018 = vpack.c.bf16 %v2968, %v2966
        %v3019 = vpack.c.bf16 %v2971, %v2969
        %v3020 = vpack.c.bf16 %v2972, %v2970
        %v3021 = vpack.c.bf16 %v2975, %v2973
        %v3022 = vpack.c.bf16 %v2976, %v2974
        %v3023 = vpack.c.bf16 %v2979, %v2977
        %v3024 = vpack.c.bf16 %v2980, %v2978
        %v3025 = vpack.c.bf16 %v2983, %v2981
        %v3026 = vpack.c.bf16 %v2984, %v2982
        %v3027 = vpack.c.bf16 %v2987, %v2985
        %v3028 = vpack.c.bf16 %v2988, %v2986
        %v3029 = vpack.c.bf16 %v2991, %v2989
        %v3030 = vpack.c.bf16 %v2992, %v2990
        %v3031 = vpack.c.bf16 %v2995, %v2993
        %v3032 = vpack.c.bf16 %v2996, %v2994
        %v3033 = vpack.c.bf16 %v2999, %v2997
        %v3034 = vpack.c.bf16 %v3000, %v2998
        %v3035 = vpack.c.bf16 %v3003, %v3001
        %v3036 = vpack.c.bf16 %v3004, %v3002
        %v3037 = vld [vmem:[%s10] sm:$0xff]
        %v3038 = vld [vmem:[%s10 + $0x8] sm:$0xff]
        %v3039 = vld [vmem:[%s10 + $0x10] sm:$0xff]
        %v3040 = vld [vmem:[%s10 + $0x18] sm:$0xff]
        %v3041 = vld [vmem:[%s10 + $0x20] sm:$0xff]
        %v3042 = vld [vmem:[%s10 + $0x28] sm:$0xff]
        %v3043 = vld [vmem:[%s10 + $0x30] sm:$0xff]
        %v3044 = vld [vmem:[%s10 + $0x38] sm:$0xff]
        %v3045 = vld [vmem:[%s10 + $0x40] sm:$0xff]
        %v3046 = vld [vmem:[%s10 + $0x48] sm:$0xff]
        %v3047 = vld [vmem:[%s10 + $0x50] sm:$0xff]
        %v3048 = vld [vmem:[%s10 + $0x58] sm:$0xff]
        %v3049 = vld [vmem:[%s10 + $0x60] sm:$0xff]
        %v3050 = vld [vmem:[%s10 + $0x68] sm:$0xff]
        %v3051 = vld [vmem:[%s10 + $0x70] sm:$0xff]
        %v3052 = vld [vmem:[%s10 + $0x78] sm:$0xff]
        %v3053 = vld [vmem:[%s10 + $0x80] sm:$0xff]
        %v3054 = vld [vmem:[%s10 + $0x88] sm:$0xff]
        %v3055 = vld [vmem:[%s10 + $0x90] sm:$0xff]
        %v3056 = vld [vmem:[%s10 + $0x98] sm:$0xff]
        %v3057 = vld [vmem:[%s10 + $0xa0] sm:$0xff]
        %v3058 = vld [vmem:[%s10 + $0xa8] sm:$0xff]
        %v3059 = vld [vmem:[%s10 + $0xb0] sm:$0xff]
        %v3060 = vld [vmem:[%s10 + $0xb8] sm:$0xff]
        %v3061 = vld [vmem:[%s10 + $0xc0] sm:$0xff]
        %v3062 = vld [vmem:[%s10 + $0xc8] sm:$0xff]
        %v3063 = vld [vmem:[%s10 + $0xd0] sm:$0xff]
        %v3064 = vld [vmem:[%s10 + $0xd8] sm:$0xff]
        %v3065 = vld [vmem:[%s10 + $0xe0] sm:$0xff]
        %v3066 = vld [vmem:[%s10 + $0xe8] sm:$0xff]
        %v3067 = vld [vmem:[%s10 + $0xf0] sm:$0xff]
        %v3068 = vld [vmem:[%s10 + $0xf8] sm:$0xff]
        %v3069 = vld [vmem:[%s11] sm:$0x3]
        %v3071 = vlaneseq
        %v3072 = vshrl.u32 %v3071, 7
        %v3073 = vsub.s32 0, %v3072
        %v3074 = vrot.slane %v3069, %v3073
        %v3075 = vlaneseq
        %v3076 = vshrl.u32 %v3075, 7
        %v3077 = vsub.s32 1, %v3076
        %v3078 = vrot.slane %v3069, %v3077
        %v3113 = vunpack.c.l.b16 %v3037
        %v3114 = vunpack.c.h.b16 %v3037
        %v3115 = vunpack.c.l.b16 %v3038
        %v3116 = vunpack.c.h.b16 %v3038
        %v3117 = vunpack.c.l.b16 %v3039
        %v3118 = vunpack.c.h.b16 %v3039
        %v3119 = vunpack.c.l.b16 %v3040
        %v3120 = vunpack.c.h.b16 %v3040
        %v3121 = vunpack.c.l.b16 %v3041
        %v3122 = vunpack.c.h.b16 %v3041
        %v3123 = vunpack.c.l.b16 %v3042
        %v3124 = vunpack.c.h.b16 %v3042
        %v3125 = vunpack.c.l.b16 %v3043
        %v3126 = vunpack.c.h.b16 %v3043
        %v3127 = vunpack.c.l.b16 %v3044
        %v3128 = vunpack.c.h.b16 %v3044
        %v3129 = vunpack.c.l.b16 %v3045
        %v3130 = vunpack.c.h.b16 %v3045
        %v3131 = vunpack.c.l.b16 %v3046
        %v3132 = vunpack.c.h.b16 %v3046
        %v3133 = vunpack.c.l.b16 %v3047
        %v3134 = vunpack.c.h.b16 %v3047
        %v3135 = vunpack.c.l.b16 %v3048
        %v3136 = vunpack.c.h.b16 %v3048
        %v3137 = vunpack.c.l.b16 %v3049
        %v3138 = vunpack.c.h.b16 %v3049
        %v3139 = vunpack.c.l.b16 %v3050
        %v3140 = vunpack.c.h.b16 %v3050
        %v3141 = vunpack.c.l.b16 %v3051
        %v3142 = vunpack.c.h.b16 %v3051
        %v3143 = vunpack.c.l.b16 %v3052
        %v3144 = vunpack.c.h.b16 %v3052
        %v3145 = vunpack.c.l.b16 %v3053
        %v3146 = vunpack.c.h.b16 %v3053
        %v3147 = vunpack.c.l.b16 %v3054
        %v3148 = vunpack.c.h.b16 %v3054
        %v3149 = vunpack.c.l.b16 %v3055
        %v3150 = vunpack.c.h.b16 %v3055
        %v3151 = vunpack.c.l.b16 %v3056
        %v3152 = vunpack.c.h.b16 %v3056
        %v3153 = vunpack.c.l.b16 %v3057
        %v3154 = vunpack.c.h.b16 %v3057
        %v3155 = vunpack.c.l.b16 %v3058
        %v3156 = vunpack.c.h.b16 %v3058
        %v3157 = vunpack.c.l.b16 %v3059
        %v3158 = vunpack.c.h.b16 %v3059
        %v3159 = vunpack.c.l.b16 %v3060
        %v3160 = vunpack.c.h.b16 %v3060
        %v3161 = vunpack.c.l.b16 %v3061
        %v3162 = vunpack.c.h.b16 %v3061
        %v3163 = vunpack.c.l.b16 %v3062
        %v3164 = vunpack.c.h.b16 %v3062
        %v3165 = vunpack.c.l.b16 %v3063
        %v3166 = vunpack.c.h.b16 %v3063
        %v3167 = vunpack.c.l.b16 %v3064
        %v3168 = vunpack.c.h.b16 %v3064
        %v3169 = vunpack.c.l.b16 %v3065
        %v3170 = vunpack.c.h.b16 %v3065
        %v3171 = vunpack.c.l.b16 %v3066
        %v3172 = vunpack.c.h.b16 %v3066
        %v3173 = vunpack.c.l.b16 %v3067
        %v3174 = vunpack.c.h.b16 %v3067
        %v3175 = vunpack.c.l.b16 %v3068
        %v3176 = vunpack.c.h.b16 %v3068
        %v3177 = vpack.c.b16 %v3115, %v3113
        %v3178 = vpack.c.b16 %v3116, %v3114
        %v3179 = vpack.c.b16 %v3119, %v3117
        %v3180 = vpack.c.b16 %v3120, %v3118
        %v3181 = vpack.c.b16 %v3123, %v3121
        %v3182 = vpack.c.b16 %v3124, %v3122
        %v3183 = vpack.c.b16 %v3127, %v3125
        %v3184 = vpack.c.b16 %v3128, %v3126
        %v3185 = vpack.c.b16 %v3131, %v3129
        %v3186 = vpack.c.b16 %v3132, %v3130
        %v3187 = vpack.c.b16 %v3135, %v3133
        %v3188 = vpack.c.b16 %v3136, %v3134
        %v3189 = vpack.c.b16 %v3139, %v3137
        %v3190 = vpack.c.b16 %v3140, %v3138
        %v3191 = vpack.c.b16 %v3143, %v3141
        %v3192 = vpack.c.b16 %v3144, %v3142
        %v3193 = vpack.c.b16 %v3147, %v3145
        %v3194 = vpack.c.b16 %v3148, %v3146
        %v3195 = vpack.c.b16 %v3151, %v3149
        %v3196 = vpack.c.b16 %v3152, %v3150
        %v3197 = vpack.c.b16 %v3155, %v3153
        %v3198 = vpack.c.b16 %v3156, %v3154
        %v3199 = vpack.c.b16 %v3159, %v3157
        %v3200 = vpack.c.b16 %v3160, %v3158
        %v3201 = vpack.c.b16 %v3163, %v3161
        %v3202 = vpack.c.b16 %v3164, %v3162
        %v3203 = vpack.c.b16 %v3167, %v3165
        %v3204 = vpack.c.b16 %v3168, %v3166
        %v3205 = vpack.c.b16 %v3171, %v3169
        %v3206 = vpack.c.b16 %v3172, %v3170
        %v3207 = vpack.c.b16 %v3175, %v3173
        %v3208 = vpack.c.b16 %v3176, %v3174
        %3241 = vmatprep.subr.bf16.mxu0 %v3178
        %3242 = vmatpush1.bf16.msra.mxu0 %v3177
        %3243 = vmatprep.subr.bf16.mxu0 %v3180
        %3244 = vmatpush1.bf16.msra.mxu0 %v3179
        %3245 = vmatprep.subr.bf16.mxu0 %v3182
        %3246 = vmatpush1.bf16.msra.mxu0 %v3181
        %3247 = vmatprep.subr.bf16.mxu0 %v3184
        %3248 = vmatpush1.bf16.msra.mxu0 %v3183
        %3249 = vmatprep.subr.bf16.mxu0 %v3186
        %3250 = vmatpush1.bf16.msra.mxu0 %v3185
        %3251 = vmatprep.subr.bf16.mxu0 %v3188
        %3252 = vmatpush1.bf16.msra.mxu0 %v3187
        %3253 = vmatprep.subr.bf16.mxu0 %v3190
        %3254 = vmatpush1.bf16.msra.mxu0 %v3189
        %3255 = vmatprep.subr.bf16.mxu0 %v3192
        %3256 = vmatpush1.bf16.msra.mxu0 %v3191
        %3257 = vmatprep.subr.bf16.mxu0 %v3194
        %3258 = vmatpush1.bf16.msra.mxu0 %v3193
        %3259 = vmatprep.subr.bf16.mxu0 %v3196
        %3260 = vmatpush1.bf16.msra.mxu0 %v3195
        %3261 = vmatprep.subr.bf16.mxu0 %v3198
        %3262 = vmatpush1.bf16.msra.mxu0 %v3197
        %3263 = vmatprep.subr.bf16.mxu0 %v3200
        %3264 = vmatpush1.bf16.msra.mxu0 %v3199
        %3265 = vmatprep.subr.bf16.mxu0 %v3202
        %3266 = vmatpush1.bf16.msra.mxu0 %v3201
        %3267 = vmatprep.subr.bf16.mxu0 %v3204
        %3268 = vmatpush1.bf16.msra.mxu0 %v3203
        %3269 = vmatprep.subr.bf16.mxu0 %v3206
        %3270 = vmatpush1.bf16.msra.mxu0 %v3205
        %3271 = vmatprep.subr.bf16.mxu0 %v3208
        %3272 = vmatpush1.bf16.msra.mxu0 %v3207
        %3273 = vmatprep.mubr.bf16.mxu0 %v3006
        %3274 = vmatmul.mubr.bf16.gmra.mrb[0].mxu0 %v3005
        %v3275 = vpop.f32.mrb[0].mxu0
        %v3276 = vadd.f32 %v3074, %v3275
        %v3277 = vpop.f32.mrb[0].mxu0
        %v3278 = vadd.f32 %v3078, %v3277
        %v3279 = vpop.f32.mrb[0].mxu0
        %v3280 = vadd.f32 %v3074, %v3279
        %v3281 = vpop.f32.mrb[0].mxu0
        %v3282 = vadd.f32 %v3078, %v3281
        %3283 = vmatprep.mubr.bf16.mxu0 %v3008
        %3284 = vmatmul.mubr.bf16.gmra.mrb[0].mxu0 %v3007
        %v3285 = vpop.f32.mrb[0].mxu0
        %v3286 = vadd.f32 %v3074, %v3285
        %v3287 = vpop.f32.mrb[0].mxu0
        %v3288 = vadd.f32 %v3078, %v3287
        %v3289 = vpop.f32.mrb[0].mxu0
        %v3290 = vadd.f32 %v3074, %v3289
        %v3291 = vpop.f32.mrb[0].mxu0
        %v3292 = vadd.f32 %v3078, %v3291
        %3293 = vmatprep.mubr.bf16.mxu0 %v3010
        %3294 = vmatmul.mubr.bf16.gmra.mrb[0].mxu0 %v3009
        %v3295 = vpop.f32.mrb[0].mxu0
        %v3296 = vadd.f32 %v3074, %v3295
        %v3297 = vpop.f32.mrb[0].mxu0
        %v3298 = vadd.f32 %v3078, %v3297
        %v3299 = vpop.f32.mrb[0].mxu0
        %v3300 = vadd.f32 %v3074, %v3299
        %v3301 = vpop.f32.mrb[0].mxu0
        %v3302 = vadd.f32 %v3078, %v3301
        %3303 = vmatprep.mubr.bf16.mxu0 %v3012
        %3304 = vmatmul.mubr.bf16.gmra.mrb[0].mxu0 %v3011
        %v3305 = vpop.f32.mrb[0].mxu0
        %v3306 = vadd.f32 %v3074, %v3305
        %v3307 = vpop.f32.mrb[0].mxu0
        %v3308 = vadd.f32 %v3078, %v3307
        %v3309 = vpop.f32.mrb[0].mxu0
        %v3310 = vadd.f32 %v3074, %v3309
        %v3311 = vpop.f32.mrb[0].mxu0
        %v3312 = vadd.f32 %v3078, %v3311
        %3313 = vmatprep.mubr.bf16.mxu0 %v3014
        %3314 = vmatmul.mubr.bf16.gmra.mrb[0].mxu0 %v3013
        %v3315 = vpop.f32.mrb[0].mxu0
        %v3316 = vadd.f32 %v3074, %v3315
        %v3317 = vpop.f32.mrb[0].mxu0
        %v3318 = vadd.f32 %v3078, %v3317
        %v3319 = vpop.f32.mrb[0].mxu0
        %v3320 = vadd.f32 %v3074, %v3319
        %v3321 = vpop.f32.mrb[0].mxu0
        %v3322 = vadd.f32 %v3078, %v3321
        %3323 = vmatprep.mubr.bf16.mxu0 %v3016
        %3324 = vmatmul.mubr.bf16.gmra.mrb[0].mxu0 %v3015
        %v3325 = vpop.f32.mrb[0].mxu0
        %v3326 = vadd.f32 %v3074, %v3325
        %v3327 = vpop.f32.mrb[0].mxu0
        %v3328 = vadd.f32 %v3078, %v3327
        %v3329 = vpop.f32.mrb[0].mxu0
        %v3330 = vadd.f32 %v3074, %v3329
        %v3331 = vpop.f32.mrb[0].mxu0
        %v3332 = vadd.f32 %v3078, %v3331
        %3333 = vmatprep.mubr.bf16.mxu0 %v3018
        %3334 = vmatmul.mubr.bf16.gmra.mrb[0].mxu0 %v3017
        %v3335 = vpop.f32.mrb[0].mxu0
        %v3336 = vadd.f32 %v3074, %v3335
        %v3337 = vpop.f32.mrb[0].mxu0
        %v3338 = vadd.f32 %v3078, %v3337
        %v3339 = vpop.f32.mrb[0].mxu0
        %v3340 = vadd.f32 %v3074, %v3339
        %v3341 = vpop.f32.mrb[0].mxu0
        %v3342 = vadd.f32 %v3078, %v3341
        %3343 = vmatprep.mubr.bf16.mxu0 %v3020
        %3344 = vmatmul.mubr.bf16.gmra.mrb[0].mxu0 %v3019
        %v3345 = vpop.f32.mrb[0].mxu0
        %v3346 = vadd.f32 %v3074, %v3345
        %v3347 = vpop.f32.mrb[0].mxu0
        %v3348 = vadd.f32 %v3078, %v3347
        %v3349 = vpop.f32.mrb[0].mxu0
        %v3350 = vadd.f32 %v3074, %v3349
        %v3351 = vpop.f32.mrb[0].mxu0
        %v3352 = vadd.f32 %v3078, %v3351
        %3353 = vmatprep.mubr.bf16.mxu0 %v3022
        %3354 = vmatmul.mubr.bf16.gmra.mrb[0].mxu0 %v3021
        %v3355 = vpop.f32.mrb[0].mxu0
        %v3356 = vadd.f32 %v3074, %v3355
        %v3357 = vpop.f32.mrb[0].mxu0
        %v3358 = vadd.f32 %v3078, %v3357
        %v3359 = vpop.f32.mrb[0].mxu0
        %v3360 = vadd.f32 %v3074, %v3359
        %v3361 = vpop.f32.mrb[0].mxu0
        %v3362 = vadd.f32 %v3078, %v3361
        %3363 = vmatprep.mubr.bf16.mxu0 %v3024
        %3364 = vmatmul.mubr.bf16.gmra.mrb[0].mxu0 %v3023
        %v3365 = vpop.f32.mrb[0].mxu0
        %v3366 = vadd.f32 %v3074, %v3365
        %v3367 = vpop.f32.mrb[0].mxu0
        %v3368 = vadd.f32 %v3078, %v3367
        %v3369 = vpop.f32.mrb[0].mxu0
        %v3370 = vadd.f32 %v3074, %v3369
        %v3371 = vpop.f32.mrb[0].mxu0
        %v3372 = vadd.f32 %v3078, %v3371
        %3373 = vmatprep.mubr.bf16.mxu0 %v3026
        %3374 = vmatmul.mubr.bf16.gmra.mrb[0].mxu0 %v3025
        %v3375 = vpop.f32.mrb[0].mxu0
        %v3376 = vadd.f32 %v3074, %v3375
        %v3377 = vpop.f32.mrb[0].mxu0
        %v3378 = vadd.f32 %v3078, %v3377
        %v3379 = vpop.f32.mrb[0].mxu0
        %v3380 = vadd.f32 %v3074, %v3379
        %v3381 = vpop.f32.mrb[0].mxu0
        %v3382 = vadd.f32 %v3078, %v3381
        %3383 = vmatprep.mubr.bf16.mxu0 %v3028
        %3384 = vmatmul.mubr.bf16.gmra.mrb[0].mxu0 %v3027
        %v3385 = vpop.f32.mrb[0].mxu0
        %v3386 = vadd.f32 %v3074, %v3385
        %v3387 = vpop.f32.mrb[0].mxu0
        %v3388 = vadd.f32 %v3078, %v3387
        %v3389 = vpop.f32.mrb[0].mxu0
        %v3390 = vadd.f32 %v3074, %v3389
        %v3391 = vpop.f32.mrb[0].mxu0
        %v3392 = vadd.f32 %v3078, %v3391
        %3393 = vmatprep.mubr.bf16.mxu0 %v3030
        %3394 = vmatmul.mubr.bf16.gmra.mrb[0].mxu0 %v3029
        %v3395 = vpop.f32.mrb[0].mxu0
        %v3396 = vadd.f32 %v3074, %v3395
        %v3397 = vpop.f32.mrb[0].mxu0
        %v3398 = vadd.f32 %v3078, %v3397
        %v3399 = vpop.f32.mrb[0].mxu0
        %v3400 = vadd.f32 %v3074, %v3399
        %v3401 = vpop.f32.mrb[0].mxu0
        %v3402 = vadd.f32 %v3078, %v3401
        %3403 = vmatprep.mubr.bf16.mxu0 %v3032
        %3404 = vmatmul.mubr.bf16.gmra.mrb[0].mxu0 %v3031
        %v3405 = vpop.f32.mrb[0].mxu0
        %v3406 = vadd.f32 %v3074, %v3405
        %v3407 = vpop.f32.mrb[0].mxu0
        %v3408 = vadd.f32 %v3078, %v3407
        %v3409 = vpop.f32.mrb[0].mxu0
        %v3410 = vadd.f32 %v3074, %v3409
        %v3411 = vpop.f32.mrb[0].mxu0
        %v3412 = vadd.f32 %v3078, %v3411
        %3413 = vmatprep.mubr.bf16.mxu0 %v3034
        %3414 = vmatmul.mubr.bf16.gmra.mrb[0].mxu0 %v3033
        %v3415 = vpop.f32.mrb[0].mxu0
        %v3416 = vadd.f32 %v3074, %v3415
        %v3417 = vpop.f32.mrb[0].mxu0
        %v3418 = vadd.f32 %v3078, %v3417
        %v3419 = vpop.f32.mrb[0].mxu0
        %v3420 = vadd.f32 %v3074, %v3419
        %v3421 = vpop.f32.mrb[0].mxu0
        %v3422 = vadd.f32 %v3078, %v3421
        %3423 = vmatprep.mubr.bf16.mxu0 %v3036
        %3424 = vmatmul.mubr.bf16.gmra.mrb[0].mxu0 %v3035
        %v3425 = vpop.f32.mrb[0].mxu0
        %v3426 = vadd.f32 %v3074, %v3425
        %v3427 = vpop.f32.mrb[0].mxu0
        %v3428 = vadd.f32 %v3078, %v3427
        %v3429 = vpop.f32.mrb[0].mxu0
        %v3430 = vadd.f32 %v3074, %v3429
        %v3431 = vpop.f32.mrb[0].mxu0
        %v3432 = vadd.f32 %v3078, %v3431
        %3433 = vdwg.mxu0
        %vm3434 = vcmp.ge.f32.partialorder %v3276, 0.0
        %vm3435 = vcmp.ge.f32.partialorder %v3278, 0.0
        %vm3436 = vcmp.ge.f32.partialorder %v3280, 0.0
        %vm3437 = vcmp.ge.f32.partialorder %v3282, 0.0
        %vm3438 = vcmp.ge.f32.partialorder %v3286, 0.0
        %vm3439 = vcmp.ge.f32.partialorder %v3288, 0.0
        %vm3440 = vcmp.ge.f32.partialorder %v3290, 0.0
        %vm3441 = vcmp.ge.f32.partialorder %v3292, 0.0
        %vm3442 = vcmp.ge.f32.partialorder %v3296, 0.0
        %vm3443 = vcmp.ge.f32.partialorder %v3298, 0.0
        %vm3444 = vcmp.ge.f32.partialorder %v3300, 0.0
        %vm3445 = vcmp.ge.f32.partialorder %v3302, 0.0
        %vm3446 = vcmp.ge.f32.partialorder %v3306, 0.0
        %vm3447 = vcmp.ge.f32.partialorder %v3308, 0.0
        %vm3448 = vcmp.ge.f32.partialorder %v3310, 0.0
        %vm3449 = vcmp.ge.f32.partialorder %v3312, 0.0
        %vm3450 = vcmp.ge.f32.partialorder %v3316, 0.0
        %vm3451 = vcmp.ge.f32.partialorder %v3318, 0.0
        %vm3452 = vcmp.ge.f32.partialorder %v3320, 0.0
        %vm3453 = vcmp.ge.f32.partialorder %v3322, 0.0
        %vm3454 = vcmp.ge.f32.partialorder %v3326, 0.0
        %vm3455 = vcmp.ge.f32.partialorder %v3328, 0.0
        %vm3456 = vcmp.ge.f32.partialorder %v3330, 0.0
        %vm3457 = vcmp.ge.f32.partialorder %v3332, 0.0
        %vm3458 = vcmp.ge.f32.partialorder %v3336, 0.0
        %vm3459 = vcmp.ge.f32.partialorder %v3338, 0.0
        %vm3460 = vcmp.ge.f32.partialorder %v3340, 0.0
        %vm3461 = vcmp.ge.f32.partialorder %v3342, 0.0
        %vm3462 = vcmp.ge.f32.partialorder %v3346, 0.0
        %vm3463 = vcmp.ge.f32.partialorder %v3348, 0.0
        %vm3464 = vcmp.ge.f32.partialorder %v3350, 0.0
        %vm3465 = vcmp.ge.f32.partialorder %v3352, 0.0
        %vm3466 = vcmp.ge.f32.partialorder %v3356, 0.0
        %vm3467 = vcmp.ge.f32.partialorder %v3358, 0.0
        %vm3468 = vcmp.ge.f32.partialorder %v3360, 0.0
        %vm3469 = vcmp.ge.f32.partialorder %v3362, 0.0
        %vm3470 = vcmp.ge.f32.partialorder %v3366, 0.0
        %vm3471 = vcmp.ge.f32.partialorder %v3368, 0.0
        %vm3472 = vcmp.ge.f32.partialorder %v3370, 0.0
        %vm3473 = vcmp.ge.f32.partialorder %v3372, 0.0
        %vm3474 = vcmp.ge.f32.partialorder %v3376, 0.0
        %vm3475 = vcmp.ge.f32.partialorder %v3378, 0.0
        %vm3476 = vcmp.ge.f32.partialorder %v3380, 0.0
        %vm3477 = vcmp.ge.f32.partialorder %v3382, 0.0
        %vm3478 = vcmp.ge.f32.partialorder %v3386, 0.0
        %vm3479 = vcmp.ge.f32.partialorder %v3388, 0.0
        %vm3480 = vcmp.ge.f32.partialorder %v3390, 0.0
        %vm3481 = vcmp.ge.f32.partialorder %v3392, 0.0
        %vm3482 = vcmp.ge.f32.partialorder %v3396, 0.0
        %vm3483 = vcmp.ge.f32.partialorder %v3398, 0.0
        %vm3484 = vcmp.ge.f32.partialorder %v3400, 0.0
        %vm3485 = vcmp.ge.f32.partialorder %v3402, 0.0
        %vm3486 = vcmp.ge.f32.partialorder %v3406, 0.0
        %vm3487 = vcmp.ge.f32.partialorder %v3408, 0.0
        %vm3488 = vcmp.ge.f32.partialorder %v3410, 0.0
        %vm3489 = vcmp.ge.f32.partialorder %v3412, 0.0
        %vm3490 = vcmp.ge.f32.partialorder %v3416, 0.0
        %vm3491 = vcmp.ge.f32.partialorder %v3418, 0.0
        %vm3492 = vcmp.ge.f32.partialorder %v3420, 0.0
        %vm3493 = vcmp.ge.f32.partialorder %v3422, 0.0
        %vm3494 = vcmp.ge.f32.partialorder %v3426, 0.0
        %vm3495 = vcmp.ge.f32.partialorder %v3428, 0.0
        %vm3496 = vcmp.ge.f32.partialorder %v3430, 0.0
        %vm3497 = vcmp.ge.f32.partialorder %v3432, 0.0
        %v3498 = vmul.f32 %v3276, 0.01
        %v3499 = vmul.f32 %v3278, 0.01
        %v3500 = vmul.f32 %v3280, 0.01
        %v3501 = vmul.f32 %v3282, 0.01
        %v3502 = vmul.f32 %v3286, 0.01
        %v3503 = vmul.f32 %v3288, 0.01
        %v3504 = vmul.f32 %v3290, 0.01
        %v3505 = vmul.f32 %v3292, 0.01
        %v3506 = vmul.f32 %v3296, 0.01
        %v3507 = vmul.f32 %v3298, 0.01
        %v3508 = vmul.f32 %v3300, 0.01
        %v3509 = vmul.f32 %v3302, 0.01
        %v3510 = vmul.f32 %v3306, 0.01
        %v3511 = vmul.f32 %v3308, 0.01
        %v3512 = vmul.f32 %v3310, 0.01
        %v3513 = vmul.f32 %v3312, 0.01
        %v3514 = vmul.f32 %v3316, 0.01
        %v3515 = vmul.f32 %v3318, 0.01
        %v3516 = vmul.f32 %v3320, 0.01
        %v3517 = vmul.f32 %v3322, 0.01
        %v3518 = vmul.f32 %v3326, 0.01
        %v3519 = vmul.f32 %v3328, 0.01
        %v3520 = vmul.f32 %v3330, 0.01
        %v3521 = vmul.f32 %v3332, 0.01
        %v3522 = vmul.f32 %v3336, 0.01
        %v3523 = vmul.f32 %v3338, 0.01
        %v3524 = vmul.f32 %v3340, 0.01
        %v3525 = vmul.f32 %v3342, 0.01
        %v3526 = vmul.f32 %v3346, 0.01
        %v3527 = vmul.f32 %v3348, 0.01
        %v3528 = vmul.f32 %v3350, 0.01
        %v3529 = vmul.f32 %v3352, 0.01
        %v3530 = vmul.f32 %v3356, 0.01
        %v3531 = vmul.f32 %v3358, 0.01
        %v3532 = vmul.f32 %v3360, 0.01
        %v3533 = vmul.f32 %v3362, 0.01
        %v3534 = vmul.f32 %v3366, 0.01
        %v3535 = vmul.f32 %v3368, 0.01
        %v3536 = vmul.f32 %v3370, 0.01
        %v3537 = vmul.f32 %v3372, 0.01
        %v3538 = vmul.f32 %v3376, 0.01
        %v3539 = vmul.f32 %v3378, 0.01
        %v3540 = vmul.f32 %v3380, 0.01
        %v3541 = vmul.f32 %v3382, 0.01
        %v3542 = vmul.f32 %v3386, 0.01
        %v3543 = vmul.f32 %v3388, 0.01
        %v3544 = vmul.f32 %v3390, 0.01
        %v3545 = vmul.f32 %v3392, 0.01
        %v3546 = vmul.f32 %v3396, 0.01
        %v3547 = vmul.f32 %v3398, 0.01
        %v3548 = vmul.f32 %v3400, 0.01
        %v3549 = vmul.f32 %v3402, 0.01
        %v3550 = vmul.f32 %v3406, 0.01
        %v3551 = vmul.f32 %v3408, 0.01
        %v3552 = vmul.f32 %v3410, 0.01
        %v3553 = vmul.f32 %v3412, 0.01
        %v3554 = vmul.f32 %v3416, 0.01
        %v3555 = vmul.f32 %v3418, 0.01
        %v3556 = vmul.f32 %v3420, 0.01
        %v3557 = vmul.f32 %v3422, 0.01
        %v3558 = vmul.f32 %v3426, 0.01
        %v3559 = vmul.f32 %v3428, 0.01
        %v3560 = vmul.f32 %v3430, 0.01
        %v3561 = vmul.f32 %v3432, 0.01
        %v3562 = vsel %vm3434, %v3276, %v3498
        %v3563 = vsel %vm3435, %v3278, %v3499
        %v3564 = vsel %vm3436, %v3280, %v3500
        %v3565 = vsel %vm3437, %v3282, %v3501
        %v3566 = vsel %vm3438, %v3286, %v3502
        %v3567 = vsel %vm3439, %v3288, %v3503
        %v3568 = vsel %vm3440, %v3290, %v3504
        %v3569 = vsel %vm3441, %v3292, %v3505
        %v3570 = vsel %vm3442, %v3296, %v3506
        %v3571 = vsel %vm3443, %v3298, %v3507
        %v3572 = vsel %vm3444, %v3300, %v3508
        %v3573 = vsel %vm3445, %v3302, %v3509
        %v3574 = vsel %vm3446, %v3306, %v3510
        %v3575 = vsel %vm3447, %v3308, %v3511
        %v3576 = vsel %vm3448, %v3310, %v3512
        %v3577 = vsel %vm3449, %v3312, %v3513
        %v3578 = vsel %vm3450, %v3316, %v3514
        %v3579 = vsel %vm3451, %v3318, %v3515
        %v3580 = vsel %vm3452, %v3320, %v3516
        %v3581 = vsel %vm3453, %v3322, %v3517
        %v3582 = vsel %vm3454, %v3326, %v3518
        %v3583 = vsel %vm3455, %v3328, %v3519
        %v3584 = vsel %vm3456, %v3330, %v3520
        %v3585 = vsel %vm3457, %v3332, %v3521
        %v3586 = vsel %vm3458, %v3336, %v3522
        %v3587 = vsel %vm3459, %v3338, %v3523
        %v3588 = vsel %vm3460, %v3340, %v3524
        %v3589 = vsel %vm3461, %v3342, %v3525
        %v3590 = vsel %vm3462, %v3346, %v3526
        %v3591 = vsel %vm3463, %v3348, %v3527
        %v3592 = vsel %vm3464, %v3350, %v3528
        %v3593 = vsel %vm3465, %v3352, %v3529
        %v3594 = vsel %vm3466, %v3356, %v3530
        %v3595 = vsel %vm3467, %v3358, %v3531
        %v3596 = vsel %vm3468, %v3360, %v3532
        %v3597 = vsel %vm3469, %v3362, %v3533
        %v3598 = vsel %vm3470, %v3366, %v3534
        %v3599 = vsel %vm3471, %v3368, %v3535
        %v3600 = vsel %vm3472, %v3370, %v3536
        %v3601 = vsel %vm3473, %v3372, %v3537
        %v3602 = vsel %vm3474, %v3376, %v3538
        %v3603 = vsel %vm3475, %v3378, %v3539
        %v3604 = vsel %vm3476, %v3380, %v3540
        %v3605 = vsel %vm3477, %v3382, %v3541
        %v3606 = vsel %vm3478, %v3386, %v3542
        %v3607 = vsel %vm3479, %v3388, %v3543
        %v3608 = vsel %vm3480, %v3390, %v3544
        %v3609 = vsel %vm3481, %v3392, %v3545
        %v3610 = vsel %vm3482, %v3396, %v3546
        %v3611 = vsel %vm3483, %v3398, %v3547
        %v3612 = vsel %vm3484, %v3400, %v3548
        %v3613 = vsel %vm3485, %v3402, %v3549
        %v3614 = vsel %vm3486, %v3406, %v3550
        %v3615 = vsel %vm3487, %v3408, %v3551
        %v3616 = vsel %vm3488, %v3410, %v3552
        %v3617 = vsel %vm3489, %v3412, %v3553
        %v3618 = vsel %vm3490, %v3416, %v3554
        %v3619 = vsel %vm3491, %v3418, %v3555
        %v3620 = vsel %vm3492, %v3420, %v3556
        %v3621 = vsel %vm3493, %v3422, %v3557
        %v3622 = vsel %vm3494, %v3426, %v3558
        %v3623 = vsel %vm3495, %v3428, %v3559
        %v3624 = vsel %vm3496, %v3430, %v3560
        %v3625 = vsel %vm3497, %v3432, %v3561
        %3626 = vst [vmem:[%s503] sm:$0xff] %v3562
        %3627 = vst [vmem:[%s503 + $0x8] sm:$0xff] %v3563
        %3628 = vst [vmem:[%s503 + $0x10] sm:$0xff] %v3564
        %3629 = vst [vmem:[%s503 + $0x18] sm:$0xff] %v3565
        %3630 = vst [vmem:[%s503 + $0x20] sm:$0xff] %v3566
        %3631 = vst [vmem:[%s503 + $0x28] sm:$0xff] %v3567
        %3632 = vst [vmem:[%s503 + $0x30] sm:$0xff] %v3568
        %3633 = vst [vmem:[%s503 + $0x38] sm:$0xff] %v3569
        %3634 = vst [vmem:[%s503 + $0x40] sm:$0xff] %v3570
        %3635 = vst [vmem:[%s503 + $0x48] sm:$0xff] %v3571
        %3636 = vst [vmem:[%s503 + $0x50] sm:$0xff] %v3572
        %3637 = vst [vmem:[%s503 + $0x58] sm:$0xff] %v3573
        %3638 = vst [vmem:[%s503 + $0x60] sm:$0xff] %v3574
        %3639 = vst [vmem:[%s503 + $0x68] sm:$0xff] %v3575
        %3640 = vst [vmem:[%s503 + $0x70] sm:$0xff] %v3576
        %3641 = vst [vmem:[%s503 + $0x78] sm:$0xff] %v3577
        %3642 = vst [vmem:[%s503 + $0x80] sm:$0xff] %v3578
        %3643 = vst [vmem:[%s503 + $0x88] sm:$0xff] %v3579
        %3644 = vst [vmem:[%s503 + $0x90] sm:$0xff] %v3580
        %3645 = vst [vmem:[%s503 + $0x98] sm:$0xff] %v3581
        %3646 = vst [vmem:[%s503 + $0xa0] sm:$0xff] %v3582
        %3647 = vst [vmem:[%s503 + $0xa8] sm:$0xff] %v3583
        %3648 = vst [vmem:[%s503 + $0xb0] sm:$0xff] %v3584
        %3649 = vst [vmem:[%s503 + $0xb8] sm:$0xff] %v3585
        %3650 = vst [vmem:[%s503 + $0xc0] sm:$0xff] %v3586
        %3651 = vst [vmem:[%s503 + $0xc8] sm:$0xff] %v3587
        %3652 = vst [vmem:[%s503 + $0xd0] sm:$0xff] %v3588
        %3653 = vst [vmem:[%s503 + $0xd8] sm:$0xff] %v3589
        %3654 = vst [vmem:[%s503 + $0xe0] sm:$0xff] %v3590
        %3655 = vst [vmem:[%s503 + $0xe8] sm:$0xff] %v3591
        %3656 = vst [vmem:[%s503 + $0xf0] sm:$0xff] %v3592
        %3657 = vst [vmem:[%s503 + $0xf8] sm:$0xff] %v3593
        %3658 = vst [vmem:[%s503 + $0x100] sm:$0xff] %v3594
        %3659 = vst [vmem:[%s503 + $0x108] sm:$0xff] %v3595
        %3660 = vst [vmem:[%s503 + $0x110] sm:$0xff] %v3596
        %3661 = vst [vmem:[%s503 + $0x118] sm:$0xff] %v3597
        %3662 = vst [vmem:[%s503 + $0x120] sm:$0xff] %v3598
        %3663 = vst [vmem:[%s503 + $0x128] sm:$0xff] %v3599
        %3664 = vst [vmem:[%s503 + $0x130] sm:$0xff] %v3600
        %3665 = vst [vmem:[%s503 + $0x138] sm:$0xff] %v3601
        %3666 = vst [vmem:[%s503 + $0x140] sm:$0xff] %v3602
        %3667 = vst [vmem:[%s503 + $0x148] sm:$0xff] %v3603
        %3668 = vst [vmem:[%s503 + $0x150] sm:$0xff] %v3604
        %3669 = vst [vmem:[%s503 + $0x158] sm:$0xff] %v3605
        %3670 = vst [vmem:[%s503 + $0x160] sm:$0xff] %v3606
        %3671 = vst [vmem:[%s503 + $0x168] sm:$0xff] %v3607
        %3672 = vst [vmem:[%s503 + $0x170] sm:$0xff] %v3608
        %3673 = vst [vmem:[%s503 + $0x178] sm:$0xff] %v3609
        %3674 = vst [vmem:[%s503 + $0x180] sm:$0xff] %v3610
        %3675 = vst [vmem:[%s503 + $0x188] sm:$0xff] %v3611
        %3676 = vst [vmem:[%s503 + $0x190] sm:$0xff] %v3612
        %3677 = vst [vmem:[%s503 + $0x198] sm:$0xff] %v3613
        %3678 = vst [vmem:[%s503 + $0x1a0] sm:$0xff] %v3614
        %3679 = vst [vmem:[%s503 + $0x1a8] sm:$0xff] %v3615
        %3680 = vst [vmem:[%s503 + $0x1b0] sm:$0xff] %v3616
        %3681 = vst [vmem:[%s503 + $0x1b8] sm:$0xff] %v3617
        %3682 = vst [vmem:[%s503 + $0x1c0] sm:$0xff] %v3618
        %3683 = vst [vmem:[%s503 + $0x1c8] sm:$0xff] %v3619
        %3684 = vst [vmem:[%s503 + $0x1d0] sm:$0xff] %v3620
        %3685 = vst [vmem:[%s503 + $0x1d8] sm:$0xff] %v3621
        %3686 = vst [vmem:[%s503 + $0x1e0] sm:$0xff] %v3622
        %3687 = vst [vmem:[%s503 + $0x1e8] sm:$0xff] %v3623
        %3688 = vst [vmem:[%s503 + $0x1f0] sm:$0xff] %v3624
        %3689 = vst [vmem:[%s503 + $0x1f8] sm:$0xff] %v3625
        %v3690 = vpack.c.bf16 %v3564, %v3562
        %v3691 = vpack.c.bf16 %v3565, %v3563
        %v3692 = vpack.c.bf16 %v3568, %v3566
        %v3693 = vpack.c.bf16 %v3569, %v3567
        %v3694 = vpack.c.bf16 %v3572, %v3570
        %v3695 = vpack.c.bf16 %v3573, %v3571
        %v3696 = vpack.c.bf16 %v3576, %v3574
        %v3697 = vpack.c.bf16 %v3577, %v3575
        %v3698 = vpack.c.bf16 %v3580, %v3578
        %v3699 = vpack.c.bf16 %v3581, %v3579
        %v3700 = vpack.c.bf16 %v3584, %v3582
        %v3701 = vpack.c.bf16 %v3585, %v3583
        %v3702 = vpack.c.bf16 %v3588, %v3586
        %v3703 = vpack.c.bf16 %v3589, %v3587
        %v3704 = vpack.c.bf16 %v3592, %v3590
        %v3705 = vpack.c.bf16 %v3593, %v3591
        %v3706 = vpack.c.bf16 %v3596, %v3594
        %v3707 = vpack.c.bf16 %v3597, %v3595
        %v3708 = vpack.c.bf16 %v3600, %v3598
        %v3709 = vpack.c.bf16 %v3601, %v3599
        %v3710 = vpack.c.bf16 %v3604, %v3602
        %v3711 = vpack.c.bf16 %v3605, %v3603
        %v3712 = vpack.c.bf16 %v3608, %v3606
        %v3713 = vpack.c.bf16 %v3609, %v3607
        %v3714 = vpack.c.bf16 %v3612, %v3610
        %v3715 = vpack.c.bf16 %v3613, %v3611
        %v3716 = vpack.c.bf16 %v3616, %v3614
        %v3717 = vpack.c.bf16 %v3617, %v3615
        %v3718 = vpack.c.bf16 %v3620, %v3618
        %v3719 = vpack.c.bf16 %v3621, %v3619
        %v3720 = vpack.c.bf16 %v3624, %v3622
        %v3721 = vpack.c.bf16 %v3625, %v3623
        %v3722 = vld [vmem:[%s12] sm:$0xf]
        %v3723 = vld [vmem:[%s12 + $0x4] sm:$0xf]
        %v3724 = vld [vmem:[%s12 + $0x8] sm:$0xf]
        %v3725 = vld [vmem:[%s12 + $0xc] sm:$0xf]
        %v3726 = vld [vmem:[%s12 + $0x10] sm:$0xf]
        %v3727 = vld [vmem:[%s12 + $0x14] sm:$0xf]
        %v3728 = vld [vmem:[%s12 + $0x18] sm:$0xf]
        %v3729 = vld [vmem:[%s12 + $0x1c] sm:$0xf]
        %v3730 = vld [vmem:[%s12 + $0x20] sm:$0xf]
        %v3731 = vld [vmem:[%s12 + $0x24] sm:$0xf]
        %v3732 = vld [vmem:[%s12 + $0x28] sm:$0xf]
        %v3733 = vld [vmem:[%s12 + $0x2c] sm:$0xf]
        %v3734 = vld [vmem:[%s12 + $0x30] sm:$0xf]
        %v3735 = vld [vmem:[%s12 + $0x34] sm:$0xf]
        %v3736 = vld [vmem:[%s12 + $0x38] sm:$0xf]
        %v3737 = vld [vmem:[%s12 + $0x3c] sm:$0xf]
        %v3738 = vld [vmem:[%s12 + $0x40] sm:$0xf]
        %v3739 = vld [vmem:[%s12 + $0x44] sm:$0xf]
        %v3740 = vld [vmem:[%s12 + $0x48] sm:$0xf]
        %v3741 = vld [vmem:[%s12 + $0x4c] sm:$0xf]
        %v3742 = vld [vmem:[%s12 + $0x50] sm:$0xf]
        %v3743 = vld [vmem:[%s12 + $0x54] sm:$0xf]
        %v3744 = vld [vmem:[%s12 + $0x58] sm:$0xf]
        %v3745 = vld [vmem:[%s12 + $0x5c] sm:$0xf]
        %v3746 = vld [vmem:[%s12 + $0x60] sm:$0xf]
        %v3747 = vld [vmem:[%s12 + $0x64] sm:$0xf]
        %v3748 = vld [vmem:[%s12 + $0x68] sm:$0xf]
        %v3749 = vld [vmem:[%s12 + $0x6c] sm:$0xf]
        %v3750 = vld [vmem:[%s12 + $0x70] sm:$0xf]
        %v3751 = vld [vmem:[%s12 + $0x74] sm:$0xf]
        %v3752 = vld [vmem:[%s12 + $0x78] sm:$0xf]
        %v3753 = vld [vmem:[%s12 + $0x7c] sm:$0xf]
        %v3754 = vld [vmem:[%s13] sm:$0x1]
        %v3756 = vlaneseq
        %v3757 = vshrl.u32 %v3756, 7
        %v3758 = vsub.s32 0, %v3757
        %v3759 = vrot.slane %v3754, %v3758
        %v3793 = vunpack.c.l.b16 %v3722
        %v3794 = vunpack.c.l.b16 %v3723
        %v3795 = vunpack.c.l.b16 %v3724
        %v3796 = vunpack.c.l.b16 %v3725
        %v3797 = vunpack.c.l.b16 %v3726
        %v3798 = vunpack.c.l.b16 %v3727
        %v3799 = vunpack.c.l.b16 %v3728
        %v3800 = vunpack.c.l.b16 %v3729
        %v3801 = vunpack.c.l.b16 %v3730
        %v3802 = vunpack.c.l.b16 %v3731
        %v3803 = vunpack.c.l.b16 %v3732
        %v3804 = vunpack.c.l.b16 %v3733
        %v3805 = vunpack.c.l.b16 %v3734
        %v3806 = vunpack.c.l.b16 %v3735
        %v3807 = vunpack.c.l.b16 %v3736
        %v3808 = vunpack.c.l.b16 %v3737
        %v3809 = vunpack.c.l.b16 %v3738
        %v3810 = vunpack.c.l.b16 %v3739
        %v3811 = vunpack.c.l.b16 %v3740
        %v3812 = vunpack.c.l.b16 %v3741
        %v3813 = vunpack.c.l.b16 %v3742
        %v3814 = vunpack.c.l.b16 %v3743
        %v3815 = vunpack.c.l.b16 %v3744
        %v3816 = vunpack.c.l.b16 %v3745
        %v3817 = vunpack.c.l.b16 %v3746
        %v3818 = vunpack.c.l.b16 %v3747
        %v3819 = vunpack.c.l.b16 %v3748
        %v3820 = vunpack.c.l.b16 %v3749
        %v3821 = vunpack.c.l.b16 %v3750
        %v3822 = vunpack.c.l.b16 %v3751
        %v3823 = vunpack.c.l.b16 %v3752
        %v3824 = vunpack.c.l.b16 %v3753
        %v3825 = vpack.c.b16 %v3794, %v3793
        %v3826 = vpack.c.b16 %v3796, %v3795
        %v3827 = vpack.c.b16 %v3798, %v3797
        %v3828 = vpack.c.b16 %v3800, %v3799
        %v3829 = vpack.c.b16 %v3802, %v3801
        %v3830 = vpack.c.b16 %v3804, %v3803
        %v3831 = vpack.c.b16 %v3806, %v3805
        %v3832 = vpack.c.b16 %v3808, %v3807
        %v3833 = vpack.c.b16 %v3810, %v3809
        %v3834 = vpack.c.b16 %v3812, %v3811
        %v3835 = vpack.c.b16 %v3814, %v3813
        %v3836 = vpack.c.b16 %v3816, %v3815
        %v3837 = vpack.c.b16 %v3818, %v3817
        %v3838 = vpack.c.b16 %v3820, %v3819
        %v3839 = vpack.c.b16 %v3822, %v3821
        %v3840 = vpack.c.b16 %v3824, %v3823
        %3857 = vmatprep.subr.bf16.mxu0 0
        %3858 = vmatpush1.bf16.msra.mxu0 %v3825
        %3859 = vmatprep.subr.bf16.mxu0 0
        %3860 = vmatpush1.bf16.msra.mxu0 %v3826
        %3861 = vmatprep.subr.bf16.mxu0 0
        %3862 = vmatpush1.bf16.msra.mxu0 %v3827
        %3863 = vmatprep.subr.bf16.mxu0 0
        %3864 = vmatpush1.bf16.msra.mxu0 %v3828
        %3865 = vmatprep.subr.bf16.mxu0 0
        %3866 = vmatpush1.bf16.msra.mxu0 %v3829
        %3867 = vmatprep.subr.bf16.mxu0 0
        %3868 = vmatpush1.bf16.msra.mxu0 %v3830
        %3869 = vmatprep.subr.bf16.mxu0 0
        %3870 = vmatpush1.bf16.msra.mxu0 %v3831
        %3871 = vmatprep.subr.bf16.mxu0 0
        %3872 = vmatpush1.bf16.msra.mxu0 %v3832
        %3873 = vmatprep.subr.bf16.mxu0 0
        %3874 = vmatpush1.bf16.msra.mxu0 %v3833
        %3875 = vmatprep.subr.bf16.mxu0 0
        %3876 = vmatpush1.bf16.msra.mxu0 %v3834
        %3877 = vmatprep.subr.bf16.mxu0 0
        %3878 = vmatpush1.bf16.msra.mxu0 %v3835
        %3879 = vmatprep.subr.bf16.mxu0 0
        %3880 = vmatpush1.bf16.msra.mxu0 %v3836
        %3881 = vmatprep.subr.bf16.mxu0 0
        %3882 = vmatpush1.bf16.msra.mxu0 %v3837
        %3883 = vmatprep.subr.bf16.mxu0 0
        %3884 = vmatpush1.bf16.msra.mxu0 %v3838
        %3885 = vmatprep.subr.bf16.mxu0 0
        %3886 = vmatpush1.bf16.msra.mxu0 %v3839
        %3887 = vmatprep.subr.bf16.mxu0 0
        %3888 = vmatpush1.bf16.msra.mxu0 %v3840
        %3889 = vmatprep.mubr.bf16.mxu0 %v3691
        %3890 = vmatmul.mubr.bf16.gmra.mrb[0].mxu0 %v3690
        %v3891 = vpop.f32.mrb[0].mxu0
        %v3892 = vadd.f32 %v3759, %v3891
        %v3893 = vpop.f32.mrb[0].mxu0
        %v3894 = vpop.f32.mrb[0].mxu0
        %v3895 = vadd.f32 %v3759, %v3894
        %v3896 = vpop.f32.mrb[0].mxu0
        %3897 = vmatprep.mubr.bf16.mxu0 %v3693
        %3898 = vmatmul.mubr.bf16.gmra.mrb[0].mxu0 %v3692
        %v3899 = vpop.f32.mrb[0].mxu0
        %v3900 = vadd.f32 %v3759, %v3899
        %v3901 = vpop.f32.mrb[0].mxu0
        %v3902 = vpop.f32.mrb[0].mxu0
        %v3903 = vadd.f32 %v3759, %v3902
        %v3904 = vpop.f32.mrb[0].mxu0
        %3905 = vmatprep.mubr.bf16.mxu0 %v3695
        %3906 = vmatmul.mubr.bf16.gmra.mrb[0].mxu0 %v3694
        %v3907 = vpop.f32.mrb[0].mxu0
        %v3908 = vadd.f32 %v3759, %v3907
        %v3909 = vpop.f32.mrb[0].mxu0
        %v3910 = vpop.f32.mrb[0].mxu0
        %v3911 = vadd.f32 %v3759, %v3910
        %v3912 = vpop.f32.mrb[0].mxu0
        %3913 = vmatprep.mubr.bf16.mxu0 %v3697
        %3914 = vmatmul.mubr.bf16.gmra.mrb[0].mxu0 %v3696
        %v3915 = vpop.f32.mrb[0].mxu0
        %v3916 = vadd.f32 %v3759, %v3915
        %v3917 = vpop.f32.mrb[0].mxu0
        %v3918 = vpop.f32.mrb[0].mxu0
        %v3919 = vadd.f32 %v3759, %v3918
        %v3920 = vpop.f32.mrb[0].mxu0
        %3921 = vmatprep.mubr.bf16.mxu0 %v3699
        %3922 = vmatmul.mubr.bf16.gmra.mrb[0].mxu0 %v3698
        %v3923 = vpop.f32.mrb[0].mxu0
        %v3924 = vadd.f32 %v3759, %v3923
        %v3925 = vpop.f32.mrb[0].mxu0
        %v3926 = vpop.f32.mrb[0].mxu0
        %v3927 = vadd.f32 %v3759, %v3926
        %v3928 = vpop.f32.mrb[0].mxu0
        %3929 = vmatprep.mubr.bf16.mxu0 %v3701
        %3930 = vmatmul.mubr.bf16.gmra.mrb[0].mxu0 %v3700
        %v3931 = vpop.f32.mrb[0].mxu0
        %v3932 = vadd.f32 %v3759, %v3931
        %v3933 = vpop.f32.mrb[0].mxu0
        %v3934 = vpop.f32.mrb[0].mxu0
        %v3935 = vadd.f32 %v3759, %v3934
        %v3936 = vpop.f32.mrb[0].mxu0
        %3937 = vmatprep.mubr.bf16.mxu0 %v3703
        %3938 = vmatmul.mubr.bf16.gmra.mrb[0].mxu0 %v3702
        %v3939 = vpop.f32.mrb[0].mxu0
        %v3940 = vadd.f32 %v3759, %v3939
        %v3941 = vpop.f32.mrb[0].mxu0
        %v3942 = vpop.f32.mrb[0].mxu0
        %v3943 = vadd.f32 %v3759, %v3942
        %v3944 = vpop.f32.mrb[0].mxu0
        %3945 = vmatprep.mubr.bf16.mxu0 %v3705
        %3946 = vmatmul.mubr.bf16.gmra.mrb[0].mxu0 %v3704
        %v3947 = vpop.f32.mrb[0].mxu0
        %v3948 = vadd.f32 %v3759, %v3947
        %v3949 = vpop.f32.mrb[0].mxu0
        %v3950 = vpop.f32.mrb[0].mxu0
        %v3951 = vadd.f32 %v3759, %v3950
        %v3952 = vpop.f32.mrb[0].mxu0
        %3953 = vmatprep.mubr.bf16.mxu0 %v3707
        %3954 = vmatmul.mubr.bf16.gmra.mrb[0].mxu0 %v3706
        %v3955 = vpop.f32.mrb[0].mxu0
        %v3956 = vadd.f32 %v3759, %v3955
        %v3957 = vpop.f32.mrb[0].mxu0
        %v3958 = vpop.f32.mrb[0].mxu0
        %v3959 = vadd.f32 %v3759, %v3958
        %v3960 = vpop.f32.mrb[0].mxu0
        %3961 = vmatprep.mubr.bf16.mxu0 %v3709
        %3962 = vmatmul.mubr.bf16.gmra.mrb[0].mxu0 %v3708
        %v3963 = vpop.f32.mrb[0].mxu0
        %v3964 = vadd.f32 %v3759, %v3963
        %v3965 = vpop.f32.mrb[0].mxu0
        %v3966 = vpop.f32.mrb[0].mxu0
        %v3967 = vadd.f32 %v3759, %v3966
        %v3968 = vpop.f32.mrb[0].mxu0
        %3969 = vmatprep.mubr.bf16.mxu0 %v3711
        %3970 = vmatmul.mubr.bf16.gmra.mrb[0].mxu0 %v3710
        %v3971 = vpop.f32.mrb[0].mxu0
        %v3972 = vadd.f32 %v3759, %v3971
        %v3973 = vpop.f32.mrb[0].mxu0
        %v3974 = vpop.f32.mrb[0].mxu0
        %v3975 = vadd.f32 %v3759, %v3974
        %v3976 = vpop.f32.mrb[0].mxu0
        %3977 = vmatprep.mubr.bf16.mxu0 %v3713
        %3978 = vmatmul.mubr.bf16.gmra.mrb[0].mxu0 %v3712
        %v3979 = vpop.f32.mrb[0].mxu0
        %v3980 = vadd.f32 %v3759, %v3979
        %v3981 = vpop.f32.mrb[0].mxu0
        %v3982 = vpop.f32.mrb[0].mxu0
        %v3983 = vadd.f32 %v3759, %v3982
        %v3984 = vpop.f32.mrb[0].mxu0
        %3985 = vmatprep.mubr.bf16.mxu0 %v3715
        %3986 = vmatmul.mubr.bf16.gmra.mrb[0].mxu0 %v3714
        %v3987 = vpop.f32.mrb[0].mxu0
        %v3988 = vadd.f32 %v3759, %v3987
        %v3989 = vpop.f32.mrb[0].mxu0
        %v3990 = vpop.f32.mrb[0].mxu0
        %v3991 = vadd.f32 %v3759, %v3990
        %v3992 = vpop.f32.mrb[0].mxu0
        %3993 = vmatprep.mubr.bf16.mxu0 %v3717
        %3994 = vmatmul.mubr.bf16.gmra.mrb[0].mxu0 %v3716
        %v3995 = vpop.f32.mrb[0].mxu0
        %v3996 = vadd.f32 %v3759, %v3995
        %v3997 = vpop.f32.mrb[0].mxu0
        %v3998 = vpop.f32.mrb[0].mxu0
        %v3999 = vadd.f32 %v3759, %v3998
        %v4000 = vpop.f32.mrb[0].mxu0
        %4001 = vmatprep.mubr.bf16.mxu0 %v3719
        %4002 = vmatmul.mubr.bf16.gmra.mrb[0].mxu0 %v3718
        %v4003 = vpop.f32.mrb[0].mxu0
        %v4004 = vadd.f32 %v3759, %v4003
        %v4005 = vpop.f32.mrb[0].mxu0
        %v4006 = vpop.f32.mrb[0].mxu0
        %v4007 = vadd.f32 %v3759, %v4006
        %v4008 = vpop.f32.mrb[0].mxu0
        %4009 = vmatprep.mubr.bf16.mxu0 %v3721
        %4010 = vmatmul.mubr.bf16.gmra.mrb[0].mxu0 %v3720
        %v4011 = vpop.f32.mrb[0].mxu0
        %v4012 = vadd.f32 %v3759, %v4011
        %v4013 = vpop.f32.mrb[0].mxu0
        %v4014 = vpop.f32.mrb[0].mxu0
        %v4015 = vadd.f32 %v3759, %v4014
        %v4016 = vpop.f32.mrb[0].mxu0
        %4017 = vdwg.mxu0
        %4018 = vst [vmem:[%s525] sm:$0xff] %v3892
        %4019 = vst [vmem:[%s525 + $0x8] sm:$0xff] %v3895
        %4020 = vst [vmem:[%s525 + $0x10] sm:$0xff] %v3900
        %4021 = vst [vmem:[%s525 + $0x18] sm:$0xff] %v3903
        %4022 = vst [vmem:[%s525 + $0x20] sm:$0xff] %v3908
        %4023 = vst [vmem:[%s525 + $0x28] sm:$0xff] %v3911
        %4024 = vst [vmem:[%s525 + $0x30] sm:$0xff] %v3916
        %4025 = vst [vmem:[%s525 + $0x38] sm:$0xff] %v3919
        %4026 = vst [vmem:[%s525 + $0x40] sm:$0xff] %v3924
        %4027 = vst [vmem:[%s525 + $0x48] sm:$0xff] %v3927
        %4028 = vst [vmem:[%s525 + $0x50] sm:$0xff] %v3932
        %4029 = vst [vmem:[%s525 + $0x58] sm:$0xff] %v3935
        %4030 = vst [vmem:[%s525 + $0x60] sm:$0xff] %v3940
        %4031 = vst [vmem:[%s525 + $0x68] sm:$0xff] %v3943
        %4032 = vst [vmem:[%s525 + $0x70] sm:$0xff] %v3948
        %4033 = vst [vmem:[%s525 + $0x78] sm:$0xff] %v3951
        %4034 = vst [vmem:[%s525 + $0x80] sm:$0xff] %v3956
        %4035 = vst [vmem:[%s525 + $0x88] sm:$0xff] %v3959
        %4036 = vst [vmem:[%s525 + $0x90] sm:$0xff] %v3964
        %4037 = vst [vmem:[%s525 + $0x98] sm:$0xff] %v3967
        %4038 = vst [vmem:[%s525 + $0xa0] sm:$0xff] %v3972
        %4039 = vst [vmem:[%s525 + $0xa8] sm:$0xff] %v3975
        %4040 = vst [vmem:[%s525 + $0xb0] sm:$0xff] %v3980
        %4041 = vst [vmem:[%s525 + $0xb8] sm:$0xff] %v3983
        %4042 = vst [vmem:[%s525 + $0xc0] sm:$0xff] %v3988
        %4043 = vst [vmem:[%s525 + $0xc8] sm:$0xff] %v3991
        %4044 = vst [vmem:[%s525 + $0xd0] sm:$0xff] %v3996
        %4045 = vst [vmem:[%s525 + $0xd8] sm:$0xff] %v3999
        %4046 = vst [vmem:[%s525 + $0xe0] sm:$0xff] %v4004
        %4047 = vst [vmem:[%s525 + $0xe8] sm:$0xff] %v4007
        %4048 = vst [vmem:[%s525 + $0xf0] sm:$0xff] %v4012
        %4049 = vst [vmem:[%s525 + $0xf8] sm:$0xff] %v4015
        %s4050 = sand.u32 %s342, 1
        %s4051 = scalar_lea.sflag [#allocation3], %s4050
        %s4052 = sand.u32 %s342, 1
        %s4053 = smul.addr %s4052, 512
        %s4054 = scalar_lea.vmem [#allocation2], %s4053
        %p4055 = scmp.lt.s32.totalorder %s30, 1
        %s4056 = scalar_select %p4055, %s30, 1
        %s4057 = smul.addr %s4056, 32
        %s4058 = smul.addr %s4057, 8
        %s4059 = scalar_lea.vmem %s15, %s4058
        // Predicated region
        $region77: #{decoder_forward.1} parent=75 // pred_check
          %p4060 = pneg %p352
        $region78: #{decoder_forward.1} parent=75 // pred_check_branch
          %4062 = sbr.rel (%p4060) target = $region80
        $region79: #{decoder_forward.1} parent=75 // pred_region
          %s4064 = ssub.s32 8192, 8192
          %4065 = vsyncadd %s4051, %s4064
          %s4066 = smul.addr %s30, 64
          %s4067 = smul.addr %s4066, 128
          %s4068 = scalar_lea.hbm %s14, %s4067
          %s4069 = sshll.u32 %s4054, 4
          %s4070 = int_to_ptr.vmem [resolvable:$true] %s4069
          %4075 = dma.vmem_to_hbm [thread:$0]  %s4070, 8192, %s4068, %s4051, 256, 256, 16
        $region80: #{decoder_forward.1} parent=75 // pred_fallthru
          _
        // Predicated region
        $region81: #{decoder_forward.1} parent=75 // pred_check
          %p4076 = pneg %p378
        $region82: #{decoder_forward.1} parent=75 // pred_check_branch
          %4078 = sbr.rel (%p4076) target = $region84
        $region83: #{decoder_forward.1} parent=75 // pred_region
          _
        $region84: #{decoder_forward.1} parent=75 // pred_fallthru
          _
      $region76: #{decoder_forward.1} parent=5 // pred_fallthru
        _
      %p4079 = scmp.le.s32.totalorder 2, %s25
      // Predicated region
      $region85: #{decoder_forward.1} parent=5 // pred_check
        %p4080 = pneg %p4079
      $region86: #{decoder_forward.1} parent=5 // pred_check_branch
        %4082 = sbr.rel (%p4080) target = $region88
      $region87: #{decoder_forward.1} parent=5 // pred_region
        %s4083 = ssub.s32 %s25, 2
        // Predicated region
        $region89: #{decoder_forward.1} parent=87 // pred_check
          %p4084 = pneg %p358
        $region90: #{decoder_forward.1} parent=87 // pred_check_branch
          %4086 = sbr.rel (%p4084) target = $region92
        $region91: #{decoder_forward.1} parent=87 // pred_region
          %s4087 = sand.u32 %s343, 1
          %s4088 = scalar_lea.sflag [#allocation3], %s4087
          %s4089 = sand.u32 %s343, 1
          %s4090 = smul.addr %s4089, 512
          %s4091 = scalar_lea.vmem [#allocation2], %s4090
          %4092 = dma.done %s4088, 8192
        $region92: #{decoder_forward.1} parent=87 // pred_fallthru
          _
        // Predicated region
        $region93: #{decoder_forward.1} parent=87 // pred_check
          %p4093 = pneg %p384
        $region94: #{decoder_forward.1} parent=87 // pred_check_branch
          %4095 = sbr.rel (%p4093) target = $region96
        $region95: #{decoder_forward.1} parent=87 // pred_region
          %p4096 = scmp.lt.s32.totalorder %s31, 1
          %s4097 = scalar_select %p4096, %s31, 1
          %s4098 = smul.addr %s4097, 32
          %s4099 = smul.addr %s4098, 8
          %s4100 = scalar_lea.vmem %s15, %s4099
        $region96: #{decoder_forward.1} parent=87 // pred_fallthru
          _
      $region88: #{decoder_forward.1} parent=5 // pred_fallthru
        _
    $region6: #{decoder_forward.1} parent=1 // loop_footer
      %s29 = sadd.s32 1, %s25
    $region7: #{decoder_forward.1} parent=1 // loop_footer_branch
      %24 = sbr.rel target = $region3
    $region8: #{decoder_forward.1} parent=1 // loop_exit
      _
    %4101 = vsyncpa [#allocation3], 1
    %s4102 = scalar_lea.sflag [#allocation3], 1
    %4103 = vsyncpa %s4102, 1

</llo_original>
